<compile_context>
chip_gen: v6e
topology: v6e:2x2x1
jax: 0.10.0
libtpu: 0.0.40
codegen_flags: <defaults>
</compile_context>

<pallas_src>
import jax
import jax.numpy as jnp
from jax import lax
from jax.experimental import pallas as pl
from jax.experimental.pallas import tpu as pltpu

EPS = 1e-5
LANE = 128


def _round_up(x, m):
    return (x + m - 1) // m * m


def _pad_to(a, shape):
    return jnp.pad(a, [(0, s - d) for d, s in zip(a.shape, shape)])


def _tpu_vmem_bytes():
    try:
        return int(pltpu.get_tpu_info().vmem_capacity_bytes)
    except Exception:
        return 64 * 1024 * 1024


_VMEM_CAP = _tpu_vmem_bytes()
# ~half of physical VMEM: 64 MiB on 128-MiB parts (v5e/v6e), 32 MiB on v7x.
_VMEM_LIMIT = min(_VMEM_CAP // 2, 96 * 1024 * 1024)
_TILE_BUDGET = _VMEM_LIMIT // 2          # headroom for weights / compiler scratch


def _cparams(sem):
    return pltpu.CompilerParams(dimension_semantics=sem,
                                vmem_limit_bytes=_VMEM_LIMIT)


def _pick_row_tile(m, row_bytes, budget):
    """Largest 8-aligned divisor of m whose double-buffered blocks fit budget."""
    budget = max(budget, 1)
    for t in range(min(m, 2048), 7, -1):
        if m % t == 0 and t % 8 == 0 and 2 * t * row_bytes <= budget:
            return t
    return m   # fallback: single full-extent block (always BlockSpec-legal)


def _pick_h_tile(h, w, c, budget):
    """Largest divisor of h whose pass-2 per-step working set fits budget."""
    budget = max(budget, 1)
    best = 1
    for d in range(1, h + 1):
        if h % d:
            continue
        rows = d * w
        step = (2 * ((d + 2) * w * c * 2 + rows * c * 2)   # dbl-buffered blocks
                + (d + 2) * (w + 2) * c * 4                # bf16 halo tile + taps
                + 2 * rows * c * 4)                        # f32 accumulator slack
        if step <= budget and rows <= 8192:
            best = d
    return best


def _partial_stats(y):
    """(rows, C) f32 -> (2, C) per-channel [sum; sum of squares]."""
    return jnp.concatenate(
        [jnp.sum(y, axis=0, keepdims=True),
         jnp.sum(y * y, axis=0, keepdims=True)], axis=0)


# ------------------------------ kernels -------------------------------------

def _conv1x1_stats_kernel(x_ref, w_ref, y_ref, st_ref):
    """conv1: y = x @ w (1x1 conv == channel matmul, bf16 MXU) + bn1 stats."""
    y = jnp.dot(x_ref[...].astype(jnp.bfloat16), w_ref[...],
                preferred_element_type=jnp.float32)
    y_ref[...] = y.astype(y_ref.dtype)          # bf16 intermediate
    st_ref[0] = _partial_stats(y)               # stats from the f32 accumulator


def _bn_relu_conv3x3_stats_kernel(yc_ref, yt_ref, yb_ref, s_ref, b_ref, w_ref,
                                  o_ref, st_ref):
    """Folded bn1 + ReLU, 3x3 conv as 9 accumulated tap matmuls, bn2 stats.

    yc: (1, TH, W, C) center rows; yt / yb: (1, 1, W, C) halo rows (clamped
    row indices, masked to zero at the image top / bottom edges).
    """
    _, TH, W, C = yc_ref.shape
    i = pl.program_id(1)
    ni = pl.num_programs(1)

    scale = s_ref[...].reshape(1, 1, C)
    bias = b_ref[...].reshape(1, 1, C)

    def act_b(v):   # (rows, W, C) -> bf16 post-BN-ReLU
        return jnp.maximum(v.astype(jnp.float32) * scale + bias,
                           0.0).astype(jnp.bfloat16)

    y_c = yc_ref[...].reshape(TH, W, C)
    y_t = yt_ref[...].reshape(1, W, C)
    y_b = yb_ref[...].reshape(1, W, C)

    zero_row = jnp.zeros((1, W, C), jnp.bfloat16)
    top = jnp.where(i > 0, act_b(y_t), zero_row)       # halo = 0 at image top
    bot = jnp.where(i < ni - 1, act_b(y_b), zero_row)  # halo = 0 at image bottom

    hb = jnp.concatenate([top, act_b(y_c), bot], axis=0)     # (TH+2, W, C)
    hb = jnp.pad(hb, ((0, 0), (1, 1), (0, 0)))               # (TH+2, W+2, C)

    acc = jnp.zeros((TH * W, C), jnp.float32)
    for k in range(9):                                        # static unroll
        kh, kw = k // 3, k % 3
        tap = hb[kh:kh + TH, kw:kw + W, :].reshape(TH * W, C)
        acc = acc + jnp.dot(tap, w_ref[k], preferred_element_type=jnp.float32)

    o_ref[...] = acc.reshape(1, 1, TH * W, C).astype(o_ref.dtype)
    st_ref[...] = _partial_stats(acc).reshape(1, 1, 2, C)


def _bn_relu_conv1x1_stats_kernel(y_ref, s_ref, b_ref, w_ref, o_ref, st_ref):
    """Folded bn2 + ReLU, conv3 (1x1 channel matmul, bf16 MXU), bn3 stats."""
    h = jnp.maximum(y_ref[...].astype(jnp.float32) * s_ref[...] + b_ref[...],
                    0.0)
    y = jnp.dot(h.astype(jnp.bfloat16), w_ref[...],
                preferred_element_type=jnp.float32)
    o_ref[...] = y
    st_ref[0] = _partial_stats(y)


def _bn_add_relu_kernel(y_ref, x_ref, s_ref, b_ref, o_ref):
    """Folded bn3, residual add, final ReLU."""
    o_ref[...] = jnp.maximum(
        y_ref[...] * s_ref[...] + b_ref[...] + x_ref[...], 0.0)


# ------------------------------ wrapper -------------------------------------

def _fold_bn(stats, gamma, beta, count):
    """Reduce per-tile (sum, sumsq) -> per-channel (scale, bias) for BN."""
    s = jnp.sum(stats[:, 0, :], axis=0)
    ss = jnp.sum(stats[:, 1, :], axis=0)
    mean = s / count
    var = jnp.maximum(ss / count - mean * mean, 0.0)
    scale = gamma.reshape(-1) * lax.rsqrt(var + EPS)
    bias = beta.reshape(-1) - mean * scale
    return scale.reshape(1, -1), bias.reshape(1, -1)


@jax.jit
def bottleneck_forward(x_nchw, params):
    """x_nchw: (N, Cin, H, W) float32; returns (N, Cin, H, W) float32."""
    # NOTE: when chaining bottlenecks inside a network, keep activations NHWC
    # and channel-padded across blocks and convert layout only at the network
    # boundary; the per-call transposes below are only for the module API.
    x = jnp.transpose(x_nchw, (0, 2, 3, 1)).astype(jnp.float32)   # NHWC
    N, H, W, Cin = x.shape
    P = params["w1"].shape[1]
    E = params["w3"].shape[1]
    assert Cin == E, "stride=1 / downsample=None requires inplanes == planes*4"

    Cp = _round_up(Cin, LANE)
    Pp = _round_up(P, LANE)
    Ep = _round_up(E, LANE)
    M = N * H * W
    bf16 = jnp.bfloat16

    # channel-padded (lane-dense) operands; weights in bf16 for the MXU
    xf = _pad_to(x.reshape(M, Cin), (M, Cp))
    w1 = _pad_to(params["w1"], (Cp, Pp)).astype(bf16)
    w2 = _pad_to(params["w2"], (3, 3, Pp, Pp)).reshape(9, Pp, Pp).astype(bf16)
    w3 = _pad_to(params["w3"], (Pp, Ep)).astype(bf16)
    g1 = _pad_to(params["g1"], (1, Pp)); b1 = _pad_to(params["b1"], (1, Pp))
    g2 = _pad_to(params["g2"], (1, Pp)); b2 = _pad_to(params["b2"], (1, Pp))
    g3 = _pad_to(params["g3"], (1, Ep)); b3 = _pad_to(params["b3"], (1, Ep))

    # ---- pass 1: conv1 (1x1) + bn1 partial stats, tiled over N*H*W rows ----
    row_b1 = Cp * 4 + Pp * 2
    TM1 = _pick_row_tile(M, row_b1, _TILE_BUDGET - 4 * Cp * Pp)
    T1 = M // TM1
    y1, st1 = pl.pallas_call(
        _conv1x1_stats_kernel,
        out_shape=(jax.ShapeDtypeStruct((M, Pp), bf16),
                   jax.ShapeDtypeStruct((T1, 2, Pp), jnp.float32)),
        grid=(T1,),
        in_specs=[pl.BlockSpec((TM1, Cp), lambda i: (i, 0)),
                  pl.BlockSpec((Cp, Pp), lambda i: (0, 0))],
        out_specs=(pl.BlockSpec((TM1, Pp), lambda i: (i, 0)),
                   pl.BlockSpec((1, 2, Pp), lambda i: (i, 0, 0))),
        compiler_params=_cparams(("parallel",)),
        cost_estimate=pl.CostEstimate(
            flops=2 * M * Cp * Pp, transcendentals=0,
            bytes_accessed=M * Cp * 4 + Cp * Pp * 2 + M * Pp * 2),
    )(xf, w1)
    s1, bb1 = _fold_bn(st1, g1, b1, M)

    # ---- pass 2: bn1+relu -> conv2 (3x3, tap matmuls) + bn2 stats ----------
    # Grid = (image, H-row tile); halo rows are separate clamped 1-row blocks.
    TH = _pick_h_tile(H, W, Pp, _TILE_BUDGET - 4 * 9 * Pp * Pp)
    HT = H // TH
    y1r = y1.reshape(N, H, W, Pp)
    y2, st2 = pl.pallas_call(
        _bn_relu_conv3x3_stats_kernel,
        out_shape=(jax.ShapeDtypeStruct((N, HT, TH * W, Pp), bf16),
                   jax.ShapeDtypeStruct((N, HT, 2, Pp), jnp.float32)),
        grid=(N, HT),
        in_specs=[
            pl.BlockSpec((1, TH, W, Pp), lambda n, i: (n, i, 0, 0)),
            pl.BlockSpec((1, 1, W, Pp),
                         lambda n, i: (n, jnp.maximum(i * TH - 1, 0), 0, 0)),
            pl.BlockSpec((1, 1, W, Pp),
                         lambda n, i: (n, jnp.minimum(i * TH + TH, H - 1), 0, 0)),
            pl.BlockSpec((1, Pp), lambda n, i: (0, 0)),
            pl.BlockSpec((1, Pp), lambda n, i: (0, 0)),
            pl.BlockSpec((9, Pp, Pp), lambda n, i: (0, 0, 0)),
        ],
        out_specs=(pl.BlockSpec((1, 1, TH * W, Pp), lambda n, i: (n, i, 0, 0)),
                   pl.BlockSpec((1, 1, 2, Pp), lambda n, i: (n, i, 0, 0))),
        compiler_params=_cparams(("parallel", "parallel")),
        cost_estimate=pl.CostEstimate(
            flops=2 * M * 9 * Pp * Pp, transcendentals=0,
            bytes_accessed=2 * M * Pp * 2 + 9 * Pp * Pp * 2),
    )(y1r, y1r, y1r, s1, bb1, w2)
    s2, bb2 = _fold_bn(st2.reshape(N * HT, 2, Pp), g2, b2, M)

    # ---- pass 3: bn2+relu -> conv3 (1x1) + bn3 stats, tiled over rows ------
    row_b3 = Pp * 2 + Ep * 4
    TM3 = _pick_row_tile(M, row_b3, _TILE_BUDGET - 4 * Pp * Ep)
    T3 = M // TM3
    y3, st3 = pl.pallas_call(
        _bn_relu_conv1x1_stats_kernel,
        out_shape=(jax.ShapeDtypeStruct((M, Ep), jnp.float32),
                   jax.ShapeDtypeStruct((T3, 2, Ep), jnp.float32)),
        grid=(T3,),
        in_specs=[pl.BlockSpec((TM3, Pp), lambda i: (i, 0)),
                  pl.BlockSpec((1, Pp), lambda i: (0, 0)),
                  pl.BlockSpec((1, Pp), lambda i: (0, 0)),
                  pl.BlockSpec((Pp, Ep), lambda i: (0, 0))],
        out_specs=(pl.BlockSpec((TM3, Ep), lambda i: (i, 0)),
                   pl.BlockSpec((1, 2, Ep), lambda i: (i, 0, 0))),
        compiler_params=_cparams(("parallel",)),
        cost_estimate=pl.CostEstimate(
            flops=2 * M * Pp * Ep, transcendentals=0,
            bytes_accessed=M * Pp * 2 + Pp * Ep * 2 + M * Ep * 4),
    )(y2.reshape(M, Pp), s2, bb2, w3)
    s3, bb3 = _fold_bn(st3, g3, b3, M)

    # ---- pass 4: bn3 -> residual add -> relu, tiled over rows --------------
    row_b4 = Ep * 4 + 2 * Cp * 4
    TM4 = _pick_row_tile(M, row_b4, _TILE_BUDGET)
    T4 = M // TM4
    out = pl.pallas_call(
        _bn_add_relu_kernel,
        out_shape=jax.ShapeDtypeStruct((M, Cp), jnp.float32),
        grid=(T4,),
        in_specs=[pl.BlockSpec((TM4, Ep), lambda i: (i, 0)),
                  pl.BlockSpec((TM4, Cp), lambda i: (i, 0)),
                  pl.BlockSpec((1, Ep), lambda i: (0, 0)),
                  pl.BlockSpec((1, Ep), lambda i: (0, 0))],
        out_specs=pl.BlockSpec((TM4, Cp), lambda i: (i, 0)),
        compiler_params=_cparams(("parallel",)),
        cost_estimate=pl.CostEstimate(
            flops=4 * M * Ep, transcendentals=0,
            bytes_accessed=M * (Ep * 4 + 2 * Cp * 4)),
    )(y3, xf, s3, bb3)

    out = out[:, :Cin].reshape(N, H, W, Cin)
    return jnp.transpose(out, (0, 3, 1, 2))


# ---------------- plain-JAX reference (f32) for correctness check -----------
def _bn4_ref(y, g, b):
    mean = jnp.mean(y, axis=(0, 1, 2), keepdims=True)
    var = jnp.mean(jnp.square(y - mean), axis=(0, 1, 2), keepdims=True)
    return ((y - mean) * lax.rsqrt(var + EPS) * g.reshape(1, 1, 1, -1)
            + b.reshape(1, 1, 1, -1))


def bottleneck_ref(x_nchw, p):
    x = jnp.transpose(x_nchw, (0, 2, 3, 1)).astype(jnp.float32)
    h = jnp.einsum("nhwc,cd->nhwd", x, p["w1"])
    h = jnp.maximum(_bn4_ref(h, p["g1"], p["b1"]), 0.0)
    h = lax.conv_general_dilated(h, p["w2"], (1, 1), "SAME",
                                 dimension_numbers=("NHWC", "HWIO", "NHWC"))
    h = jnp.maximum(_bn4_ref(h, p["g2"], p["b2"]), 0.0)
    h = jnp.einsum("nhwc,cd->nhwd", h, p["w3"])
    h = _bn4_ref(h, p["g3"], p["b3"])
    out = jnp.maximum(h + x, 0.0)
    return jnp.transpose(out, (0, 3, 1, 2))


def make_params(key, inplanes, planes):
    expansion = 4
    ks = jax.random.split(key, 9)
    f32 = jnp.float32
    return {
        # conv1: 1x1, (Cin, P)  (PyTorch weight (P, Cin, 1, 1) transposed)
        "w1": 0.1 * jax.random.normal(ks[0], (inplanes, planes), f32),
        "g1": (1.0 + 0.1 * jax.random.normal(ks[1], (planes,), f32)).reshape(1, planes),
        "b1": (0.1 * jax.random.normal(ks[2], (planes,), f32)).reshape(1, planes),
        # conv2: 3x3 in HWIO (3, 3, P, P)
        "w2": 0.1 * jax.random.normal(ks[3], (3, 3, planes, planes), f32),
        "g2": (1.0 + 0.1 * jax.random.normal(ks[4], (planes,), f32)).reshape(1, planes),
        "b2": (0.1 * jax.random.normal(ks[5], (planes,), f32)).reshape(1, planes),
        # conv3: 1x1, (P, 4P)
        "w3": 0.1 * jax.random.normal(ks[6], (planes, planes * expansion), f32),
        "g3": (1.0 + 0.1 * jax.random.normal(ks[7], (planes * expansion,), f32)).reshape(1, planes * expansion),
        "b3": (0.1 * jax.random.normal(ks[8], (planes * expansion,), f32)).reshape(1, planes * expansion),
    }


if __name__ == "__main__":
    N, planes, H, W = 2, 4, 16, 16
    inplanes = planes * 4   # required for the default (no-downsample) residual

    key = jax.random.PRNGKey(0)
    kx, kp = jax.random.split(key)
    x = jax.random.normal(kx, (N, inplanes, H, W), jnp.float32)   # NCHW
    params = make_params(kp, inplanes, planes)

    out = jax.block_until_ready(bottleneck_forward(x, params))
    ref = jax.block_until_ready(bottleneck_ref(x, params))

    assert out.shape == (N, inplanes, H, W), out.shape
    max_err = float(jnp.max(jnp.abs(out - ref)))
    # bf16 MXU matmuls vs. the pure-f32 reference => loosened tolerance.
    assert jnp.allclose(out, ref, rtol=5e-2, atol=5e-2), max_err
    print("KERNEL_OK")
</pallas_src>

<mosaic_0001>
module attributes {stable_mosaic.version = 11 : i64} {
  func.func @_conv1x1_stats_kernel(%arg0: i32, %arg1: memref<512x128xf32, #tpu.memory_space<vmem>>, %arg2: memref<128x128xbf16, #tpu.memory_space<vmem>>, %arg3: memref<512x128xbf16, #tpu.memory_space<vmem>>, %arg4: memref<1x2x128xf32, #tpu.memory_space<vmem>>) attributes {dimension_semantics = [#tpu.dimension_semantics<parallel>], iteration_bounds = array<i64: 1>, scalar_prefetch = 0 : i64, scratch_operands = 0 : i64, tpu.core_type = #tpu.core_type<tc>, window_params = [{transform_indices = @transform_0, window_bounds = array<i64: 512, 128>}, {pipeline_mode = #tpu.pipeline_mode<synchronous>, transform_indices = @transform_1, window_bounds = array<i64: 128, 128>}, {transform_indices = @transform_2, window_bounds = array<i64: 512, 128>}, {transform_indices = @transform_3, window_bounds = array<i64: 1, 2, 128>}]} {
    %c0 = arith.constant 0 : index
    %c0_0 = arith.constant 0 : index
    %0 = vector.load %arg1[%c0, %c0_0] : memref<512x128xf32, #tpu.memory_space<vmem>>, vector<512x128xf32>
    %1 = arith.truncf %0 : vector<512x128xf32> to vector<512x128xbf16>
    %c0_1 = arith.constant 0 : index
    %c0_2 = arith.constant 0 : index
    %2 = vector.load %arg2[%c0_1, %c0_2] : memref<128x128xbf16, #tpu.memory_space<vmem>>, vector<128x128xbf16>
    %cst = arith.constant dense<0.000000e+00> : vector<512x128xf32>
    %3 = tpu.matmul %1, %2, %cst {dimension_numbers = #tpu.dot_dimension_numbers<[1], [0], [0], [1], [0, 0, 1, 1], [], []>} : vector<512x128xbf16>, vector<128x128xbf16>, vector<512x128xf32> -> vector<512x128xf32>
    %4 = arith.truncf %3 : vector<512x128xf32> to vector<512x128xbf16>
    %c0_3 = arith.constant 0 : index
    %c0_4 = arith.constant 0 : index
    %5 = vector.load %arg3[%c0_3, %c0_4] : memref<512x128xbf16, #tpu.memory_space<vmem>>, vector<512x128xbf16>
    tpu.vector_store %arg3[%c0_3, %c0_4], %4 {strides = array<i32>} : memref<512x128xbf16, #tpu.memory_space<vmem>>, vector<512x128xbf16>,
    %cst_5 = arith.constant dense<0.000000e+00> : vector<128xf32>
    %6 = vector.multi_reduction <add>, %3, %cst_5 [0] : vector<512x128xf32> to vector<128xf32>
    %7 = vector.shape_cast %6 : vector<128xf32> to vector<1x128xf32>
    %8 = arith.mulf %3, %3 : vector<512x128xf32>
    %cst_6 = arith.constant dense<0.000000e+00> : vector<128xf32>
    %9 = vector.multi_reduction <add>, %8, %cst_6 [0] : vector<512x128xf32> to vector<128xf32>
    %10 = vector.shape_cast %9 : vector<128xf32> to vector<1x128xf32>
    %11 = tpu.concatenate %7, %10 in 0 : vector<1x128xf32>, vector<1x128xf32> -> vector<2x128xf32>
    %c0_7 = arith.constant 0 : index
    %c0_8 = arith.constant 0 : index
    %c0_9 = arith.constant 0 : index
    %12 = vector.load %arg4[%c0_7, %c0_8, %c0_9] : memref<1x2x128xf32, #tpu.memory_space<vmem>>, vector<1x2x128xf32>
    %13 = vector.shape_cast %12 : vector<1x2x128xf32> to vector<2x128xf32>
    %14 = vector.shape_cast %11 : vector<2x128xf32> to vector<1x2x128xf32>
    tpu.vector_store %arg4[%c0_7, %c0_8, %c0_9], %14 {strides = array<i32>} : memref<1x2x128xf32, #tpu.memory_space<vmem>>, vector<1x2x128xf32>,
    return
  }
  func.func @transform_0(%arg0: i32) -> (i32, i32) {
    %c0_i32 = arith.constant 0 : i32
    %c0_i32_0 = arith.constant 0 : i32
    return %arg0, %c0_i32 : i32, i32
  }
  func.func @transform_1(%arg0: i32) -> (i32, i32) {
    %c0_i32 = arith.constant 0 : i32
    %c0_i32_0 = arith.constant 0 : i32
    %c0_i32_1 = arith.constant 0 : i32
    return %c0_i32, %c0_i32_0 : i32, i32
  }
  func.func @transform_2(%arg0: i32) -> (i32, i32) {
    %c0_i32 = arith.constant 0 : i32
    %c0_i32_0 = arith.constant 0 : i32
    return %arg0, %c0_i32 : i32, i32
  }
  func.func @transform_3(%arg0: i32) -> (i32, i32, i32) {
    %c0_i32 = arith.constant 0 : i32
    %c0_i32_0 = arith.constant 0 : i32
    %c0_i32_1 = arith.constant 0 : i32
    return %arg0, %c0_i32, %c0_i32_0 : i32, i32, i32
  }
}

module attributes {stable_mosaic.version = 11 : i64} {
  func.func @_bn_relu_conv3x3_stats_kernel(%arg0: i32, %arg1: i32, %arg2: memref<1x16x16x128xbf16, #tpu.memory_space<vmem>>, %arg3: memref<1x1x16x128xbf16, #tpu.memory_space<vmem>>, %arg4: memref<1x1x16x128xbf16, #tpu.memory_space<vmem>>, %arg5: memref<1x128xf32, #tpu.memory_space<vmem>>, %arg6: memref<1x128xf32, #tpu.memory_space<vmem>>, %arg7: memref<9x128x128xbf16, #tpu.memory_space<vmem>>, %arg8: memref<1x1x256x128xbf16, #tpu.memory_space<vmem>>, %arg9: memref<1x1x2x128xf32, #tpu.memory_space<vmem>>) attributes {dimension_semantics = [#tpu.dimension_semantics<parallel>, #tpu.dimension_semantics<parallel>], iteration_bounds = array<i64: 2, 1>, scalar_prefetch = 0 : i64, scratch_operands = 0 : i64, tpu.core_type = #tpu.core_type<tc>, window_params = [{transform_indices = @transform_0, window_bounds = array<i64: 1, 16, 16, 128>}, {transform_indices = @transform_1, window_bounds = array<i64: 1, 1, 16, 128>}, {transform_indices = @transform_2, window_bounds = array<i64: 1, 1, 16, 128>}, {pipeline_mode = #tpu.pipeline_mode<synchronous>, transform_indices = @transform_3, window_bounds = array<i64: 1, 128>}, {pipeline_mode = #tpu.pipeline_mode<synchronous>, transform_indices = @transform_4, window_bounds = array<i64: 1, 128>}, {pipeline_mode = #tpu.pipeline_mode<synchronous>, transform_indices = @transform_5, window_bounds = array<i64: 9, 128, 128>}, {transform_indices = @transform_6, window_bounds = array<i64: 1, 1, 256, 128>}, {transform_indices = @transform_7, window_bounds = array<i64: 1, 1, 2, 128>}]} {
    %c0 = arith.constant 0 : index
    %c0_0 = arith.constant 0 : index
    %0 = vector.load %arg5[%c0, %c0_0] : memref<1x128xf32, #tpu.memory_space<vmem>>, vector<1x128xf32>
    %1 = vector.shape_cast %0 : vector<1x128xf32> to vector<1x1x128xf32>
    %c0_1 = arith.constant 0 : index
    %c0_2 = arith.constant 0 : index
    %2 = vector.load %arg6[%c0_1, %c0_2] : memref<1x128xf32, #tpu.memory_space<vmem>>, vector<1x128xf32>
    %3 = vector.shape_cast %2 : vector<1x128xf32> to vector<1x1x128xf32>
    %c0_3 = arith.constant 0 : index
    %c0_4 = arith.constant 0 : index
    %c0_5 = arith.constant 0 : index
    %c0_6 = arith.constant 0 : index
    %4 = vector.load %arg2[%c0_3, %c0_4, %c0_5, %c0_6] : memref<1x16x16x128xbf16, #tpu.memory_space<vmem>>, vector<1x16x16x128xbf16>
    %5 = vector.shape_cast %4 : vector<1x16x16x128xbf16> to vector<16x16x128xbf16>
    %c0_7 = arith.constant 0 : index
    %c0_8 = arith.constant 0 : index
    %c0_9 = arith.constant 0 : index
    %c0_10 = arith.constant 0 : index
    %6 = vector.load %arg3[%c0_7, %c0_8, %c0_9, %c0_10] : memref<1x1x16x128xbf16, #tpu.memory_space<vmem>>, vector<1x1x16x128xbf16>
    %7 = vector.shape_cast %6 : vector<1x1x16x128xbf16> to vector<1x16x128xbf16>
    %c0_11 = arith.constant 0 : index
    %c0_12 = arith.constant 0 : index
    %c0_13 = arith.constant 0 : index
    %c0_14 = arith.constant 0 : index
    %8 = vector.load %arg4[%c0_11, %c0_12, %c0_13, %c0_14] : memref<1x1x16x128xbf16, #tpu.memory_space<vmem>>, vector<1x1x16x128xbf16>
    %9 = vector.shape_cast %8 : vector<1x1x16x128xbf16> to vector<1x16x128xbf16>
    %cst = arith.constant 0.000000e+00 : bf16
    %10 = vector.broadcast %cst : bf16 to vector<1x16x128xbf16>
    %c0_i32 = arith.constant 0 : i32
    %11 = arith.cmpi sgt, %arg1, %c0_i32 : i32
    %12 = arith.extf %7 : vector<1x16x128xbf16> to vector<1x16x128xf32>
    %13 = vector.broadcast %1 : vector<1x1x128xf32> to vector<1x16x128xf32>
    %14 = arith.mulf %12, %13 : vector<1x16x128xf32>
    %15 = vector.broadcast %3 : vector<1x1x128xf32> to vector<1x16x128xf32>
    %16 = arith.addf %14, %15 : vector<1x16x128xf32>
    %cst_15 = arith.constant 0.000000e+00 : f32
    %17 = vector.broadcast %cst_15 : f32 to vector<1x16x128xf32>
    %18 = arith.maximumf %16, %17 : vector<1x16x128xf32>
    %19 = arith.truncf %18 : vector<1x16x128xf32> to vector<1x16x128xbf16>
    %20 = arith.select %11, %19, %10 : vector<1x16x128xbf16>
    %c0_i32_16 = arith.constant 0 : i32
    %21 = arith.cmpi slt, %arg1, %c0_i32_16 : i32
    %22 = arith.extf %9 : vector<1x16x128xbf16> to vector<1x16x128xf32>
    %23 = vector.broadcast %1 : vector<1x1x128xf32> to vector<1x16x128xf32>
    %24 = arith.mulf %22, %23 : vector<1x16x128xf32>
    %25 = vector.broadcast %3 : vector<1x1x128xf32> to vector<1x16x128xf32>
    %26 = arith.addf %24, %25 : vector<1x16x128xf32>
    %cst_17 = arith.constant 0.000000e+00 : f32
    %27 = vector.broadcast %cst_17 : f32 to vector<1x16x128xf32>
    %28 = arith.maximumf %26, %27 : vector<1x16x128xf32>
    %29 = arith.truncf %28 : vector<1x16x128xf32> to vector<1x16x128xbf16>
    %30 = arith.select %21, %29, %10 : vector<1x16x128xbf16>
    %31 = arith.extf %5 : vector<16x16x128xbf16> to vector<16x16x128xf32>
    %32 = vector.broadcast %1 : vector<1x1x128xf32> to vector<16x16x128xf32>
    %33 = arith.mulf %31, %32 : vector<16x16x128xf32>
    %34 = vector.broadcast %3 : vector<1x1x128xf32> to vector<16x16x128xf32>
    %35 = arith.addf %33, %34 : vector<16x16x128xf32>
    %cst_18 = arith.constant 0.000000e+00 : f32
    %36 = vector.broadcast %cst_18 : f32 to vector<16x16x128xf32>
    %37 = arith.maximumf %35, %36 : vector<16x16x128xf32>
    %38 = arith.truncf %37 : vector<16x16x128xf32> to vector<16x16x128xbf16>
    %39 = tpu.concatenate %20, %38, %30 in 0 : vector<1x16x128xbf16>, vector<16x16x128xbf16>, vector<1x16x128xbf16> -> vector<18x16x128xbf16>
    %c0_i32_19 = arith.constant 0 : i32
    %40 = arith.sitofp %c0_i32_19 : i32 to bf16
    %41 = vector.broadcast %40 : bf16 to vector<18x1x128xbf16>
    %42 = tpu.concatenate %41, %39 in 1 : vector<18x1x128xbf16>, vector<18x16x128xbf16> -> vector<18x17x128xbf16>
    %43 = vector.broadcast %40 : bf16 to vector<18x1x128xbf16>
    %44 = tpu.concatenate %42, %43 in 1 : vector<18x17x128xbf16>, vector<18x1x128xbf16> -> vector<18x18x128xbf16>
    %cst_20 = arith.constant 0.000000e+00 : f32
    %45 = vector.broadcast %cst_20 : f32 to vector<256x128xf32>
    %46 = vector.extract_strided_slice %44 {offsets = [0, 0, 0], sizes = [16, 16, 128], strides = [1, 1, 1]} : vector<18x18x128xbf16> to vector<16x16x128xbf16>
    %47 = vector.shape_cast %46 : vector<16x16x128xbf16> to vector<256x128xbf16>
    %c0_21 = arith.constant 0 : index
    %c0_22 = arith.constant 0 : index
    %c0_23 = arith.constant 0 : index
    %48 = vector.load %arg7[%c0_21, %c0_22, %c0_23] : memref<9x128x128xbf16, #tpu.memory_space<vmem>>, vector<1x128x128xbf16>
    %49 = vector.shape_cast %48 : vector<1x128x128xbf16> to vector<128x128xbf16>
    %cst_24 = arith.constant dense<0.000000e+00> : vector<256x128xf32>
    %50 = tpu.matmul %47, %49, %cst_24 {dimension_numbers = #tpu.dot_dimension_numbers<[1], [0], [0], [1], [0, 0, 1, 1], [], []>} : vector<256x128xbf16>, vector<128x128xbf16>, vector<256x128xf32> -> vector<256x128xf32>
    %51 = arith.addf %45, %50 : vector<256x128xf32>
    %52 = vector.extract_strided_slice %44 {offsets = [0, 1, 0], sizes = [16, 16, 128], strides = [1, 1, 1]} : vector<18x18x128xbf16> to vector<16x16x128xbf16>
    %53 = vector.shape_cast %52 : vector<16x16x128xbf16> to vector<256x128xbf16>
    %c1 = arith.constant 1 : index
    %c0_25 = arith.constant 0 : index
    %c0_26 = arith.constant 0 : index
    %54 = vector.load %arg7[%c1, %c0_25, %c0_26] : memref<9x128x128xbf16, #tpu.memory_space<vmem>>, vector<1x128x128xbf16>
    %55 = vector.shape_cast %54 : vector<1x128x128xbf16> to vector<128x128xbf16>
    %cst_27 = arith.constant dense<0.000000e+00> : vector<256x128xf32>
    %56 = tpu.matmul %53, %55, %cst_27 {dimension_numbers = #tpu.dot_dimension_numbers<[1], [0], [0], [1], [0, 0, 1, 1], [], []>} : vector<256x128xbf16>, vector<128x128xbf16>, vector<256x128xf32> -> vector<256x128xf32>
    %57 = arith.addf %51, %56 : vector<256x128xf32>
    %58 = vector.extract_strided_slice %44 {offsets = [0, 2, 0], sizes = [16, 16, 128], strides = [1, 1, 1]} : vector<18x18x128xbf16> to vector<16x16x128xbf16>
    %59 = vector.shape_cast %58 : vector<16x16x128xbf16> to vector<256x128xbf16>
    %c2 = arith.constant 2 : index
    %c0_28 = arith.constant 0 : index
    %c0_29 = arith.constant 0 : index
    %60 = vector.load %arg7[%c2, %c0_28, %c0_29] : memref<9x128x128xbf16, #tpu.memory_space<vmem>>, vector<1x128x128xbf16>
    %61 = vector.shape_cast %60 : vector<1x128x128xbf16> to vector<128x128xbf16>
    %cst_30 = arith.constant dense<0.000000e+00> : vector<256x128xf32>
    %62 = tpu.matmul %59, %61, %cst_30 {dimension_numbers = #tpu.dot_dimension_numbers<[1], [0], [0], [1], [0, 0, 1, 1], [], []>} : vector<256x128xbf16>, vector<128x128xbf16>, vector<256x128xf32> -> vector<256x128xf32>
    %63 = arith.addf %57, %62 : vector<256x128xf32>
    %64 = vector.extract_strided_slice %44 {offsets = [1, 0, 0], sizes = [16, 16, 128], strides = [1, 1, 1]} : vector<18x18x128xbf16> to vector<16x16x128xbf16>
    %65 = vector.shape_cast %64 : vector<16x16x128xbf16> to vector<256x128xbf16>
    %c3 = arith.constant 3 : index
    %c0_31 = arith.constant 0 : index
    %c0_32 = arith.constant 0 : index
    %66 = vector.load %arg7[%c3, %c0_31, %c0_32] : memref<9x128x128xbf16, #tpu.memory_space<vmem>>, vector<1x128x128xbf16>
    %67 = vector.shape_cast %66 : vector<1x128x128xbf16> to vector<128x128xbf16>
    %cst_33 = arith.constant dense<0.000000e+00> : vector<256x128xf32>
    %68 = tpu.matmul %65, %67, %cst_33 {dimension_numbers = #tpu.dot_dimension_numbers<[1], [0], [0], [1], [0, 0, 1, 1], [], []>} : vector<256x128xbf16>, vector<128x128xbf16>, vector<256x128xf32> -> vector<256x128xf32>
    %69 = arith.addf %63, %68 : vector<256x128xf32>
    %70 = vector.extract_strided_slice %44 {offsets = [1, 1, 0], sizes = [16, 16, 128], strides = [1, 1, 1]} : vector<18x18x128xbf16> to vector<16x16x128xbf16>
    %71 = vector.shape_cast %70 : vector<16x16x128xbf16> to vector<256x128xbf16>
    %c4 = arith.constant 4 : index
    %c0_34 = arith.constant 0 : index
    %c0_35 = arith.constant 0 : index
    %72 = vector.load %arg7[%c4, %c0_34, %c0_35] : memref<9x128x128xbf16, #tpu.memory_space<vmem>>, vector<1x128x128xbf16>
    %73 = vector.shape_cast %72 : vector<1x128x128xbf16> to vector<128x128xbf16>
    %cst_36 = arith.constant dense<0.000000e+00> : vector<256x128xf32>
    %74 = tpu.matmul %71, %73, %cst_36 {dimension_numbers = #tpu.dot_dimension_numbers<[1], [0], [0], [1], [0, 0, 1, 1], [], []>} : vector<256x128xbf16>, vector<128x128xbf16>, vector<256x128xf32> -> vector<256x128xf32>
    %75 = arith.addf %69, %74 : vector<256x128xf32>
    %76 = vector.extract_strided_slice %44 {offsets = [1, 2, 0], sizes = [16, 16, 128], strides = [1, 1, 1]} : vector<18x18x128xbf16> to vector<16x16x128xbf16>
    %77 = vector.shape_cast %76 : vector<16x16x128xbf16> to vector<256x128xbf16>
    %c5 = arith.constant 5 : index
    %c0_37 = arith.constant 0 : index
    %c0_38 = arith.constant 0 : index
    %78 = vector.load %arg7[%c5, %c0_37, %c0_38] : memref<9x128x128xbf16, #tpu.memory_space<vmem>>, vector<1x128x128xbf16>
    %79 = vector.shape_cast %78 : vector<1x128x128xbf16> to vector<128x128xbf16>
    %cst_39 = arith.constant dense<0.000000e+00> : vector<256x128xf32>
    %80 = tpu.matmul %77, %79, %cst_39 {dimension_numbers = #tpu.dot_dimension_numbers<[1], [0], [0], [1], [0, 0, 1, 1], [], []>} : vector<256x128xbf16>, vector<128x128xbf16>, vector<256x128xf32> -> vector<256x128xf32>
    %81 = arith.addf %75, %80 : vector<256x128xf32>
    %82 = vector.extract_strided_slice %44 {offsets = [2, 0, 0], sizes = [16, 16, 128], strides = [1, 1, 1]} : vector<18x18x128xbf16> to vector<16x16x128xbf16>
    %83 = vector.shape_cast %82 : vector<16x16x128xbf16> to vector<256x128xbf16>
    %c6 = arith.constant 6 : index
    %c0_40 = arith.constant 0 : index
    %c0_41 = arith.constant 0 : index
    %84 = vector.load %arg7[%c6, %c0_40, %c0_41] : memref<9x128x128xbf16, #tpu.memory_space<vmem>>, vector<1x128x128xbf16>
    %85 = vector.shape_cast %84 : vector<1x128x128xbf16> to vector<128x128xbf16>
    %cst_42 = arith.constant dense<0.000000e+00> : vector<256x128xf32>
    %86 = tpu.matmul %83, %85, %cst_42 {dimension_numbers = #tpu.dot_dimension_numbers<[1], [0], [0], [1], [0, 0, 1, 1], [], []>} : vector<256x128xbf16>, vector<128x128xbf16>, vector<256x128xf32> -> vector<256x128xf32>
    %87 = arith.addf %81, %86 : vector<256x128xf32>
    %88 = vector.extract_strided_slice %44 {offsets = [2, 1, 0], sizes = [16, 16, 128], strides = [1, 1, 1]} : vector<18x18x128xbf16> to vector<16x16x128xbf16>
    %89 = vector.shape_cast %88 : vector<16x16x128xbf16> to vector<256x128xbf16>
    %c7 = arith.constant 7 : index
    %c0_43 = arith.constant 0 : index
    %c0_44 = arith.constant 0 : index
    %90 = vector.load %arg7[%c7, %c0_43, %c0_44] : memref<9x128x128xbf16, #tpu.memory_space<vmem>>, vector<1x128x128xbf16>
    %91 = vector.shape_cast %90 : vector<1x128x128xbf16> to vector<128x128xbf16>
    %cst_45 = arith.constant dense<0.000000e+00> : vector<256x128xf32>
    %92 = tpu.matmul %89, %91, %cst_45 {dimension_numbers = #tpu.dot_dimension_numbers<[1], [0], [0], [1], [0, 0, 1, 1], [], []>} : vector<256x128xbf16>, vector<128x128xbf16>, vector<256x128xf32> -> vector<256x128xf32>
    %93 = arith.addf %87, %92 : vector<256x128xf32>
    %94 = vector.extract_strided_slice %44 {offsets = [2, 2, 0], sizes = [16, 16, 128], strides = [1, 1, 1]} : vector<18x18x128xbf16> to vector<16x16x128xbf16>
    %95 = vector.shape_cast %94 : vector<16x16x128xbf16> to vector<256x128xbf16>
    %c8 = arith.constant 8 : index
    %c0_46 = arith.constant 0 : index
    %c0_47 = arith.constant 0 : index
    %96 = vector.load %arg7[%c8, %c0_46, %c0_47] : memref<9x128x128xbf16, #tpu.memory_space<vmem>>, vector<1x128x128xbf16>
    %97 = vector.shape_cast %96 : vector<1x128x128xbf16> to vector<128x128xbf16>
    %cst_48 = arith.constant dense<0.000000e+00> : vector<256x128xf32>
    %98 = tpu.matmul %95, %97, %cst_48 {dimension_numbers = #tpu.dot_dimension_numbers<[1], [0], [0], [1], [0, 0, 1, 1], [], []>} : vector<256x128xbf16>, vector<128x128xbf16>, vector<256x128xf32> -> vector<256x128xf32>
    %99 = arith.addf %93, %98 : vector<256x128xf32>
    %100 = vector.shape_cast %99 : vector<256x128xf32> to vector<1x1x256x128xf32>
    %101 = arith.truncf %100 : vector<1x1x256x128xf32> to vector<1x1x256x128xbf16>
    %c0_49 = arith.constant 0 : index
    %c0_50 = arith.constant 0 : index
    %c0_51 = arith.constant 0 : index
    %c0_52 = arith.constant 0 : index
    %102 = vector.load %arg8[%c0_49, %c0_50, %c0_51, %c0_52] : memref<1x1x256x128xbf16, #tpu.memory_space<vmem>>, vector<1x1x256x128xbf16>
    tpu.vector_store %arg8[%c0_49, %c0_50, %c0_51, %c0_52], %101 {strides = array<i32>} : memref<1x1x256x128xbf16, #tpu.memory_space<vmem>>, vector<1x1x256x128xbf16>,
    %cst_53 = arith.constant dense<0.000000e+00> : vector<128xf32>
    %103 = vector.multi_reduction <add>, %99, %cst_53 [0] : vector<256x128xf32> to vector<128xf32>
    %104 = vector.shape_cast %103 : vector<128xf32> to vector<1x128xf32>
    %105 = arith.mulf %99, %99 : vector<256x128xf32>
    %cst_54 = arith.constant dense<0.000000e+00> : vector<128xf32>
    %106 = vector.multi_reduction <add>, %105, %cst_54 [0] : vector<256x128xf32> to vector<128xf32>
    %107 = vector.shape_cast %106 : vector<128xf32> to vector<1x128xf32>
    %108 = tpu.concatenate %104, %107 in 0 : vector<1x128xf32>, vector<1x128xf32> -> vector<2x128xf32>
    %109 = vector.shape_cast %108 : vector<2x128xf32> to vector<1x1x2x128xf32>
    %c0_55 = arith.constant 0 : index
    %c0_56 = arith.constant 0 : index
    %c0_57 = arith.constant 0 : index
    %c0_58 = arith.constant 0 : index
    %110 = vector.load %arg9[%c0_55, %c0_56, %c0_57, %c0_58] : memref<1x1x2x128xf32, #tpu.memory_space<vmem>>, vector<1x1x2x128xf32>
    tpu.vector_store %arg9[%c0_55, %c0_56, %c0_57, %c0_58], %109 {strides = array<i32>} : memref<1x1x2x128xf32, #tpu.memory_space<vmem>>, vector<1x1x2x128xf32>,
    return
  }
  func.func @transform_0(%arg0: i32, %arg1: i32) -> (i32, i32, i32, i32) {
    %c0_i32 = arith.constant 0 : i32
    %c0_i32_0 = arith.constant 0 : i32
    %c0_i32_1 = arith.constant 0 : i32
    return %arg0, %arg1, %c0_i32, %c0_i32_0 : i32, i32, i32, i32
  }
  func.func @transform_1(%arg0: i32, %arg1: i32) -> (i32, i32, i32, i32) {
    %c16_i32 = arith.constant 16 : i32
    %0 = arith.muli %arg1, %c16_i32 : i32
    %c1_i32 = arith.constant 1 : i32
    %1 = arith.subi %0, %c1_i32 : i32
    %c0_i32 = arith.constant 0 : i32
    %2 = arith.maxsi %1, %c0_i32 : i32
    %c0_i32_0 = arith.constant 0 : i32
    %c0_i32_1 = arith.constant 0 : i32
    %c0_i32_2 = arith.constant 0 : i32
    return %arg0, %2, %c0_i32_0, %c0_i32_1 : i32, i32, i32, i32
  }
  func.func @transform_2(%arg0: i32, %arg1: i32) -> (i32, i32, i32, i32) {
    %c16_i32 = arith.constant 16 : i32
    %0 = arith.muli %arg1, %c16_i32 : i32
    %c16_i32_0 = arith.constant 16 : i32
    %1 = arith.addi %0, %c16_i32_0 : i32
    %c15_i32 = arith.constant 15 : i32
    %2 = arith.minsi %1, %c15_i32 : i32
    %c0_i32 = arith.constant 0 : i32
    %c0_i32_1 = arith.constant 0 : i32
    %c0_i32_2 = arith.constant 0 : i32
    return %arg0, %2, %c0_i32, %c0_i32_1 : i32, i32, i32, i32
  }
  func.func @transform_3(%arg0: i32, %arg1: i32) -> (i32, i32) {
    %c0_i32 = arith.constant 0 : i32
    %c0_i32_0 = arith.constant 0 : i32
    %c0_i32_1 = arith.constant 0 : i32
    return %c0_i32, %c0_i32_0 : i32, i32
  }
  func.func @transform_4(%arg0: i32, %arg1: i32) -> (i32, i32) {
    %c0_i32 = arith.constant 0 : i32
    %c0_i32_0 = arith.constant 0 : i32
    %c0_i32_1 = arith.constant 0 : i32
    return %c0_i32, %c0_i32_0 : i32, i32
  }
  func.func @transform_5(%arg0: i32, %arg1: i32) -> (i32, i32, i32) {
    %c0_i32 = arith.constant 0 : i32
    %c0_i32_0 = arith.constant 0 : i32
    %c0_i32_1 = arith.constant 0 : i32
    %c0_i32_2 = arith.constant 0 : i32
    return %c0_i32, %c0_i32_0, %c0_i32_1 : i32, i32, i32
  }
  func.func @transform_6(%arg0: i32, %arg1: i32) -> (i32, i32, i32, i32) {
    %c0_i32 = arith.constant 0 : i32
    %c0_i32_0 = arith.constant 0 : i32
    %c0_i32_1 = arith.constant 0 : i32
    return %arg0, %arg1, %c0_i32, %c0_i32_0 : i32, i32, i32, i32
  }
  func.func @transform_7(%arg0: i32, %arg1: i32) -> (i32, i32, i32, i32) {
    %c0_i32 = arith.constant 0 : i32
    %c0_i32_0 = arith.constant 0 : i32
    %c0_i32_1 = arith.constant 0 : i32
    return %arg0, %arg1, %c0_i32, %c0_i32_0 : i32, i32, i32, i32
  }
}

module attributes {stable_mosaic.version = 11 : i64} {
  func.func @_bn_relu_conv1x1_stats_kernel(%arg0: i32, %arg1: memref<512x128xbf16, #tpu.memory_space<vmem>>, %arg2: memref<1x128xf32, #tpu.memory_space<vmem>>, %arg3: memref<1x128xf32, #tpu.memory_space<vmem>>, %arg4: memref<128x128xbf16, #tpu.memory_space<vmem>>, %arg5: memref<512x128xf32, #tpu.memory_space<vmem>>, %arg6: memref<1x2x128xf32, #tpu.memory_space<vmem>>) attributes {dimension_semantics = [#tpu.dimension_semantics<parallel>], iteration_bounds = array<i64: 1>, scalar_prefetch = 0 : i64, scratch_operands = 0 : i64, tpu.core_type = #tpu.core_type<tc>, window_params = [{transform_indices = @transform_0, window_bounds = array<i64: 512, 128>}, {pipeline_mode = #tpu.pipeline_mode<synchronous>, transform_indices = @transform_1, window_bounds = array<i64: 1, 128>}, {pipeline_mode = #tpu.pipeline_mode<synchronous>, transform_indices = @transform_2, window_bounds = array<i64: 1, 128>}, {pipeline_mode = #tpu.pipeline_mode<synchronous>, transform_indices = @transform_3, window_bounds = array<i64: 128, 128>}, {transform_indices = @transform_4, window_bounds = array<i64: 512, 128>}, {transform_indices = @transform_5, window_bounds = array<i64: 1, 2, 128>}]} {
    %c0 = arith.constant 0 : index
    %c0_0 = arith.constant 0 : index
    %0 = vector.load %arg1[%c0, %c0_0] : memref<512x128xbf16, #tpu.memory_space<vmem>>, vector<512x128xbf16>
    %1 = arith.extf %0 : vector<512x128xbf16> to vector<512x128xf32>
    %c0_1 = arith.constant 0 : index
    %c0_2 = arith.constant 0 : index
    %2 = vector.load %arg2[%c0_1, %c0_2] : memref<1x128xf32, #tpu.memory_space<vmem>>, vector<1x128xf32>
    %3 = vector.broadcast %2 : vector<1x128xf32> to vector<512x128xf32>
    %4 = arith.mulf %1, %3 : vector<512x128xf32>
    %c0_3 = arith.constant 0 : index
    %c0_4 = arith.constant 0 : index
    %5 = vector.load %arg3[%c0_3, %c0_4] : memref<1x128xf32, #tpu.memory_space<vmem>>, vector<1x128xf32>
    %6 = vector.broadcast %5 : vector<1x128xf32> to vector<512x128xf32>
    %7 = arith.addf %4, %6 : vector<512x128xf32>
    %cst = arith.constant 0.000000e+00 : f32
    %8 = vector.broadcast %cst : f32 to vector<512x128xf32>
    %9 = arith.maximumf %7, %8 : vector<512x128xf32>
    %10 = arith.truncf %9 : vector<512x128xf32> to vector<512x128xbf16>
    %c0_5 = arith.constant 0 : index
    %c0_6 = arith.constant 0 : index
    %11 = vector.load %arg4[%c0_5, %c0_6] : memref<128x128xbf16, #tpu.memory_space<vmem>>, vector<128x128xbf16>
    %cst_7 = arith.constant dense<0.000000e+00> : vector<512x128xf32>
    %12 = tpu.matmul %10, %11, %cst_7 {dimension_numbers = #tpu.dot_dimension_numbers<[1], [0], [0], [1], [0, 0, 1, 1], [], []>} : vector<512x128xbf16>, vector<128x128xbf16>, vector<512x128xf32> -> vector<512x128xf32>
    %c0_8 = arith.constant 0 : index
    %c0_9 = arith.constant 0 : index
    %13 = vector.load %arg5[%c0_8, %c0_9] : memref<512x128xf32, #tpu.memory_space<vmem>>, vector<512x128xf32>
    tpu.vector_store %arg5[%c0_8, %c0_9], %12 {strides = array<i32>} : memref<512x128xf32, #tpu.memory_space<vmem>>, vector<512x128xf32>,
    %cst_10 = arith.constant dense<0.000000e+00> : vector<128xf32>
    %14 = vector.multi_reduction <add>, %12, %cst_10 [0] : vector<512x128xf32> to vector<128xf32>
    %15 = vector.shape_cast %14 : vector<128xf32> to vector<1x128xf32>
    %16 = arith.mulf %12, %12 : vector<512x128xf32>
    %cst_11 = arith.constant dense<0.000000e+00> : vector<128xf32>
    %17 = vector.multi_reduction <add>, %16, %cst_11 [0] : vector<512x128xf32> to vector<128xf32>
    %18 = vector.shape_cast %17 : vector<128xf32> to vector<1x128xf32>
    %19 = tpu.concatenate %15, %18 in 0 : vector<1x128xf32>, vector<1x128xf32> -> vector<2x128xf32>
    %c0_12 = arith.constant 0 : index
    %c0_13 = arith.constant 0 : index
    %c0_14 = arith.constant 0 : index
    %20 = vector.load %arg6[%c0_12, %c0_13, %c0_14] : memref<1x2x128xf32, #tpu.memory_space<vmem>>, vector<1x2x128xf32>
    %21 = vector.shape_cast %20 : vector<1x2x128xf32> to vector<2x128xf32>
    %22 = vector.shape_cast %19 : vector<2x128xf32> to vector<1x2x128xf32>
    tpu.vector_store %arg6[%c0_12, %c0_13, %c0_14], %22 {strides = array<i32>} : memref<1x2x128xf32, #tpu.memory_space<vmem>>, vector<1x2x128xf32>,
    return
  }
  func.func @transform_0(%arg0: i32) -> (i32, i32) {
    %c0_i32 = arith.constant 0 : i32
    %c0_i32_0 = arith.constant 0 : i32
    return %arg0, %c0_i32 : i32, i32
  }
  func.func @transform_1(%arg0: i32) -> (i32, i32) {
    %c0_i32 = arith.constant 0 : i32
    %c0_i32_0 = arith.constant 0 : i32
    %c0_i32_1 = arith.constant 0 : i32
    return %c0_i32, %c0_i32_0 : i32, i32
  }
  func.func @transform_2(%arg0: i32) -> (i32, i32) {
    %c0_i32 = arith.constant 0 : i32
    %c0_i32_0 = arith.constant 0 : i32
    %c0_i32_1 = arith.constant 0 : i32
    return %c0_i32, %c0_i32_0 : i32, i32
  }
  func.func @transform_3(%arg0: i32) -> (i32, i32) {
    %c0_i32 = arith.constant 0 : i32
    %c0_i32_0 = arith.constant 0 : i32
    %c0_i32_1 = arith.constant 0 : i32
    return %c0_i32, %c0_i32_0 : i32, i32
  }
  func.func @transform_4(%arg0: i32) -> (i32, i32) {
    %c0_i32 = arith.constant 0 : i32
    %c0_i32_0 = arith.constant 0 : i32
    return %arg0, %c0_i32 : i32, i32
  }
  func.func @transform_5(%arg0: i32) -> (i32, i32, i32) {
    %c0_i32 = arith.constant 0 : i32
    %c0_i32_0 = arith.constant 0 : i32
    %c0_i32_1 = arith.constant 0 : i32
    return %arg0, %c0_i32, %c0_i32_0 : i32, i32, i32
  }
}

module attributes {stable_mosaic.version = 11 : i64} {
  func.func @_bn_add_relu_kernel(%arg0: i32, %arg1: memref<512x128xf32, #tpu.memory_space<vmem>>, %arg2: memref<512x128xf32, #tpu.memory_space<vmem>>, %arg3: memref<1x128xf32, #tpu.memory_space<vmem>>, %arg4: memref<1x128xf32, #tpu.memory_space<vmem>>, %arg5: memref<512x128xf32, #tpu.memory_space<vmem>>) attributes {dimension_semantics = [#tpu.dimension_semantics<parallel>], iteration_bounds = array<i64: 1>, scalar_prefetch = 0 : i64, scratch_operands = 0 : i64, tpu.core_type = #tpu.core_type<tc>, window_params = [{transform_indices = @transform_0, window_bounds = array<i64: 512, 128>}, {transform_indices = @transform_1, window_bounds = array<i64: 512, 128>}, {pipeline_mode = #tpu.pipeline_mode<synchronous>, transform_indices = @transform_2, window_bounds = array<i64: 1, 128>}, {pipeline_mode = #tpu.pipeline_mode<synchronous>, transform_indices = @transform_3, window_bounds = array<i64: 1, 128>}, {transform_indices = @transform_4, window_bounds = array<i64: 512, 128>}]} {
    %c0 = arith.constant 0 : index
    %c0_0 = arith.constant 0 : index
    %0 = vector.load %arg1[%c0, %c0_0] : memref<512x128xf32, #tpu.memory_space<vmem>>, vector<512x128xf32>
    %c0_1 = arith.constant 0 : index
    %c0_2 = arith.constant 0 : index
    %1 = vector.load %arg3[%c0_1, %c0_2] : memref<1x128xf32, #tpu.memory_space<vmem>>, vector<1x128xf32>
    %2 = vector.broadcast %1 : vector<1x128xf32> to vector<512x128xf32>
    %3 = arith.mulf %0, %2 : vector<512x128xf32>
    %c0_3 = arith.constant 0 : index
    %c0_4 = arith.constant 0 : index
    %4 = vector.load %arg4[%c0_3, %c0_4] : memref<1x128xf32, #tpu.memory_space<vmem>>, vector<1x128xf32>
    %5 = vector.broadcast %4 : vector<1x128xf32> to vector<512x128xf32>
    %6 = arith.addf %3, %5 : vector<512x128xf32>
    %c0_5 = arith.constant 0 : index
    %c0_6 = arith.constant 0 : index
    %7 = vector.load %arg2[%c0_5, %c0_6] : memref<512x128xf32, #tpu.memory_space<vmem>>, vector<512x128xf32>
    %8 = arith.addf %6, %7 : vector<512x128xf32>
    %cst = arith.constant 0.000000e+00 : f32
    %9 = vector.broadcast %cst : f32 to vector<512x128xf32>
    %10 = arith.maximumf %8, %9 : vector<512x128xf32>
    %c0_7 = arith.constant 0 : index
    %c0_8 = arith.constant 0 : index
    %11 = vector.load %arg5[%c0_7, %c0_8] : memref<512x128xf32, #tpu.memory_space<vmem>>, vector<512x128xf32>
    tpu.vector_store %arg5[%c0_7, %c0_8], %10 {strides = array<i32>} : memref<512x128xf32, #tpu.memory_space<vmem>>, vector<512x128xf32>,
    return
  }
  func.func @transform_0(%arg0: i32) -> (i32, i32) {
    %c0_i32 = arith.constant 0 : i32
    %c0_i32_0 = arith.constant 0 : i32
    return %arg0, %c0_i32 : i32, i32
  }
  func.func @transform_1(%arg0: i32) -> (i32, i32) {
    %c0_i32 = arith.constant 0 : i32
    %c0_i32_0 = arith.constant 0 : i32
    return %arg0, %c0_i32 : i32, i32
  }
  func.func @transform_2(%arg0: i32) -> (i32, i32) {
    %c0_i32 = arith.constant 0 : i32
    %c0_i32_0 = arith.constant 0 : i32
    %c0_i32_1 = arith.constant 0 : i32
    return %c0_i32, %c0_i32_0 : i32, i32
  }
  func.func @transform_3(%arg0: i32) -> (i32, i32) {
    %c0_i32 = arith.constant 0 : i32
    %c0_i32_0 = arith.constant 0 : i32
    %c0_i32_1 = arith.constant 0 : i32
    return %c0_i32, %c0_i32_0 : i32, i32
  }
  func.func @transform_4(%arg0: i32) -> (i32, i32) {
    %c0_i32 = arith.constant 0 : i32
    %c0_i32_0 = arith.constant 0 : i32
    return %arg0, %c0_i32 : i32, i32
  }
}

</mosaic_0001>

<llo_original>
// kernel: bottleneck_forward.4
$region0: #{bottleneck_forward.4}
  #allocation0 [shape = 'u32[]', space=smem, size = 0x4, offset = 0x4, fixed_abs, tag = 'smem constant byte address 0x4 - core index']
  #allocation1 [shape = 'u32[144,128]{1,0:T(1,128)}', space=vmem, size = 0x12000, scoped, tag = 'internal scratch']
  %s0 = inlined_call_operand.vmem [shape: f32[512,128], index: 0, kind: input, shape index: {}]
  %s1 = inlined_call_operand.vmem [shape: bf16[128,128], index: 1, kind: input, shape index: {}]
  %s2 = inlined_call_operand.vmem [shape: bf16[512,128], index: 2, kind: output, shape index: {0}]
  %s3 = inlined_call_operand.vmem [shape: f32[1,2,128], index: 3, kind: output, shape index: {1}]
  %4 = xla_tuple %s2, %s3
  %s5 = sld [smem:[#allocation0]]
  $region26: #{bottleneck_forward.4} parent=0
    _
  %s7 = ssub.s32 1, %s5
  %s8 = scalar_select 0, %s7, %s5
  // Predicated region
  $region2: #{bottleneck_forward.4} parent=0 // pred_check
    _
  $region3: #{bottleneck_forward.4} parent=0 // pred_check_branch
    %10 = sbr.rel (0) target = $region5
  $region4: #{bottleneck_forward.4} parent=0 // pred_region
    _
  $region5: #{bottleneck_forward.4} parent=0 // pred_fallthru
    _
  // Predicated region
  $region6: #{bottleneck_forward.4} parent=0 // pred_check
    _
  $region7: #{bottleneck_forward.4} parent=0 // pred_check_branch
    %12 = sbr.rel (0) target = $region9
  $region8: #{bottleneck_forward.4} parent=0 // pred_region
    _
  $region9: #{bottleneck_forward.4} parent=0 // pred_fallthru
    _
  %v14 = vld [vmem:[%s0] sm:$0xff]
  %v15 = vld [vmem:[%s0 + $0x8] sm:$0xff]
  %v16 = vld [vmem:[%s0 + $0x10] sm:$0xff]
  %v17 = vld [vmem:[%s0 + $0x18] sm:$0xff]
  %v18 = vld [vmem:[%s0 + $0x20] sm:$0xff]
  %v19 = vld [vmem:[%s0 + $0x28] sm:$0xff]
  %v20 = vld [vmem:[%s0 + $0x30] sm:$0xff]
  %v21 = vld [vmem:[%s0 + $0x38] sm:$0xff]
  %v22 = vld [vmem:[%s0 + $0x40] sm:$0xff]
  %v23 = vld [vmem:[%s0 + $0x48] sm:$0xff]
  %v24 = vld [vmem:[%s0 + $0x50] sm:$0xff]
  %v25 = vld [vmem:[%s0 + $0x58] sm:$0xff]
  %v26 = vld [vmem:[%s0 + $0x60] sm:$0xff]
  %v27 = vld [vmem:[%s0 + $0x68] sm:$0xff]
  %v28 = vld [vmem:[%s0 + $0x70] sm:$0xff]
  %v29 = vld [vmem:[%s0 + $0x78] sm:$0xff]
  %v30 = vld [vmem:[%s0 + $0x80] sm:$0xff]
  %v31 = vld [vmem:[%s0 + $0x88] sm:$0xff]
  %v32 = vld [vmem:[%s0 + $0x90] sm:$0xff]
  %v33 = vld [vmem:[%s0 + $0x98] sm:$0xff]
  %v34 = vld [vmem:[%s0 + $0xa0] sm:$0xff]
  %v35 = vld [vmem:[%s0 + $0xa8] sm:$0xff]
  %v36 = vld [vmem:[%s0 + $0xb0] sm:$0xff]
  %v37 = vld [vmem:[%s0 + $0xb8] sm:$0xff]
  %v38 = vld [vmem:[%s0 + $0xc0] sm:$0xff]
  %v39 = vld [vmem:[%s0 + $0xc8] sm:$0xff]
  %v40 = vld [vmem:[%s0 + $0xd0] sm:$0xff]
  %v41 = vld [vmem:[%s0 + $0xd8] sm:$0xff]
  %v42 = vld [vmem:[%s0 + $0xe0] sm:$0xff]
  %v43 = vld [vmem:[%s0 + $0xe8] sm:$0xff]
  %v44 = vld [vmem:[%s0 + $0xf0] sm:$0xff]
  %v45 = vld [vmem:[%s0 + $0xf8] sm:$0xff]
  %v46 = vld [vmem:[%s0 + $0x100] sm:$0xff]
  %v47 = vld [vmem:[%s0 + $0x108] sm:$0xff]
  %v48 = vld [vmem:[%s0 + $0x110] sm:$0xff]
  %v49 = vld [vmem:[%s0 + $0x118] sm:$0xff]
  %v50 = vld [vmem:[%s0 + $0x120] sm:$0xff]
  %v51 = vld [vmem:[%s0 + $0x128] sm:$0xff]
  %v52 = vld [vmem:[%s0 + $0x130] sm:$0xff]
  %v53 = vld [vmem:[%s0 + $0x138] sm:$0xff]
  %v54 = vld [vmem:[%s0 + $0x140] sm:$0xff]
  %v55 = vld [vmem:[%s0 + $0x148] sm:$0xff]
  %v56 = vld [vmem:[%s0 + $0x150] sm:$0xff]
  %v57 = vld [vmem:[%s0 + $0x158] sm:$0xff]
  %v58 = vld [vmem:[%s0 + $0x160] sm:$0xff]
  %v59 = vld [vmem:[%s0 + $0x168] sm:$0xff]
  %v60 = vld [vmem:[%s0 + $0x170] sm:$0xff]
  %v61 = vld [vmem:[%s0 + $0x178] sm:$0xff]
  %v62 = vld [vmem:[%s0 + $0x180] sm:$0xff]
  %v63 = vld [vmem:[%s0 + $0x188] sm:$0xff]
  %v64 = vld [vmem:[%s0 + $0x190] sm:$0xff]
  %v65 = vld [vmem:[%s0 + $0x198] sm:$0xff]
  %v66 = vld [vmem:[%s0 + $0x1a0] sm:$0xff]
  %v67 = vld [vmem:[%s0 + $0x1a8] sm:$0xff]
  %v68 = vld [vmem:[%s0 + $0x1b0] sm:$0xff]
  %v69 = vld [vmem:[%s0 + $0x1b8] sm:$0xff]
  %v70 = vld [vmem:[%s0 + $0x1c0] sm:$0xff]
  %v71 = vld [vmem:[%s0 + $0x1c8] sm:$0xff]
  %v72 = vld [vmem:[%s0 + $0x1d0] sm:$0xff]
  %v73 = vld [vmem:[%s0 + $0x1d8] sm:$0xff]
  %v74 = vld [vmem:[%s0 + $0x1e0] sm:$0xff]
  %v75 = vld [vmem:[%s0 + $0x1e8] sm:$0xff]
  %v76 = vld [vmem:[%s0 + $0x1f0] sm:$0xff]
  %v77 = vld [vmem:[%s0 + $0x1f8] sm:$0xff]
  %v78 = vpack.c.bf16 %v15, %v14
  %v79 = vpack.c.bf16 %v17, %v16
  %v80 = vpack.c.bf16 %v19, %v18
  %v81 = vpack.c.bf16 %v21, %v20
  %v82 = vpack.c.bf16 %v23, %v22
  %v83 = vpack.c.bf16 %v25, %v24
  %v84 = vpack.c.bf16 %v27, %v26
  %v85 = vpack.c.bf16 %v29, %v28
  %v86 = vpack.c.bf16 %v31, %v30
  %v87 = vpack.c.bf16 %v33, %v32
  %v88 = vpack.c.bf16 %v35, %v34
  %v89 = vpack.c.bf16 %v37, %v36
  %v90 = vpack.c.bf16 %v39, %v38
  %v91 = vpack.c.bf16 %v41, %v40
  %v92 = vpack.c.bf16 %v43, %v42
  %v93 = vpack.c.bf16 %v45, %v44
  %v94 = vpack.c.bf16 %v47, %v46
  %v95 = vpack.c.bf16 %v49, %v48
  %v96 = vpack.c.bf16 %v51, %v50
  %v97 = vpack.c.bf16 %v53, %v52
  %v98 = vpack.c.bf16 %v55, %v54
  %v99 = vpack.c.bf16 %v57, %v56
  %v100 = vpack.c.bf16 %v59, %v58
  %v101 = vpack.c.bf16 %v61, %v60
  %v102 = vpack.c.bf16 %v63, %v62
  %v103 = vpack.c.bf16 %v65, %v64
  %v104 = vpack.c.bf16 %v67, %v66
  %v105 = vpack.c.bf16 %v69, %v68
  %v106 = vpack.c.bf16 %v71, %v70
  %v107 = vpack.c.bf16 %v73, %v72
  %v108 = vpack.c.bf16 %v75, %v74
  %v109 = vpack.c.bf16 %v77, %v76
  %v110 = vld [vmem:[%s1] sm:$0xf]
  %v111 = vld [vmem:[%s1 + $0x4] sm:$0xf]
  %v112 = vld [vmem:[%s1 + $0x8] sm:$0xf]
  %v113 = vld [vmem:[%s1 + $0xc] sm:$0xf]
  %v114 = vld [vmem:[%s1 + $0x10] sm:$0xf]
  %v115 = vld [vmem:[%s1 + $0x14] sm:$0xf]
  %v116 = vld [vmem:[%s1 + $0x18] sm:$0xf]
  %v117 = vld [vmem:[%s1 + $0x1c] sm:$0xf]
  %v118 = vld [vmem:[%s1 + $0x20] sm:$0xf]
  %v119 = vld [vmem:[%s1 + $0x24] sm:$0xf]
  %v120 = vld [vmem:[%s1 + $0x28] sm:$0xf]
  %v121 = vld [vmem:[%s1 + $0x2c] sm:$0xf]
  %v122 = vld [vmem:[%s1 + $0x30] sm:$0xf]
  %v123 = vld [vmem:[%s1 + $0x34] sm:$0xf]
  %v124 = vld [vmem:[%s1 + $0x38] sm:$0xf]
  %v125 = vld [vmem:[%s1 + $0x3c] sm:$0xf]
  %v142 = vunpack.c.l.b16 %v110
  %v143 = vunpack.c.l.b16 %v111
  %v144 = vunpack.c.l.b16 %v112
  %v145 = vunpack.c.l.b16 %v113
  %v146 = vunpack.c.l.b16 %v114
  %v147 = vunpack.c.l.b16 %v115
  %v148 = vunpack.c.l.b16 %v116
  %v149 = vunpack.c.l.b16 %v117
  %v150 = vunpack.c.l.b16 %v118
  %v151 = vunpack.c.l.b16 %v119
  %v152 = vunpack.c.l.b16 %v120
  %v153 = vunpack.c.l.b16 %v121
  %v154 = vunpack.c.l.b16 %v122
  %v155 = vunpack.c.l.b16 %v123
  %v156 = vunpack.c.l.b16 %v124
  %v157 = vunpack.c.l.b16 %v125
  %v158 = vpack.c.b16 %v143, %v142
  %v159 = vpack.c.b16 %v145, %v144
  %v160 = vpack.c.b16 %v147, %v146
  %v161 = vpack.c.b16 %v149, %v148
  %v162 = vpack.c.b16 %v151, %v150
  %v163 = vpack.c.b16 %v153, %v152
  %v164 = vpack.c.b16 %v155, %v154
  %v165 = vpack.c.b16 %v157, %v156
  %174 = vmatprep.subr.bf16.mxu0 0
  %175 = vmatpush1.bf16.msra.mxu0 %v165
  %176 = vmatprep.subr.bf16.mxu0 0
  %177 = vmatpush1.bf16.msra.mxu0 %v164
  %178 = vmatprep.subr.bf16.mxu0 0
  %179 = vmatpush1.bf16.msra.mxu0 %v163
  %180 = vmatprep.subr.bf16.mxu0 0
  %181 = vmatpush1.bf16.msra.mxu0 %v162
  %182 = vmatprep.subr.bf16.mxu0 0
  %183 = vmatpush1.bf16.msra.mxu0 %v161
  %184 = vmatprep.subr.bf16.mxu0 0
  %185 = vmatpush1.bf16.msra.mxu0 %v160
  %186 = vmatprep.subr.bf16.mxu0 0
  %187 = vmatpush1.bf16.msra.mxu0 %v159
  %188 = vmatprep.subr.bf16.mxu0 0
  %189 = vmatpush1.bf16.msra.mxu0 %v158
  %190 = vmatprep.subr.bf16.mxu0 0
  %191 = vmatpush2.bf16.msra.mxu0 0
  %192 = vmatprep.subr.bf16.mxu0 0
  %193 = vmatpush2.bf16.msra.mxu0 0
  %194 = vmatprep.subr.bf16.mxu0 0
  %195 = vmatpush2.bf16.msra.mxu0 0
  %196 = vmatprep.subr.bf16.mxu0 0
  %197 = vmatpush2.bf16.msra.mxu0 0
  %198 = vmatprep.subr.bf16.mxu0 0
  %199 = vmatpush2.bf16.msra.mxu0 0
  %200 = vmatprep.subr.bf16.mxu0 0
  %201 = vmatpush2.bf16.msra.mxu0 0
  %202 = vmatprep.subr.bf16.mxu0 0
  %203 = vmatpush2.bf16.msra.mxu0 0
  %204 = vmatprep.subr.bf16.mxu0 0
  %205 = vmatpush2.bf16.msra.mxu0 0
  %206 = vmatprep.mubr.bf16.mxu0 0
  %207 = vmatmul.mubr.bf16.gmra.mxu0 %v78
  %v208 = vpop.f32.mrf.mxu0
  %v209 = vadd.f32 0.0, %v208
  %v210 = vpop.f32.mrf.mxu0
  %v211 = vpop.f32.mrf.mxu0
  %v212 = vadd.f32 0.0, %v211
  %v213 = vpop.f32.mrf.mxu0
  %214 = vmatprep.mubr.bf16.mxu0 0
  %215 = vmatmul.mubr.bf16.gmra.mxu0 %v79
  %v216 = vpop.f32.mrf.mxu0
  %v217 = vadd.f32 0.0, %v216
  %v218 = vpop.f32.mrf.mxu0
  %v219 = vpop.f32.mrf.mxu0
  %v220 = vadd.f32 0.0, %v219
  %v221 = vpop.f32.mrf.mxu0
  %222 = vmatprep.mubr.bf16.mxu0 0
  %223 = vmatmul.mubr.bf16.gmra.mxu0 %v80
  %v224 = vpop.f32.mrf.mxu0
  %v225 = vadd.f32 0.0, %v224
  %v226 = vpop.f32.mrf.mxu0
  %v227 = vpop.f32.mrf.mxu0
  %v228 = vadd.f32 0.0, %v227
  %v229 = vpop.f32.mrf.mxu0
  %230 = vmatprep.mubr.bf16.mxu0 0
  %231 = vmatmul.mubr.bf16.gmra.mxu0 %v81
  %v232 = vpop.f32.mrf.mxu0
  %v233 = vadd.f32 0.0, %v232
  %v234 = vpop.f32.mrf.mxu0
  %v235 = vpop.f32.mrf.mxu0
  %v236 = vadd.f32 0.0, %v235
  %v237 = vpop.f32.mrf.mxu0
  %238 = vmatprep.mubr.bf16.mxu0 0
  %239 = vmatmul.mubr.bf16.gmra.mxu0 %v82
  %v240 = vpop.f32.mrf.mxu0
  %v241 = vadd.f32 0.0, %v240
  %v242 = vpop.f32.mrf.mxu0
  %v243 = vpop.f32.mrf.mxu0
  %v244 = vadd.f32 0.0, %v243
  %v245 = vpop.f32.mrf.mxu0
  %246 = vmatprep.mubr.bf16.mxu0 0
  %247 = vmatmul.mubr.bf16.gmra.mxu0 %v83
  %v248 = vpop.f32.mrf.mxu0
  %v249 = vadd.f32 0.0, %v248
  %v250 = vpop.f32.mrf.mxu0
  %v251 = vpop.f32.mrf.mxu0
  %v252 = vadd.f32 0.0, %v251
  %v253 = vpop.f32.mrf.mxu0
  %254 = vmatprep.mubr.bf16.mxu0 0
  %255 = vmatmul.mubr.bf16.gmra.mxu0 %v84
  %v256 = vpop.f32.mrf.mxu0
  %v257 = vadd.f32 0.0, %v256
  %v258 = vpop.f32.mrf.mxu0
  %v259 = vpop.f32.mrf.mxu0
  %v260 = vadd.f32 0.0, %v259
  %v261 = vpop.f32.mrf.mxu0
  %262 = vmatprep.mubr.bf16.mxu0 0
  %263 = vmatmul.mubr.bf16.gmra.mxu0 %v85
  %v264 = vpop.f32.mrf.mxu0
  %v265 = vadd.f32 0.0, %v264
  %v266 = vpop.f32.mrf.mxu0
  %v267 = vpop.f32.mrf.mxu0
  %v268 = vadd.f32 0.0, %v267
  %v269 = vpop.f32.mrf.mxu0
  %270 = vmatprep.mubr.bf16.mxu0 0
  %271 = vmatmul.mubr.bf16.gmra.mxu0 %v86
  %v272 = vpop.f32.mrf.mxu0
  %v273 = vadd.f32 0.0, %v272
  %v274 = vpop.f32.mrf.mxu0
  %v275 = vpop.f32.mrf.mxu0
  %v276 = vadd.f32 0.0, %v275
  %v277 = vpop.f32.mrf.mxu0
  %278 = vmatprep.mubr.bf16.mxu0 0
  %279 = vmatmul.mubr.bf16.gmra.mxu0 %v87
  %v280 = vpop.f32.mrf.mxu0
  %v281 = vadd.f32 0.0, %v280
  %v282 = vpop.f32.mrf.mxu0
  %v283 = vpop.f32.mrf.mxu0
  %v284 = vadd.f32 0.0, %v283
  %v285 = vpop.f32.mrf.mxu0
  %286 = vmatprep.mubr.bf16.mxu0 0
  %287 = vmatmul.mubr.bf16.gmra.mxu0 %v88
  %v288 = vpop.f32.mrf.mxu0
  %v289 = vadd.f32 0.0, %v288
  %v290 = vpop.f32.mrf.mxu0
  %v291 = vpop.f32.mrf.mxu0
  %v292 = vadd.f32 0.0, %v291
  %v293 = vpop.f32.mrf.mxu0
  %294 = vmatprep.mubr.bf16.mxu0 0
  %295 = vmatmul.mubr.bf16.gmra.mxu0 %v89
  %v296 = vpop.f32.mrf.mxu0
  %v297 = vadd.f32 0.0, %v296
  %v298 = vpop.f32.mrf.mxu0
  %v299 = vpop.f32.mrf.mxu0
  %v300 = vadd.f32 0.0, %v299
  %v301 = vpop.f32.mrf.mxu0
  %302 = vmatprep.mubr.bf16.mxu0 0
  %303 = vmatmul.mubr.bf16.gmra.mxu0 %v90
  %v304 = vpop.f32.mrf.mxu0
  %v305 = vadd.f32 0.0, %v304
  %v306 = vpop.f32.mrf.mxu0
  %v307 = vpop.f32.mrf.mxu0
  %v308 = vadd.f32 0.0, %v307
  %v309 = vpop.f32.mrf.mxu0
  %310 = vmatprep.mubr.bf16.mxu0 0
  %311 = vmatmul.mubr.bf16.gmra.mxu0 %v91
  %v312 = vpop.f32.mrf.mxu0
  %v313 = vadd.f32 0.0, %v312
  %v314 = vpop.f32.mrf.mxu0
  %v315 = vpop.f32.mrf.mxu0
  %v316 = vadd.f32 0.0, %v315
  %v317 = vpop.f32.mrf.mxu0
  %318 = vmatprep.mubr.bf16.mxu0 0
  %319 = vmatmul.mubr.bf16.gmra.mxu0 %v92
  %v320 = vpop.f32.mrf.mxu0
  %v321 = vadd.f32 0.0, %v320
  %v322 = vpop.f32.mrf.mxu0
  %v323 = vpop.f32.mrf.mxu0
  %v324 = vadd.f32 0.0, %v323
  %v325 = vpop.f32.mrf.mxu0
  %326 = vmatprep.mubr.bf16.mxu0 0
  %327 = vmatmul.mubr.bf16.gmra.mxu0 %v93
  %v328 = vpop.f32.mrf.mxu0
  %v329 = vadd.f32 0.0, %v328
  %v330 = vpop.f32.mrf.mxu0
  %v331 = vpop.f32.mrf.mxu0
  %v332 = vadd.f32 0.0, %v331
  %v333 = vpop.f32.mrf.mxu0
  %334 = vmatprep.mubr.bf16.mxu0 0
  %335 = vmatmul.mubr.bf16.gmra.mxu0 %v94
  %v336 = vpop.f32.mrf.mxu0
  %v337 = vadd.f32 0.0, %v336
  %v338 = vpop.f32.mrf.mxu0
  %v339 = vpop.f32.mrf.mxu0
  %v340 = vadd.f32 0.0, %v339
  %v341 = vpop.f32.mrf.mxu0
  %342 = vmatprep.mubr.bf16.mxu0 0
  %343 = vmatmul.mubr.bf16.gmra.mxu0 %v95
  %v344 = vpop.f32.mrf.mxu0
  %v345 = vadd.f32 0.0, %v344
  %v346 = vpop.f32.mrf.mxu0
  %v347 = vpop.f32.mrf.mxu0
  %v348 = vadd.f32 0.0, %v347
  %v349 = vpop.f32.mrf.mxu0
  %350 = vmatprep.mubr.bf16.mxu0 0
  %351 = vmatmul.mubr.bf16.gmra.mxu0 %v96
  %v352 = vpop.f32.mrf.mxu0
  %v353 = vadd.f32 0.0, %v352
  %v354 = vpop.f32.mrf.mxu0
  %v355 = vpop.f32.mrf.mxu0
  %v356 = vadd.f32 0.0, %v355
  %v357 = vpop.f32.mrf.mxu0
  %358 = vmatprep.mubr.bf16.mxu0 0
  %359 = vmatmul.mubr.bf16.gmra.mxu0 %v97
  %v360 = vpop.f32.mrf.mxu0
  %v361 = vadd.f32 0.0, %v360
  %v362 = vpop.f32.mrf.mxu0
  %v363 = vpop.f32.mrf.mxu0
  %v364 = vadd.f32 0.0, %v363
  %v365 = vpop.f32.mrf.mxu0
  %366 = vmatprep.mubr.bf16.mxu0 0
  %367 = vmatmul.mubr.bf16.gmra.mxu0 %v98
  %v368 = vpop.f32.mrf.mxu0
  %v369 = vadd.f32 0.0, %v368
  %v370 = vpop.f32.mrf.mxu0
  %v371 = vpop.f32.mrf.mxu0
  %v372 = vadd.f32 0.0, %v371
  %v373 = vpop.f32.mrf.mxu0
  %374 = vmatprep.mubr.bf16.mxu0 0
  %375 = vmatmul.mubr.bf16.gmra.mxu0 %v99
  %v376 = vpop.f32.mrf.mxu0
  %v377 = vadd.f32 0.0, %v376
  %v378 = vpop.f32.mrf.mxu0
  %v379 = vpop.f32.mrf.mxu0
  %v380 = vadd.f32 0.0, %v379
  %v381 = vpop.f32.mrf.mxu0
  %382 = vmatprep.mubr.bf16.mxu0 0
  %383 = vmatmul.mubr.bf16.gmra.mxu0 %v100
  %v384 = vpop.f32.mrf.mxu0
  %v385 = vadd.f32 0.0, %v384
  %v386 = vpop.f32.mrf.mxu0
  %v387 = vpop.f32.mrf.mxu0
  %v388 = vadd.f32 0.0, %v387
  %v389 = vpop.f32.mrf.mxu0
  %390 = vmatprep.mubr.bf16.mxu0 0
  %391 = vmatmul.mubr.bf16.gmra.mxu0 %v101
  %v392 = vpop.f32.mrf.mxu0
  %v393 = vadd.f32 0.0, %v392
  %v394 = vpop.f32.mrf.mxu0
  %v395 = vpop.f32.mrf.mxu0
  %v396 = vadd.f32 0.0, %v395
  %v397 = vpop.f32.mrf.mxu0
  %398 = vmatprep.mubr.bf16.mxu0 0
  %399 = vmatmul.mubr.bf16.gmra.mxu0 %v102
  %v400 = vpop.f32.mrf.mxu0
  %v401 = vadd.f32 0.0, %v400
  %v402 = vpop.f32.mrf.mxu0
  %v403 = vpop.f32.mrf.mxu0
  %v404 = vadd.f32 0.0, %v403
  %v405 = vpop.f32.mrf.mxu0
  %406 = vmatprep.mubr.bf16.mxu0 0
  %407 = vmatmul.mubr.bf16.gmra.mxu0 %v103
  %v408 = vpop.f32.mrf.mxu0
  %v409 = vadd.f32 0.0, %v408
  %v410 = vpop.f32.mrf.mxu0
  %v411 = vpop.f32.mrf.mxu0
  %v412 = vadd.f32 0.0, %v411
  %v413 = vpop.f32.mrf.mxu0
  %414 = vmatprep.mubr.bf16.mxu0 0
  %415 = vmatmul.mubr.bf16.gmra.mxu0 %v104
  %v416 = vpop.f32.mrf.mxu0
  %v417 = vadd.f32 0.0, %v416
  %v418 = vpop.f32.mrf.mxu0
  %v419 = vpop.f32.mrf.mxu0
  %v420 = vadd.f32 0.0, %v419
  %v421 = vpop.f32.mrf.mxu0
  %422 = vmatprep.mubr.bf16.mxu0 0
  %423 = vmatmul.mubr.bf16.gmra.mxu0 %v105
  %v424 = vpop.f32.mrf.mxu0
  %v425 = vadd.f32 0.0, %v424
  %v426 = vpop.f32.mrf.mxu0
  %v427 = vpop.f32.mrf.mxu0
  %v428 = vadd.f32 0.0, %v427
  %v429 = vpop.f32.mrf.mxu0
  %430 = vmatprep.mubr.bf16.mxu0 0
  %431 = vmatmul.mubr.bf16.gmra.mxu0 %v106
  %v432 = vpop.f32.mrf.mxu0
  %v433 = vadd.f32 0.0, %v432
  %v434 = vpop.f32.mrf.mxu0
  %v435 = vpop.f32.mrf.mxu0
  %v436 = vadd.f32 0.0, %v435
  %v437 = vpop.f32.mrf.mxu0
  %438 = vmatprep.mubr.bf16.mxu0 0
  %439 = vmatmul.mubr.bf16.gmra.mxu0 %v107
  %v440 = vpop.f32.mrf.mxu0
  %v441 = vadd.f32 0.0, %v440
  %v442 = vpop.f32.mrf.mxu0
  %v443 = vpop.f32.mrf.mxu0
  %v444 = vadd.f32 0.0, %v443
  %v445 = vpop.f32.mrf.mxu0
  %446 = vmatprep.mubr.bf16.mxu0 0
  %447 = vmatmul.mubr.bf16.gmra.mxu0 %v108
  %v448 = vpop.f32.mrf.mxu0
  %v449 = vadd.f32 0.0, %v448
  %v450 = vpop.f32.mrf.mxu0
  %v451 = vpop.f32.mrf.mxu0
  %v452 = vadd.f32 0.0, %v451
  %v453 = vpop.f32.mrf.mxu0
  %454 = vmatprep.mubr.bf16.mxu0 0
  %455 = vmatmul.mubr.bf16.gmra.mxu0 %v109
  %v456 = vpop.f32.mrf.mxu0
  %v457 = vadd.f32 0.0, %v456
  %v458 = vpop.f32.mrf.mxu0
  %v459 = vpop.f32.mrf.mxu0
  %v460 = vadd.f32 0.0, %v459
  %v461 = vpop.f32.mrf.mxu0
  %462 = vdwg.mxu0
  %v463 = vpack.c.bf16 %v212, %v209
  %v464 = vpack.c.bf16 %v220, %v217
  %v465 = vpack.c.bf16 %v228, %v225
  %v466 = vpack.c.bf16 %v236, %v233
  %v467 = vpack.c.bf16 %v244, %v241
  %v468 = vpack.c.bf16 %v252, %v249
  %v469 = vpack.c.bf16 %v260, %v257
  %v470 = vpack.c.bf16 %v268, %v265
  %v471 = vpack.c.bf16 %v276, %v273
  %v472 = vpack.c.bf16 %v284, %v281
  %v473 = vpack.c.bf16 %v292, %v289
  %v474 = vpack.c.bf16 %v300, %v297
  %v475 = vpack.c.bf16 %v308, %v305
  %v476 = vpack.c.bf16 %v316, %v313
  %v477 = vpack.c.bf16 %v324, %v321
  %v478 = vpack.c.bf16 %v332, %v329
  %v479 = vpack.c.bf16 %v340, %v337
  %v480 = vpack.c.bf16 %v348, %v345
  %v481 = vpack.c.bf16 %v356, %v353
  %v482 = vpack.c.bf16 %v364, %v361
  %v483 = vpack.c.bf16 %v372, %v369
  %v484 = vpack.c.bf16 %v380, %v377
  %v485 = vpack.c.bf16 %v388, %v385
  %v486 = vpack.c.bf16 %v396, %v393
  %v487 = vpack.c.bf16 %v404, %v401
  %v488 = vpack.c.bf16 %v412, %v409
  %v489 = vpack.c.bf16 %v420, %v417
  %v490 = vpack.c.bf16 %v428, %v425
  %v491 = vpack.c.bf16 %v436, %v433
  %v492 = vpack.c.bf16 %v444, %v441
  %v493 = vpack.c.bf16 %v452, %v449
  %v494 = vpack.c.bf16 %v460, %v457
  %v527 = vunpack.c.l.b16 %v463
  %v528 = vunpack.c.h.b16 %v463
  %v529 = vunpack.c.l.b16 %v464
  %v530 = vunpack.c.h.b16 %v464
  %v531 = vunpack.c.l.b16 %v465
  %v532 = vunpack.c.h.b16 %v465
  %v533 = vunpack.c.l.b16 %v466
  %v534 = vunpack.c.h.b16 %v466
  %v535 = vunpack.c.l.b16 %v467
  %v536 = vunpack.c.h.b16 %v467
  %v537 = vunpack.c.l.b16 %v468
  %v538 = vunpack.c.h.b16 %v468
  %v539 = vunpack.c.l.b16 %v469
  %v540 = vunpack.c.h.b16 %v469
  %v541 = vunpack.c.l.b16 %v470
  %v542 = vunpack.c.h.b16 %v470
  %v543 = vunpack.c.l.b16 %v471
  %v544 = vunpack.c.h.b16 %v471
  %v545 = vunpack.c.l.b16 %v472
  %v546 = vunpack.c.h.b16 %v472
  %v547 = vunpack.c.l.b16 %v473
  %v548 = vunpack.c.h.b16 %v473
  %v549 = vunpack.c.l.b16 %v474
  %v550 = vunpack.c.h.b16 %v474
  %v551 = vunpack.c.l.b16 %v475
  %v552 = vunpack.c.h.b16 %v475
  %v553 = vunpack.c.l.b16 %v476
  %v554 = vunpack.c.h.b16 %v476
  %v555 = vunpack.c.l.b16 %v477
  %v556 = vunpack.c.h.b16 %v477
  %v557 = vunpack.c.l.b16 %v478
  %v558 = vunpack.c.h.b16 %v478
  %v559 = vunpack.c.l.b16 %v479
  %v560 = vunpack.c.h.b16 %v479
  %v561 = vunpack.c.l.b16 %v480
  %v562 = vunpack.c.h.b16 %v480
  %v563 = vunpack.c.l.b16 %v481
  %v564 = vunpack.c.h.b16 %v481
  %v565 = vunpack.c.l.b16 %v482
  %v566 = vunpack.c.h.b16 %v482
  %v567 = vunpack.c.l.b16 %v483
  %v568 = vunpack.c.h.b16 %v483
  %v569 = vunpack.c.l.b16 %v484
  %v570 = vunpack.c.h.b16 %v484
  %v571 = vunpack.c.l.b16 %v485
  %v572 = vunpack.c.h.b16 %v485
  %v573 = vunpack.c.l.b16 %v486
  %v574 = vunpack.c.h.b16 %v486
  %v575 = vunpack.c.l.b16 %v487
  %v576 = vunpack.c.h.b16 %v487
  %v577 = vunpack.c.l.b16 %v488
  %v578 = vunpack.c.h.b16 %v488
  %v579 = vunpack.c.l.b16 %v489
  %v580 = vunpack.c.h.b16 %v489
  %v581 = vunpack.c.l.b16 %v490
  %v582 = vunpack.c.h.b16 %v490
  %v583 = vunpack.c.l.b16 %v491
  %v584 = vunpack.c.h.b16 %v491
  %v585 = vunpack.c.l.b16 %v492
  %v586 = vunpack.c.h.b16 %v492
  %v587 = vunpack.c.l.b16 %v493
  %v588 = vunpack.c.h.b16 %v493
  %v589 = vunpack.c.l.b16 %v494
  %v590 = vunpack.c.h.b16 %v494
  %v591 = vpack.c.b16 %v527, %v527
  %v592 = vpack.c.b16 %v528, %v528
  %v593 = vpack.c.b16 %v529, %v529
  %v594 = vpack.c.b16 %v530, %v530
  %v595 = vpack.c.b16 %v531, %v531
  %v596 = vpack.c.b16 %v532, %v532
  %v597 = vpack.c.b16 %v533, %v533
  %v598 = vpack.c.b16 %v534, %v534
  %v599 = vpack.c.b16 %v535, %v535
  %v600 = vpack.c.b16 %v536, %v536
  %v601 = vpack.c.b16 %v537, %v537
  %v602 = vpack.c.b16 %v538, %v538
  %v603 = vpack.c.b16 %v539, %v539
  %v604 = vpack.c.b16 %v540, %v540
  %v605 = vpack.c.b16 %v541, %v541
  %v606 = vpack.c.b16 %v542, %v542
  %v607 = vpack.c.b16 %v543, %v543
  %v608 = vpack.c.b16 %v544, %v544
  %v609 = vpack.c.b16 %v545, %v545
  %v610 = vpack.c.b16 %v546, %v546
  %v611 = vpack.c.b16 %v547, %v547
  %v612 = vpack.c.b16 %v548, %v548
  %v613 = vpack.c.b16 %v549, %v549
  %v614 = vpack.c.b16 %v550, %v550
  %v615 = vpack.c.b16 %v551, %v551
  %v616 = vpack.c.b16 %v552, %v552
  %v617 = vpack.c.b16 %v553, %v553
  %v618 = vpack.c.b16 %v554, %v554
  %v619 = vpack.c.b16 %v555, %v555
  %v620 = vpack.c.b16 %v556, %v556
  %v621 = vpack.c.b16 %v557, %v557
  %v622 = vpack.c.b16 %v558, %v558
  %v623 = vpack.c.b16 %v559, %v559
  %v624 = vpack.c.b16 %v560, %v560
  %v625 = vpack.c.b16 %v561, %v561
  %v626 = vpack.c.b16 %v562, %v562
  %v627 = vpack.c.b16 %v563, %v563
  %v628 = vpack.c.b16 %v564, %v564
  %v629 = vpack.c.b16 %v565, %v565
  %v630 = vpack.c.b16 %v566, %v566
  %v631 = vpack.c.b16 %v567, %v567
  %v632 = vpack.c.b16 %v568, %v568
  %v633 = vpack.c.b16 %v569, %v569
  %v634 = vpack.c.b16 %v570, %v570
  %v635 = vpack.c.b16 %v571, %v571
  %v636 = vpack.c.b16 %v572, %v572
  %v637 = vpack.c.b16 %v573, %v573
  %v638 = vpack.c.b16 %v574, %v574
  %v639 = vpack.c.b16 %v575, %v575
  %v640 = vpack.c.b16 %v576, %v576
  %v641 = vpack.c.b16 %v577, %v577
  %v642 = vpack.c.b16 %v578, %v578
  %v643 = vpack.c.b16 %v579, %v579
  %v644 = vpack.c.b16 %v580, %v580
  %v645 = vpack.c.b16 %v581, %v581
  %v646 = vpack.c.b16 %v582, %v582
  %v647 = vpack.c.b16 %v583, %v583
  %v648 = vpack.c.b16 %v584, %v584
  %v649 = vpack.c.b16 %v585, %v585
  %v650 = vpack.c.b16 %v586, %v586
  %v651 = vpack.c.b16 %v587, %v587
  %v652 = vpack.c.b16 %v588, %v588
  %v653 = vpack.c.b16 %v589, %v589
  %v654 = vpack.c.b16 %v590, %v590
  %719 = vst [vmem:[%s2] sm:$0xf] %v591
  %720 = vst [vmem:[%s2 + $0x4] sm:$0xf] %v592
  %721 = vst [vmem:[%s2 + $0x8] sm:$0xf] %v593
  %722 = vst [vmem:[%s2 + $0xc] sm:$0xf] %v594
  %723 = vst [vmem:[%s2 + $0x10] sm:$0xf] %v595
  %724 = vst [vmem:[%s2 + $0x14] sm:$0xf] %v596
  %725 = vst [vmem:[%s2 + $0x18] sm:$0xf] %v597
  %726 = vst [vmem:[%s2 + $0x1c] sm:$0xf] %v598
  %727 = vst [vmem:[%s2 + $0x20] sm:$0xf] %v599
  %728 = vst [vmem:[%s2 + $0x24] sm:$0xf] %v600
  %729 = vst [vmem:[%s2 + $0x28] sm:$0xf] %v601
  %730 = vst [vmem:[%s2 + $0x2c] sm:$0xf] %v602
  %731 = vst [vmem:[%s2 + $0x30] sm:$0xf] %v603
  %732 = vst [vmem:[%s2 + $0x34] sm:$0xf] %v604
  %733 = vst [vmem:[%s2 + $0x38] sm:$0xf] %v605
  %734 = vst [vmem:[%s2 + $0x3c] sm:$0xf] %v606
  %735 = vst [vmem:[%s2 + $0x40] sm:$0xf] %v607
  %736 = vst [vmem:[%s2 + $0x44] sm:$0xf] %v608
  %737 = vst [vmem:[%s2 + $0x48] sm:$0xf] %v609
  %738 = vst [vmem:[%s2 + $0x4c] sm:$0xf] %v610
  %739 = vst [vmem:[%s2 + $0x50] sm:$0xf] %v611
  %740 = vst [vmem:[%s2 + $0x54] sm:$0xf] %v612
  %741 = vst [vmem:[%s2 + $0x58] sm:$0xf] %v613
  %742 = vst [vmem:[%s2 + $0x5c] sm:$0xf] %v614
  %743 = vst [vmem:[%s2 + $0x60] sm:$0xf] %v615
  %744 = vst [vmem:[%s2 + $0x64] sm:$0xf] %v616
  %745 = vst [vmem:[%s2 + $0x68] sm:$0xf] %v617
  %746 = vst [vmem:[%s2 + $0x6c] sm:$0xf] %v618
  %747 = vst [vmem:[%s2 + $0x70] sm:$0xf] %v619
  %748 = vst [vmem:[%s2 + $0x74] sm:$0xf] %v620
  %749 = vst [vmem:[%s2 + $0x78] sm:$0xf] %v621
  %750 = vst [vmem:[%s2 + $0x7c] sm:$0xf] %v622
  %751 = vst [vmem:[%s2 + $0x80] sm:$0xf] %v623
  %752 = vst [vmem:[%s2 + $0x84] sm:$0xf] %v624
  %753 = vst [vmem:[%s2 + $0x88] sm:$0xf] %v625
  %754 = vst [vmem:[%s2 + $0x8c] sm:$0xf] %v626
  %755 = vst [vmem:[%s2 + $0x90] sm:$0xf] %v627
  %756 = vst [vmem:[%s2 + $0x94] sm:$0xf] %v628
  %757 = vst [vmem:[%s2 + $0x98] sm:$0xf] %v629
  %758 = vst [vmem:[%s2 + $0x9c] sm:$0xf] %v630
  %759 = vst [vmem:[%s2 + $0xa0] sm:$0xf] %v631
  %760 = vst [vmem:[%s2 + $0xa4] sm:$0xf] %v632
  %761 = vst [vmem:[%s2 + $0xa8] sm:$0xf] %v633
  %762 = vst [vmem:[%s2 + $0xac] sm:$0xf] %v634
  %763 = vst [vmem:[%s2 + $0xb0] sm:$0xf] %v635
  %764 = vst [vmem:[%s2 + $0xb4] sm:$0xf] %v636
  %765 = vst [vmem:[%s2 + $0xb8] sm:$0xf] %v637
  %766 = vst [vmem:[%s2 + $0xbc] sm:$0xf] %v638
  %767 = vst [vmem:[%s2 + $0xc0] sm:$0xf] %v639
  %768 = vst [vmem:[%s2 + $0xc4] sm:$0xf] %v640
  %769 = vst [vmem:[%s2 + $0xc8] sm:$0xf] %v641
  %770 = vst [vmem:[%s2 + $0xcc] sm:$0xf] %v642
  %771 = vst [vmem:[%s2 + $0xd0] sm:$0xf] %v643
  %772 = vst [vmem:[%s2 + $0xd4] sm:$0xf] %v644
  %773 = vst [vmem:[%s2 + $0xd8] sm:$0xf] %v645
  %774 = vst [vmem:[%s2 + $0xdc] sm:$0xf] %v646
  %775 = vst [vmem:[%s2 + $0xe0] sm:$0xf] %v647
  %776 = vst [vmem:[%s2 + $0xe4] sm:$0xf] %v648
  %777 = vst [vmem:[%s2 + $0xe8] sm:$0xf] %v649
  %778 = vst [vmem:[%s2 + $0xec] sm:$0xf] %v650
  %779 = vst [vmem:[%s2 + $0xf0] sm:$0xf] %v651
  %780 = vst [vmem:[%s2 + $0xf4] sm:$0xf] %v652
  %781 = vst [vmem:[%s2 + $0xf8] sm:$0xf] %v653
  %782 = vst [vmem:[%s2 + $0xfc] sm:$0xf] %v654
  %v783 = vadd.f32 %v209, %v212
  %v784 = vadd.f32 %v783, %v217
  %v785 = vadd.f32 %v784, %v220
  %v786 = vadd.f32 %v785, %v225
  %v787 = vadd.f32 %v786, %v228
  %v788 = vadd.f32 %v787, %v233
  %v789 = vadd.f32 %v788, %v236
  %v790 = vadd.f32 %v789, %v241
  %v791 = vadd.f32 %v790, %v244
  %v792 = vadd.f32 %v791, %v249
  %v793 = vadd.f32 %v792, %v252
  %v794 = vadd.f32 %v793, %v257
  %v795 = vadd.f32 %v794, %v260
  %v796 = vadd.f32 %v795, %v265
  %v797 = vadd.f32 %v796, %v268
  %v798 = vadd.f32 %v797, %v273
  %v799 = vadd.f32 %v798, %v276
  %v800 = vadd.f32 %v799, %v281
  %v801 = vadd.f32 %v800, %v284
  %v802 = vadd.f32 %v801, %v289
  %v803 = vadd.f32 %v802, %v292
  %v804 = vadd.f32 %v803, %v297
  %v805 = vadd.f32 %v804, %v300
  %v806 = vadd.f32 %v805, %v305
  %v807 = vadd.f32 %v806, %v308
  %v808 = vadd.f32 %v807, %v313
  %v809 = vadd.f32 %v808, %v316
  %v810 = vadd.f32 %v809, %v321
  %v811 = vadd.f32 %v810, %v324
  %v812 = vadd.f32 %v811, %v329
  %v813 = vadd.f32 %v812, %v332
  %v814 = vadd.f32 %v813, %v337
  %v815 = vadd.f32 %v814, %v340
  %v816 = vadd.f32 %v815, %v345
  %v817 = vadd.f32 %v816, %v348
  %v818 = vadd.f32 %v817, %v353
  %v819 = vadd.f32 %v818, %v356
  %v820 = vadd.f32 %v819, %v361
  %v821 = vadd.f32 %v820, %v364
  %v822 = vadd.f32 %v821, %v369
  %v823 = vadd.f32 %v822, %v372
  %v824 = vadd.f32 %v823, %v377
  %v825 = vadd.f32 %v824, %v380
  %v826 = vadd.f32 %v825, %v385
  %v827 = vadd.f32 %v826, %v388
  %v828 = vadd.f32 %v827, %v393
  %v829 = vadd.f32 %v828, %v396
  %v830 = vadd.f32 %v829, %v401
  %v831 = vadd.f32 %v830, %v404
  %v832 = vadd.f32 %v831, %v409
  %v833 = vadd.f32 %v832, %v412
  %v834 = vadd.f32 %v833, %v417
  %v835 = vadd.f32 %v834, %v420
  %v836 = vadd.f32 %v835, %v425
  %v837 = vadd.f32 %v836, %v428
  %v838 = vadd.f32 %v837, %v433
  %v839 = vadd.f32 %v838, %v436
  %v840 = vadd.f32 %v839, %v441
  %v841 = vadd.f32 %v840, %v444
  %v842 = vadd.f32 %v841, %v449
  %v843 = vadd.f32 %v842, %v452
  %v844 = vadd.f32 %v843, %v457
  %v845 = vadd.f32 %v844, %v460
  %v846 = vrot.slane %v845, 4
  %v847 = vadd.f32 %v845, %v846
  %v848 = vrot.slane %v847, 2
  %v849 = vadd.f32 %v847, %v848
  %v850 = vrot.slane %v849, 1
  %v851 = vadd.f32 %v849, %v850
  %v852 = vmul.f32 %v209, %v209
  %v853 = vmul.f32 %v212, %v212
  %v854 = vmul.f32 %v217, %v217
  %v855 = vmul.f32 %v220, %v220
  %v856 = vmul.f32 %v225, %v225
  %v857 = vmul.f32 %v228, %v228
  %v858 = vmul.f32 %v233, %v233
  %v859 = vmul.f32 %v236, %v236
  %v860 = vmul.f32 %v241, %v241
  %v861 = vmul.f32 %v244, %v244
  %v862 = vmul.f32 %v249, %v249
  %v863 = vmul.f32 %v252, %v252
  %v864 = vmul.f32 %v257, %v257
  %v865 = vmul.f32 %v260, %v260
  %v866 = vmul.f32 %v265, %v265
  %v867 = vmul.f32 %v268, %v268
  %v868 = vmul.f32 %v273, %v273
  %v869 = vmul.f32 %v276, %v276
  %v870 = vmul.f32 %v281, %v281
  %v871 = vmul.f32 %v284, %v284
  %v872 = vmul.f32 %v289, %v289
  %v873 = vmul.f32 %v292, %v292
  %v874 = vmul.f32 %v297, %v297
  %v875 = vmul.f32 %v300, %v300
  %v876 = vmul.f32 %v305, %v305
  %v877 = vmul.f32 %v308, %v308
  %v878 = vmul.f32 %v313, %v313
  %v879 = vmul.f32 %v316, %v316
  %v880 = vmul.f32 %v321, %v321
  %v881 = vmul.f32 %v324, %v324
  %v882 = vmul.f32 %v329, %v329
  %v883 = vmul.f32 %v332, %v332
  %v884 = vmul.f32 %v337, %v337
  %v885 = vmul.f32 %v340, %v340
  %v886 = vmul.f32 %v345, %v345
  %v887 = vmul.f32 %v348, %v348
  %v888 = vmul.f32 %v353, %v353
  %v889 = vmul.f32 %v356, %v356
  %v890 = vmul.f32 %v361, %v361
  %v891 = vmul.f32 %v364, %v364
  %v892 = vmul.f32 %v369, %v369
  %v893 = vmul.f32 %v372, %v372
  %v894 = vmul.f32 %v377, %v377
  %v895 = vmul.f32 %v380, %v380
  %v896 = vmul.f32 %v385, %v385
  %v897 = vmul.f32 %v388, %v388
  %v898 = vmul.f32 %v393, %v393
  %v899 = vmul.f32 %v396, %v396
  %v900 = vmul.f32 %v401, %v401
  %v901 = vmul.f32 %v404, %v404
  %v902 = vmul.f32 %v409, %v409
  %v903 = vmul.f32 %v412, %v412
  %v904 = vmul.f32 %v417, %v417
  %v905 = vmul.f32 %v420, %v420
  %v906 = vmul.f32 %v425, %v425
  %v907 = vmul.f32 %v428, %v428
  %v908 = vmul.f32 %v433, %v433
  %v909 = vmul.f32 %v436, %v436
  %v910 = vmul.f32 %v441, %v441
  %v911 = vmul.f32 %v444, %v444
  %v912 = vmul.f32 %v449, %v449
  %v913 = vmul.f32 %v452, %v452
  %v914 = vmul.f32 %v457, %v457
  %v915 = vmul.f32 %v460, %v460
  %v916 = vadd.f32 %v852, %v853
  %v917 = vadd.f32 %v916, %v854
  %v918 = vadd.f32 %v917, %v855
  %v919 = vadd.f32 %v918, %v856
  %v920 = vadd.f32 %v919, %v857
  %v921 = vadd.f32 %v920, %v858
  %v922 = vadd.f32 %v921, %v859
  %v923 = vadd.f32 %v922, %v860
  %v924 = vadd.f32 %v923, %v861
  %v925 = vadd.f32 %v924, %v862
  %v926 = vadd.f32 %v925, %v863
  %v927 = vadd.f32 %v926, %v864
  %v928 = vadd.f32 %v927, %v865
  %v929 = vadd.f32 %v928, %v866
  %v930 = vadd.f32 %v929, %v867
  %v931 = vadd.f32 %v930, %v868
  %v932 = vadd.f32 %v931, %v869
  %v933 = vadd.f32 %v932, %v870
  %v934 = vadd.f32 %v933, %v871
  %v935 = vadd.f32 %v934, %v872
  %v936 = vadd.f32 %v935, %v873
  %v937 = vadd.f32 %v936, %v874
  %v938 = vadd.f32 %v937, %v875
  %v939 = vadd.f32 %v938, %v876
  %v940 = vadd.f32 %v939, %v877
  %v941 = vadd.f32 %v940, %v878
  %v942 = vadd.f32 %v941, %v879
  %v943 = vadd.f32 %v942, %v880
  %v944 = vadd.f32 %v943, %v881
  %v945 = vadd.f32 %v944, %v882
  %v946 = vadd.f32 %v945, %v883
  %v947 = vadd.f32 %v946, %v884
  %v948 = vadd.f32 %v947, %v885
  %v949 = vadd.f32 %v948, %v886
  %v950 = vadd.f32 %v949, %v887
  %v951 = vadd.f32 %v950, %v888
  %v952 = vadd.f32 %v951, %v889
  %v953 = vadd.f32 %v952, %v890
  %v954 = vadd.f32 %v953, %v891
  %v955 = vadd.f32 %v954, %v892
  %v956 = vadd.f32 %v955, %v893
  %v957 = vadd.f32 %v956, %v894
  %v958 = vadd.f32 %v957, %v895
  %v959 = vadd.f32 %v958, %v896
  %v960 = vadd.f32 %v959, %v897
  %v961 = vadd.f32 %v960, %v898
  %v962 = vadd.f32 %v961, %v899
  %v963 = vadd.f32 %v962, %v900
  %v964 = vadd.f32 %v963, %v901
  %v965 = vadd.f32 %v964, %v902
  %v966 = vadd.f32 %v965, %v903
  %v967 = vadd.f32 %v966, %v904
  %v968 = vadd.f32 %v967, %v905
  %v969 = vadd.f32 %v968, %v906
  %v970 = vadd.f32 %v969, %v907
  %v971 = vadd.f32 %v970, %v908
  %v972 = vadd.f32 %v971, %v909
  %v973 = vadd.f32 %v972, %v910
  %v974 = vadd.f32 %v973, %v911
  %v975 = vadd.f32 %v974, %v912
  %v976 = vadd.f32 %v975, %v913
  %v977 = vadd.f32 %v976, %v914
  %v978 = vadd.f32 %v977, %v915
  %v979 = vrot.slane %v978, 4
  %v980 = vadd.f32 %v978, %v979
  %v981 = vrot.slane %v980, 2
  %v982 = vadd.f32 %v980, %v981
  %v983 = vrot.slane %v982, 1
  %v984 = vadd.f32 %v982, %v983
  %vm985 = vcmask 1040384
  %v986 = vsel %vm985, %v851, %v984
  %987 = vst [vmem:[%s3] sm:$0x3] %v986
  // Predicated region
  $region10: #{bottleneck_forward.4} parent=0 // pred_check
    _
  $region11: #{bottleneck_forward.4} parent=0 // pred_check_branch
    %989 = sbr.rel (0) target = $region13
  $region12: #{bottleneck_forward.4} parent=0 // pred_region
    _
  $region13: #{bottleneck_forward.4} parent=0 // pred_fallthru
    _
  // Predicated region
  $region14: #{bottleneck_forward.4} parent=0 // pred_check
    _
  $region15: #{bottleneck_forward.4} parent=0 // pred_check_branch
    %991 = sbr.rel (0) target = $region17
  $region16: #{bottleneck_forward.4} parent=0 // pred_region
    _
  $region17: #{bottleneck_forward.4} parent=0 // pred_fallthru
    _
  // Predicated region
  $region18: #{bottleneck_forward.4} parent=0 // pred_check
    _
  $region19: #{bottleneck_forward.4} parent=0 // pred_check_branch
    %993 = sbr.rel (0) target = $region21
  $region20: #{bottleneck_forward.4} parent=0 // pred_region
    _
  $region21: #{bottleneck_forward.4} parent=0 // pred_fallthru
    _
  // Predicated region
  $region22: #{bottleneck_forward.4} parent=0 // pred_check
    _
  $region23: #{bottleneck_forward.4} parent=0 // pred_check_branch
    %995 = sbr.rel (0) target = $region25
  $region24: #{bottleneck_forward.4} parent=0 // pred_region
    _
  $region25: #{bottleneck_forward.4} parent=0 // pred_fallthru
    _

// kernel: bottleneck_forward.7
$region0: #{bottleneck_forward.7}
  #allocation0 [shape = 'u32[]', space=smem, size = 0x4, offset = 0x4, fixed_abs, tag = 'smem constant byte address 0x4 - core index']
  #allocation1 [shape = 'u32[144,128]{1,0:T(1,128)}', space=vmem, size = 0x12000, scoped, tag = 'internal scratch']
  %s0 = inlined_call_operand.vmem [shape: f32[512,128], index: 0, kind: input, shape index: {}]
  %s1 = inlined_call_operand.vmem [shape: f32[512,128], index: 1, kind: input, shape index: {}]
  %s2 = inlined_call_operand.vmem [shape: f32[1,128], index: 2, kind: input, shape index: {}]
  %s3 = inlined_call_operand.vmem [shape: f32[1,128], index: 3, kind: input, shape index: {}]
  %s4 = inlined_call_operand.vmem [shape: f32[512,128], index: 4, kind: output, shape index: {}]
  %s5 = sld [smem:[#allocation0]]
  $region26: #{bottleneck_forward.7} parent=0
    _
  %s7 = ssub.s32 1, %s5
  %s8 = scalar_select 0, %s7, %s5
  // Predicated region
  $region2: #{bottleneck_forward.7} parent=0 // pred_check
    _
  $region3: #{bottleneck_forward.7} parent=0 // pred_check_branch
    %10 = sbr.rel (0) target = $region5
  $region4: #{bottleneck_forward.7} parent=0 // pred_region
    _
  $region5: #{bottleneck_forward.7} parent=0 // pred_fallthru
    _
  // Predicated region
  $region6: #{bottleneck_forward.7} parent=0 // pred_check
    _
  $region7: #{bottleneck_forward.7} parent=0 // pred_check_branch
    %12 = sbr.rel (0) target = $region9
  $region8: #{bottleneck_forward.7} parent=0 // pred_region
    _
  $region9: #{bottleneck_forward.7} parent=0 // pred_fallthru
    _
  // Predicated region
  $region10: #{bottleneck_forward.7} parent=0 // pred_check
    _
  $region11: #{bottleneck_forward.7} parent=0 // pred_check_branch
    %14 = sbr.rel (0) target = $region13
  $region12: #{bottleneck_forward.7} parent=0 // pred_region
    _
  $region13: #{bottleneck_forward.7} parent=0 // pred_fallthru
    _
  // Predicated region
  $region14: #{bottleneck_forward.7} parent=0 // pred_check
    _
  $region15: #{bottleneck_forward.7} parent=0 // pred_check_branch
    %16 = sbr.rel (0) target = $region17
  $region16: #{bottleneck_forward.7} parent=0 // pred_region
    _
  $region17: #{bottleneck_forward.7} parent=0 // pred_fallthru
    _
  %v17 = vld [vmem:[%s0] sm:$0xff]
  %v18 = vld [vmem:[%s0 + $0x8] sm:$0xff]
  %v19 = vld [vmem:[%s0 + $0x10] sm:$0xff]
  %v20 = vld [vmem:[%s0 + $0x18] sm:$0xff]
  %v21 = vld [vmem:[%s0 + $0x20] sm:$0xff]
  %v22 = vld [vmem:[%s0 + $0x28] sm:$0xff]
  %v23 = vld [vmem:[%s0 + $0x30] sm:$0xff]
  %v24 = vld [vmem:[%s0 + $0x38] sm:$0xff]
  %v25 = vld [vmem:[%s0 + $0x40] sm:$0xff]
  %v26 = vld [vmem:[%s0 + $0x48] sm:$0xff]
  %v27 = vld [vmem:[%s0 + $0x50] sm:$0xff]
  %v28 = vld [vmem:[%s0 + $0x58] sm:$0xff]
  %v29 = vld [vmem:[%s0 + $0x60] sm:$0xff]
  %v30 = vld [vmem:[%s0 + $0x68] sm:$0xff]
  %v31 = vld [vmem:[%s0 + $0x70] sm:$0xff]
  %v32 = vld [vmem:[%s0 + $0x78] sm:$0xff]
  %v33 = vld [vmem:[%s0 + $0x80] sm:$0xff]
  %v34 = vld [vmem:[%s0 + $0x88] sm:$0xff]
  %v35 = vld [vmem:[%s0 + $0x90] sm:$0xff]
  %v36 = vld [vmem:[%s0 + $0x98] sm:$0xff]
  %v37 = vld [vmem:[%s0 + $0xa0] sm:$0xff]
  %v38 = vld [vmem:[%s0 + $0xa8] sm:$0xff]
  %v39 = vld [vmem:[%s0 + $0xb0] sm:$0xff]
  %v40 = vld [vmem:[%s0 + $0xb8] sm:$0xff]
  %v41 = vld [vmem:[%s0 + $0xc0] sm:$0xff]
  %v42 = vld [vmem:[%s0 + $0xc8] sm:$0xff]
  %v43 = vld [vmem:[%s0 + $0xd0] sm:$0xff]
  %v44 = vld [vmem:[%s0 + $0xd8] sm:$0xff]
  %v45 = vld [vmem:[%s0 + $0xe0] sm:$0xff]
  %v46 = vld [vmem:[%s0 + $0xe8] sm:$0xff]
  %v47 = vld [vmem:[%s0 + $0xf0] sm:$0xff]
  %v48 = vld [vmem:[%s0 + $0xf8] sm:$0xff]
  %v49 = vld [vmem:[%s0 + $0x100] sm:$0xff]
  %v50 = vld [vmem:[%s0 + $0x108] sm:$0xff]
  %v51 = vld [vmem:[%s0 + $0x110] sm:$0xff]
  %v52 = vld [vmem:[%s0 + $0x118] sm:$0xff]
  %v53 = vld [vmem:[%s0 + $0x120] sm:$0xff]
  %v54 = vld [vmem:[%s0 + $0x128] sm:$0xff]
  %v55 = vld [vmem:[%s0 + $0x130] sm:$0xff]
  %v56 = vld [vmem:[%s0 + $0x138] sm:$0xff]
  %v57 = vld [vmem:[%s0 + $0x140] sm:$0xff]
  %v58 = vld [vmem:[%s0 + $0x148] sm:$0xff]
  %v59 = vld [vmem:[%s0 + $0x150] sm:$0xff]
  %v60 = vld [vmem:[%s0 + $0x158] sm:$0xff]
  %v61 = vld [vmem:[%s0 + $0x160] sm:$0xff]
  %v62 = vld [vmem:[%s0 + $0x168] sm:$0xff]
  %v63 = vld [vmem:[%s0 + $0x170] sm:$0xff]
  %v64 = vld [vmem:[%s0 + $0x178] sm:$0xff]
  %v65 = vld [vmem:[%s0 + $0x180] sm:$0xff]
  %v66 = vld [vmem:[%s0 + $0x188] sm:$0xff]
  %v67 = vld [vmem:[%s0 + $0x190] sm:$0xff]
  %v68 = vld [vmem:[%s0 + $0x198] sm:$0xff]
  %v69 = vld [vmem:[%s0 + $0x1a0] sm:$0xff]
  %v70 = vld [vmem:[%s0 + $0x1a8] sm:$0xff]
  %v71 = vld [vmem:[%s0 + $0x1b0] sm:$0xff]
  %v72 = vld [vmem:[%s0 + $0x1b8] sm:$0xff]
  %v73 = vld [vmem:[%s0 + $0x1c0] sm:$0xff]
  %v74 = vld [vmem:[%s0 + $0x1c8] sm:$0xff]
  %v75 = vld [vmem:[%s0 + $0x1d0] sm:$0xff]
  %v76 = vld [vmem:[%s0 + $0x1d8] sm:$0xff]
  %v77 = vld [vmem:[%s0 + $0x1e0] sm:$0xff]
  %v78 = vld [vmem:[%s0 + $0x1e8] sm:$0xff]
  %v79 = vld [vmem:[%s0 + $0x1f0] sm:$0xff]
  %v80 = vld [vmem:[%s0 + $0x1f8] sm:$0xff]
  %v81 = vld [vmem:[%s2] sm:$0x1]
  %v83 = vlaneseq
  %v84 = vshrl.u32 %v83, 7
  %v85 = vsub.s32 0, %v84
  %v86 = vrot.slane %v81, %v85
  %v88 = vmul.f32 %v17, %v86
  %v89 = vmul.f32 %v18, %v86
  %v90 = vmul.f32 %v19, %v86
  %v91 = vmul.f32 %v20, %v86
  %v92 = vmul.f32 %v21, %v86
  %v93 = vmul.f32 %v22, %v86
  %v94 = vmul.f32 %v23, %v86
  %v95 = vmul.f32 %v24, %v86
  %v96 = vmul.f32 %v25, %v86
  %v97 = vmul.f32 %v26, %v86
  %v98 = vmul.f32 %v27, %v86
  %v99 = vmul.f32 %v28, %v86
  %v100 = vmul.f32 %v29, %v86
  %v101 = vmul.f32 %v30, %v86
  %v102 = vmul.f32 %v31, %v86
  %v103 = vmul.f32 %v32, %v86
  %v104 = vmul.f32 %v33, %v86
  %v105 = vmul.f32 %v34, %v86
  %v106 = vmul.f32 %v35, %v86
  %v107 = vmul.f32 %v36, %v86
  %v108 = vmul.f32 %v37, %v86
  %v109 = vmul.f32 %v38, %v86
  %v110 = vmul.f32 %v39, %v86
  %v111 = vmul.f32 %v40, %v86
  %v112 = vmul.f32 %v41, %v86
  %v113 = vmul.f32 %v42, %v86
  %v114 = vmul.f32 %v43, %v86
  %v115 = vmul.f32 %v44, %v86
  %v116 = vmul.f32 %v45, %v86
  %v117 = vmul.f32 %v46, %v86
  %v118 = vmul.f32 %v47, %v86
  %v119 = vmul.f32 %v48, %v86
  %v120 = vmul.f32 %v49, %v86
  %v121 = vmul.f32 %v50, %v86
  %v122 = vmul.f32 %v51, %v86
  %v123 = vmul.f32 %v52, %v86
  %v124 = vmul.f32 %v53, %v86
  %v125 = vmul.f32 %v54, %v86
  %v126 = vmul.f32 %v55, %v86
  %v127 = vmul.f32 %v56, %v86
  %v128 = vmul.f32 %v57, %v86
  %v129 = vmul.f32 %v58, %v86
  %v130 = vmul.f32 %v59, %v86
  %v131 = vmul.f32 %v60, %v86
  %v132 = vmul.f32 %v61, %v86
  %v133 = vmul.f32 %v62, %v86
  %v134 = vmul.f32 %v63, %v86
  %v135 = vmul.f32 %v64, %v86
  %v136 = vmul.f32 %v65, %v86
  %v137 = vmul.f32 %v66, %v86
  %v138 = vmul.f32 %v67, %v86
  %v139 = vmul.f32 %v68, %v86
  %v140 = vmul.f32 %v69, %v86
  %v141 = vmul.f32 %v70, %v86
  %v142 = vmul.f32 %v71, %v86
  %v143 = vmul.f32 %v72, %v86
  %v144 = vmul.f32 %v73, %v86
  %v145 = vmul.f32 %v74, %v86
  %v146 = vmul.f32 %v75, %v86
  %v147 = vmul.f32 %v76, %v86
  %v148 = vmul.f32 %v77, %v86
  %v149 = vmul.f32 %v78, %v86
  %v150 = vmul.f32 %v79, %v86
  %v151 = vmul.f32 %v80, %v86
  %v152 = vld [vmem:[%s3] sm:$0x1]
  %v154 = vlaneseq
  %v155 = vshrl.u32 %v154, 7
  %v156 = vsub.s32 0, %v155
  %v157 = vrot.slane %v152, %v156
  %v159 = vadd.f32 %v88, %v157
  %v160 = vadd.f32 %v89, %v157
  %v161 = vadd.f32 %v90, %v157
  %v162 = vadd.f32 %v91, %v157
  %v163 = vadd.f32 %v92, %v157
  %v164 = vadd.f32 %v93, %v157
  %v165 = vadd.f32 %v94, %v157
  %v166 = vadd.f32 %v95, %v157
  %v167 = vadd.f32 %v96, %v157
  %v168 = vadd.f32 %v97, %v157
  %v169 = vadd.f32 %v98, %v157
  %v170 = vadd.f32 %v99, %v157
  %v171 = vadd.f32 %v100, %v157
  %v172 = vadd.f32 %v101, %v157
  %v173 = vadd.f32 %v102, %v157
  %v174 = vadd.f32 %v103, %v157
  %v175 = vadd.f32 %v104, %v157
  %v176 = vadd.f32 %v105, %v157
  %v177 = vadd.f32 %v106, %v157
  %v178 = vadd.f32 %v107, %v157
  %v179 = vadd.f32 %v108, %v157
  %v180 = vadd.f32 %v109, %v157
  %v181 = vadd.f32 %v110, %v157
  %v182 = vadd.f32 %v111, %v157
  %v183 = vadd.f32 %v112, %v157
  %v184 = vadd.f32 %v113, %v157
  %v185 = vadd.f32 %v114, %v157
  %v186 = vadd.f32 %v115, %v157
  %v187 = vadd.f32 %v116, %v157
  %v188 = vadd.f32 %v117, %v157
  %v189 = vadd.f32 %v118, %v157
  %v190 = vadd.f32 %v119, %v157
  %v191 = vadd.f32 %v120, %v157
  %v192 = vadd.f32 %v121, %v157
  %v193 = vadd.f32 %v122, %v157
  %v194 = vadd.f32 %v123, %v157
  %v195 = vadd.f32 %v124, %v157
  %v196 = vadd.f32 %v125, %v157
  %v197 = vadd.f32 %v126, %v157
  %v198 = vadd.f32 %v127, %v157
  %v199 = vadd.f32 %v128, %v157
  %v200 = vadd.f32 %v129, %v157
  %v201 = vadd.f32 %v130, %v157
  %v202 = vadd.f32 %v131, %v157
  %v203 = vadd.f32 %v132, %v157
  %v204 = vadd.f32 %v133, %v157
  %v205 = vadd.f32 %v134, %v157
  %v206 = vadd.f32 %v135, %v157
  %v207 = vadd.f32 %v136, %v157
  %v208 = vadd.f32 %v137, %v157
  %v209 = vadd.f32 %v138, %v157
  %v210 = vadd.f32 %v139, %v157
  %v211 = vadd.f32 %v140, %v157
  %v212 = vadd.f32 %v141, %v157
  %v213 = vadd.f32 %v142, %v157
  %v214 = vadd.f32 %v143, %v157
  %v215 = vadd.f32 %v144, %v157
  %v216 = vadd.f32 %v145, %v157
  %v217 = vadd.f32 %v146, %v157
  %v218 = vadd.f32 %v147, %v157
  %v219 = vadd.f32 %v148, %v157
  %v220 = vadd.f32 %v149, %v157
  %v221 = vadd.f32 %v150, %v157
  %v222 = vadd.f32 %v151, %v157
  %v223 = vld [vmem:[%s1] sm:$0xff]
  %v224 = vld [vmem:[%s1 + $0x8] sm:$0xff]
  %v225 = vld [vmem:[%s1 + $0x10] sm:$0xff]
  %v226 = vld [vmem:[%s1 + $0x18] sm:$0xff]
  %v227 = vld [vmem:[%s1 + $0x20] sm:$0xff]
  %v228 = vld [vmem:[%s1 + $0x28] sm:$0xff]
  %v229 = vld [vmem:[%s1 + $0x30] sm:$0xff]
  %v230 = vld [vmem:[%s1 + $0x38] sm:$0xff]
  %v231 = vld [vmem:[%s1 + $0x40] sm:$0xff]
  %v232 = vld [vmem:[%s1 + $0x48] sm:$0xff]
  %v233 = vld [vmem:[%s1 + $0x50] sm:$0xff]
  %v234 = vld [vmem:[%s1 + $0x58] sm:$0xff]
  %v235 = vld [vmem:[%s1 + $0x60] sm:$0xff]
  %v236 = vld [vmem:[%s1 + $0x68] sm:$0xff]
  %v237 = vld [vmem:[%s1 + $0x70] sm:$0xff]
  %v238 = vld [vmem:[%s1 + $0x78] sm:$0xff]
  %v239 = vld [vmem:[%s1 + $0x80] sm:$0xff]
  %v240 = vld [vmem:[%s1 + $0x88] sm:$0xff]
  %v241 = vld [vmem:[%s1 + $0x90] sm:$0xff]
  %v242 = vld [vmem:[%s1 + $0x98] sm:$0xff]
  %v243 = vld [vmem:[%s1 + $0xa0] sm:$0xff]
  %v244 = vld [vmem:[%s1 + $0xa8] sm:$0xff]
  %v245 = vld [vmem:[%s1 + $0xb0] sm:$0xff]
  %v246 = vld [vmem:[%s1 + $0xb8] sm:$0xff]
  %v247 = vld [vmem:[%s1 + $0xc0] sm:$0xff]
  %v248 = vld [vmem:[%s1 + $0xc8] sm:$0xff]
  %v249 = vld [vmem:[%s1 + $0xd0] sm:$0xff]
  %v250 = vld [vmem:[%s1 + $0xd8] sm:$0xff]
  %v251 = vld [vmem:[%s1 + $0xe0] sm:$0xff]
  %v252 = vld [vmem:[%s1 + $0xe8] sm:$0xff]
  %v253 = vld [vmem:[%s1 + $0xf0] sm:$0xff]
  %v254 = vld [vmem:[%s1 + $0xf8] sm:$0xff]
  %v255 = vld [vmem:[%s1 + $0x100] sm:$0xff]
  %v256 = vld [vmem:[%s1 + $0x108] sm:$0xff]
  %v257 = vld [vmem:[%s1 + $0x110] sm:$0xff]
  %v258 = vld [vmem:[%s1 + $0x118] sm:$0xff]
  %v259 = vld [vmem:[%s1 + $0x120] sm:$0xff]
  %v260 = vld [vmem:[%s1 + $0x128] sm:$0xff]
  %v261 = vld [vmem:[%s1 + $0x130] sm:$0xff]
  %v262 = vld [vmem:[%s1 + $0x138] sm:$0xff]
  %v263 = vld [vmem:[%s1 + $0x140] sm:$0xff]
  %v264 = vld [vmem:[%s1 + $0x148] sm:$0xff]
  %v265 = vld [vmem:[%s1 + $0x150] sm:$0xff]
  %v266 = vld [vmem:[%s1 + $0x158] sm:$0xff]
  %v267 = vld [vmem:[%s1 + $0x160] sm:$0xff]
  %v268 = vld [vmem:[%s1 + $0x168] sm:$0xff]
  %v269 = vld [vmem:[%s1 + $0x170] sm:$0xff]
  %v270 = vld [vmem:[%s1 + $0x178] sm:$0xff]
  %v271 = vld [vmem:[%s1 + $0x180] sm:$0xff]
  %v272 = vld [vmem:[%s1 + $0x188] sm:$0xff]
  %v273 = vld [vmem:[%s1 + $0x190] sm:$0xff]
  %v274 = vld [vmem:[%s1 + $0x198] sm:$0xff]
  %v275 = vld [vmem:[%s1 + $0x1a0] sm:$0xff]
  %v276 = vld [vmem:[%s1 + $0x1a8] sm:$0xff]
  %v277 = vld [vmem:[%s1 + $0x1b0] sm:$0xff]
  %v278 = vld [vmem:[%s1 + $0x1b8] sm:$0xff]
  %v279 = vld [vmem:[%s1 + $0x1c0] sm:$0xff]
  %v280 = vld [vmem:[%s1 + $0x1c8] sm:$0xff]
  %v281 = vld [vmem:[%s1 + $0x1d0] sm:$0xff]
  %v282 = vld [vmem:[%s1 + $0x1d8] sm:$0xff]
  %v283 = vld [vmem:[%s1 + $0x1e0] sm:$0xff]
  %v284 = vld [vmem:[%s1 + $0x1e8] sm:$0xff]
  %v285 = vld [vmem:[%s1 + $0x1f0] sm:$0xff]
  %v286 = vld [vmem:[%s1 + $0x1f8] sm:$0xff]
  %v287 = vadd.f32 %v159, %v223
  %v288 = vadd.f32 %v160, %v224
  %v289 = vadd.f32 %v161, %v225
  %v290 = vadd.f32 %v162, %v226
  %v291 = vadd.f32 %v163, %v227
  %v292 = vadd.f32 %v164, %v228
  %v293 = vadd.f32 %v165, %v229
  %v294 = vadd.f32 %v166, %v230
  %v295 = vadd.f32 %v167, %v231
  %v296 = vadd.f32 %v168, %v232
  %v297 = vadd.f32 %v169, %v233
  %v298 = vadd.f32 %v170, %v234
  %v299 = vadd.f32 %v171, %v235
  %v300 = vadd.f32 %v172, %v236
  %v301 = vadd.f32 %v173, %v237
  %v302 = vadd.f32 %v174, %v238
  %v303 = vadd.f32 %v175, %v239
  %v304 = vadd.f32 %v176, %v240
  %v305 = vadd.f32 %v177, %v241
  %v306 = vadd.f32 %v178, %v242
  %v307 = vadd.f32 %v179, %v243
  %v308 = vadd.f32 %v180, %v244
  %v309 = vadd.f32 %v181, %v245
  %v310 = vadd.f32 %v182, %v246
  %v311 = vadd.f32 %v183, %v247
  %v312 = vadd.f32 %v184, %v248
  %v313 = vadd.f32 %v185, %v249
  %v314 = vadd.f32 %v186, %v250
  %v315 = vadd.f32 %v187, %v251
  %v316 = vadd.f32 %v188, %v252
  %v317 = vadd.f32 %v189, %v253
  %v318 = vadd.f32 %v190, %v254
  %v319 = vadd.f32 %v191, %v255
  %v320 = vadd.f32 %v192, %v256
  %v321 = vadd.f32 %v193, %v257
  %v322 = vadd.f32 %v194, %v258
  %v323 = vadd.f32 %v195, %v259
  %v324 = vadd.f32 %v196, %v260
  %v325 = vadd.f32 %v197, %v261
  %v326 = vadd.f32 %v198, %v262
  %v327 = vadd.f32 %v199, %v263
  %v328 = vadd.f32 %v200, %v264
  %v329 = vadd.f32 %v201, %v265
  %v330 = vadd.f32 %v202, %v266
  %v331 = vadd.f32 %v203, %v267
  %v332 = vadd.f32 %v204, %v268
  %v333 = vadd.f32 %v205, %v269
  %v334 = vadd.f32 %v206, %v270
  %v335 = vadd.f32 %v207, %v271
  %v336 = vadd.f32 %v208, %v272
  %v337 = vadd.f32 %v209, %v273
  %v338 = vadd.f32 %v210, %v274
  %v339 = vadd.f32 %v211, %v275
  %v340 = vadd.f32 %v212, %v276
  %v341 = vadd.f32 %v213, %v277
  %v342 = vadd.f32 %v214, %v278
  %v343 = vadd.f32 %v215, %v279
  %v344 = vadd.f32 %v216, %v280
  %v345 = vadd.f32 %v217, %v281
  %v346 = vadd.f32 %v218, %v282
  %v347 = vadd.f32 %v219, %v283
  %v348 = vadd.f32 %v220, %v284
  %v349 = vadd.f32 %v221, %v285
  %v350 = vadd.f32 %v222, %v286
  %v351 = vmax.f32 %v287, 0.0
  %v352 = vmax.f32 %v288, 0.0
  %v353 = vmax.f32 %v289, 0.0
  %v354 = vmax.f32 %v290, 0.0
  %v355 = vmax.f32 %v291, 0.0
  %v356 = vmax.f32 %v292, 0.0
  %v357 = vmax.f32 %v293, 0.0
  %v358 = vmax.f32 %v294, 0.0
  %v359 = vmax.f32 %v295, 0.0
  %v360 = vmax.f32 %v296, 0.0
  %v361 = vmax.f32 %v297, 0.0
  %v362 = vmax.f32 %v298, 0.0
  %v363 = vmax.f32 %v299, 0.0
  %v364 = vmax.f32 %v300, 0.0
  %v365 = vmax.f32 %v301, 0.0
  %v366 = vmax.f32 %v302, 0.0
  %v367 = vmax.f32 %v303, 0.0
  %v368 = vmax.f32 %v304, 0.0
  %v369 = vmax.f32 %v305, 0.0
  %v370 = vmax.f32 %v306, 0.0
  %v371 = vmax.f32 %v307, 0.0
  %v372 = vmax.f32 %v308, 0.0
  %v373 = vmax.f32 %v309, 0.0
  %v374 = vmax.f32 %v310, 0.0
  %v375 = vmax.f32 %v311, 0.0
  %v376 = vmax.f32 %v312, 0.0
  %v377 = vmax.f32 %v313, 0.0
  %v378 = vmax.f32 %v314, 0.0
  %v379 = vmax.f32 %v315, 0.0
  %v380 = vmax.f32 %v316, 0.0
  %v381 = vmax.f32 %v317, 0.0
  %v382 = vmax.f32 %v318, 0.0
  %v383 = vmax.f32 %v319, 0.0
  %v384 = vmax.f32 %v320, 0.0
  %v385 = vmax.f32 %v321, 0.0
  %v386 = vmax.f32 %v322, 0.0
  %v387 = vmax.f32 %v323, 0.0
  %v388 = vmax.f32 %v324, 0.0
  %v389 = vmax.f32 %v325, 0.0
  %v390 = vmax.f32 %v326, 0.0
  %v391 = vmax.f32 %v327, 0.0
  %v392 = vmax.f32 %v328, 0.0
  %v393 = vmax.f32 %v329, 0.0
  %v394 = vmax.f32 %v330, 0.0
  %v395 = vmax.f32 %v331, 0.0
  %v396 = vmax.f32 %v332, 0.0
  %v397 = vmax.f32 %v333, 0.0
  %v398 = vmax.f32 %v334, 0.0
  %v399 = vmax.f32 %v335, 0.0
  %v400 = vmax.f32 %v336, 0.0
  %v401 = vmax.f32 %v337, 0.0
  %v402 = vmax.f32 %v338, 0.0
  %v403 = vmax.f32 %v339, 0.0
  %v404 = vmax.f32 %v340, 0.0
  %v405 = vmax.f32 %v341, 0.0
  %v406 = vmax.f32 %v342, 0.0
  %v407 = vmax.f32 %v343, 0.0
  %v408 = vmax.f32 %v344, 0.0
  %v409 = vmax.f32 %v345, 0.0
  %v410 = vmax.f32 %v346, 0.0
  %v411 = vmax.f32 %v347, 0.0
  %v412 = vmax.f32 %v348, 0.0
  %v413 = vmax.f32 %v349, 0.0
  %v414 = vmax.f32 %v350, 0.0
  %415 = vst [vmem:[%s4] sm:$0xff] %v351
  %416 = vst [vmem:[%s4 + $0x8] sm:$0xff] %v352
  %417 = vst [vmem:[%s4 + $0x10] sm:$0xff] %v353
  %418 = vst [vmem:[%s4 + $0x18] sm:$0xff] %v354
  %419 = vst [vmem:[%s4 + $0x20] sm:$0xff] %v355
  %420 = vst [vmem:[%s4 + $0x28] sm:$0xff] %v356
  %421 = vst [vmem:[%s4 + $0x30] sm:$0xff] %v357
  %422 = vst [vmem:[%s4 + $0x38] sm:$0xff] %v358
  %423 = vst [vmem:[%s4 + $0x40] sm:$0xff] %v359
  %424 = vst [vmem:[%s4 + $0x48] sm:$0xff] %v360
  %425 = vst [vmem:[%s4 + $0x50] sm:$0xff] %v361
  %426 = vst [vmem:[%s4 + $0x58] sm:$0xff] %v362
  %427 = vst [vmem:[%s4 + $0x60] sm:$0xff] %v363
  %428 = vst [vmem:[%s4 + $0x68] sm:$0xff] %v364
  %429 = vst [vmem:[%s4 + $0x70] sm:$0xff] %v365
  %430 = vst [vmem:[%s4 + $0x78] sm:$0xff] %v366
  %431 = vst [vmem:[%s4 + $0x80] sm:$0xff] %v367
  %432 = vst [vmem:[%s4 + $0x88] sm:$0xff] %v368
  %433 = vst [vmem:[%s4 + $0x90] sm:$0xff] %v369
  %434 = vst [vmem:[%s4 + $0x98] sm:$0xff] %v370
  %435 = vst [vmem:[%s4 + $0xa0] sm:$0xff] %v371
  %436 = vst [vmem:[%s4 + $0xa8] sm:$0xff] %v372
  %437 = vst [vmem:[%s4 + $0xb0] sm:$0xff] %v373
  %438 = vst [vmem:[%s4 + $0xb8] sm:$0xff] %v374
  %439 = vst [vmem:[%s4 + $0xc0] sm:$0xff] %v375
  %440 = vst [vmem:[%s4 + $0xc8] sm:$0xff] %v376
  %441 = vst [vmem:[%s4 + $0xd0] sm:$0xff] %v377
  %442 = vst [vmem:[%s4 + $0xd8] sm:$0xff] %v378
  %443 = vst [vmem:[%s4 + $0xe0] sm:$0xff] %v379
  %444 = vst [vmem:[%s4 + $0xe8] sm:$0xff] %v380
  %445 = vst [vmem:[%s4 + $0xf0] sm:$0xff] %v381
  %446 = vst [vmem:[%s4 + $0xf8] sm:$0xff] %v382
  %447 = vst [vmem:[%s4 + $0x100] sm:$0xff] %v383
  %448 = vst [vmem:[%s4 + $0x108] sm:$0xff] %v384
  %449 = vst [vmem:[%s4 + $0x110] sm:$0xff] %v385
  %450 = vst [vmem:[%s4 + $0x118] sm:$0xff] %v386
  %451 = vst [vmem:[%s4 + $0x120] sm:$0xff] %v387
  %452 = vst [vmem:[%s4 + $0x128] sm:$0xff] %v388
  %453 = vst [vmem:[%s4 + $0x130] sm:$0xff] %v389
  %454 = vst [vmem:[%s4 + $0x138] sm:$0xff] %v390
  %455 = vst [vmem:[%s4 + $0x140] sm:$0xff] %v391
  %456 = vst [vmem:[%s4 + $0x148] sm:$0xff] %v392
  %457 = vst [vmem:[%s4 + $0x150] sm:$0xff] %v393
  %458 = vst [vmem:[%s4 + $0x158] sm:$0xff] %v394
  %459 = vst [vmem:[%s4 + $0x160] sm:$0xff] %v395
  %460 = vst [vmem:[%s4 + $0x168] sm:$0xff] %v396
  %461 = vst [vmem:[%s4 + $0x170] sm:$0xff] %v397
  %462 = vst [vmem:[%s4 + $0x178] sm:$0xff] %v398
  %463 = vst [vmem:[%s4 + $0x180] sm:$0xff] %v399
  %464 = vst [vmem:[%s4 + $0x188] sm:$0xff] %v400
  %465 = vst [vmem:[%s4 + $0x190] sm:$0xff] %v401
  %466 = vst [vmem:[%s4 + $0x198] sm:$0xff] %v402
  %467 = vst [vmem:[%s4 + $0x1a0] sm:$0xff] %v403
  %468 = vst [vmem:[%s4 + $0x1a8] sm:$0xff] %v404
  %469 = vst [vmem:[%s4 + $0x1b0] sm:$0xff] %v405
  %470 = vst [vmem:[%s4 + $0x1b8] sm:$0xff] %v406
  %471 = vst [vmem:[%s4 + $0x1c0] sm:$0xff] %v407
  %472 = vst [vmem:[%s4 + $0x1c8] sm:$0xff] %v408
  %473 = vst [vmem:[%s4 + $0x1d0] sm:$0xff] %v409
  %474 = vst [vmem:[%s4 + $0x1d8] sm:$0xff] %v410
  %475 = vst [vmem:[%s4 + $0x1e0] sm:$0xff] %v411
  %476 = vst [vmem:[%s4 + $0x1e8] sm:$0xff] %v412
  %477 = vst [vmem:[%s4 + $0x1f0] sm:$0xff] %v413
  %478 = vst [vmem:[%s4 + $0x1f8] sm:$0xff] %v414
  // Predicated region
  $region18: #{bottleneck_forward.7} parent=0 // pred_check
    _
  $region19: #{bottleneck_forward.7} parent=0 // pred_check_branch
    %480 = sbr.rel (0) target = $region21
  $region20: #{bottleneck_forward.7} parent=0 // pred_region
    _
  $region21: #{bottleneck_forward.7} parent=0 // pred_fallthru
    _
  // Predicated region
  $region22: #{bottleneck_forward.7} parent=0 // pred_check
    _
  $region23: #{bottleneck_forward.7} parent=0 // pred_check_branch
    %482 = sbr.rel (0) target = $region25
  $region24: #{bottleneck_forward.7} parent=0 // pred_region
    _
  $region25: #{bottleneck_forward.7} parent=0 // pred_fallthru
    _

// kernel: bottleneck_forward.6
$region0: #{bottleneck_forward.6}
  #allocation0 [shape = 'u32[]', space=smem, size = 0x4, offset = 0x4, fixed_abs, tag = 'smem constant byte address 0x4 - core index']
  #allocation1 [shape = 'u32[144,128]{1,0:T(1,128)}', space=vmem, size = 0x12000, scoped, tag = 'internal scratch']
  %s0 = inlined_call_operand.vmem [shape: bf16[512,128], index: 0, kind: input, shape index: {}]
  %s1 = inlined_call_operand.vmem [shape: f32[1,128], index: 1, kind: input, shape index: {}]
  %s2 = inlined_call_operand.vmem [shape: f32[1,128], index: 2, kind: input, shape index: {}]
  %s3 = inlined_call_operand.vmem [shape: bf16[128,128], index: 3, kind: input, shape index: {}]
  %s4 = inlined_call_operand.vmem [shape: f32[512,128], index: 4, kind: output, shape index: {0}]
  %s5 = inlined_call_operand.vmem [shape: f32[1,2,128], index: 5, kind: output, shape index: {1}]
  %6 = xla_tuple %s4, %s5
  %s7 = sld [smem:[#allocation0]]
  $region34: #{bottleneck_forward.6} parent=0
    _
  %s9 = ssub.s32 1, %s7
  %s10 = scalar_select 0, %s9, %s7
  // Predicated region
  $region2: #{bottleneck_forward.6} parent=0 // pred_check
    _
  $region3: #{bottleneck_forward.6} parent=0 // pred_check_branch
    %12 = sbr.rel (0) target = $region5
  $region4: #{bottleneck_forward.6} parent=0 // pred_region
    _
  $region5: #{bottleneck_forward.6} parent=0 // pred_fallthru
    _
  // Predicated region
  $region6: #{bottleneck_forward.6} parent=0 // pred_check
    _
  $region7: #{bottleneck_forward.6} parent=0 // pred_check_branch
    %14 = sbr.rel (0) target = $region9
  $region8: #{bottleneck_forward.6} parent=0 // pred_region
    _
  $region9: #{bottleneck_forward.6} parent=0 // pred_fallthru
    _
  // Predicated region
  $region10: #{bottleneck_forward.6} parent=0 // pred_check
    _
  $region11: #{bottleneck_forward.6} parent=0 // pred_check_branch
    %16 = sbr.rel (0) target = $region13
  $region12: #{bottleneck_forward.6} parent=0 // pred_region
    _
  $region13: #{bottleneck_forward.6} parent=0 // pred_fallthru
    _
  // Predicated region
  $region14: #{bottleneck_forward.6} parent=0 // pred_check
    _
  $region15: #{bottleneck_forward.6} parent=0 // pred_check_branch
    %18 = sbr.rel (0) target = $region17
  $region16: #{bottleneck_forward.6} parent=0 // pred_region
    _
  $region17: #{bottleneck_forward.6} parent=0 // pred_fallthru
    _
  %v20 = vld [vmem:[%s0] sm:$0xf]
  %v21 = vld [vmem:[%s0 + $0x4] sm:$0xf]
  %v22 = vld [vmem:[%s0 + $0x8] sm:$0xf]
  %v23 = vld [vmem:[%s0 + $0xc] sm:$0xf]
  %v24 = vld [vmem:[%s0 + $0x10] sm:$0xf]
  %v25 = vld [vmem:[%s0 + $0x14] sm:$0xf]
  %v26 = vld [vmem:[%s0 + $0x18] sm:$0xf]
  %v27 = vld [vmem:[%s0 + $0x1c] sm:$0xf]
  %v28 = vld [vmem:[%s0 + $0x20] sm:$0xf]
  %v29 = vld [vmem:[%s0 + $0x24] sm:$0xf]
  %v30 = vld [vmem:[%s0 + $0x28] sm:$0xf]
  %v31 = vld [vmem:[%s0 + $0x2c] sm:$0xf]
  %v32 = vld [vmem:[%s0 + $0x30] sm:$0xf]
  %v33 = vld [vmem:[%s0 + $0x34] sm:$0xf]
  %v34 = vld [vmem:[%s0 + $0x38] sm:$0xf]
  %v35 = vld [vmem:[%s0 + $0x3c] sm:$0xf]
  %v36 = vld [vmem:[%s0 + $0x40] sm:$0xf]
  %v37 = vld [vmem:[%s0 + $0x44] sm:$0xf]
  %v38 = vld [vmem:[%s0 + $0x48] sm:$0xf]
  %v39 = vld [vmem:[%s0 + $0x4c] sm:$0xf]
  %v40 = vld [vmem:[%s0 + $0x50] sm:$0xf]
  %v41 = vld [vmem:[%s0 + $0x54] sm:$0xf]
  %v42 = vld [vmem:[%s0 + $0x58] sm:$0xf]
  %v43 = vld [vmem:[%s0 + $0x5c] sm:$0xf]
  %v44 = vld [vmem:[%s0 + $0x60] sm:$0xf]
  %v45 = vld [vmem:[%s0 + $0x64] sm:$0xf]
  %v46 = vld [vmem:[%s0 + $0x68] sm:$0xf]
  %v47 = vld [vmem:[%s0 + $0x6c] sm:$0xf]
  %v48 = vld [vmem:[%s0 + $0x70] sm:$0xf]
  %v49 = vld [vmem:[%s0 + $0x74] sm:$0xf]
  %v50 = vld [vmem:[%s0 + $0x78] sm:$0xf]
  %v51 = vld [vmem:[%s0 + $0x7c] sm:$0xf]
  %v52 = vld [vmem:[%s0 + $0x80] sm:$0xf]
  %v53 = vld [vmem:[%s0 + $0x84] sm:$0xf]
  %v54 = vld [vmem:[%s0 + $0x88] sm:$0xf]
  %v55 = vld [vmem:[%s0 + $0x8c] sm:$0xf]
  %v56 = vld [vmem:[%s0 + $0x90] sm:$0xf]
  %v57 = vld [vmem:[%s0 + $0x94] sm:$0xf]
  %v58 = vld [vmem:[%s0 + $0x98] sm:$0xf]
  %v59 = vld [vmem:[%s0 + $0x9c] sm:$0xf]
  %v60 = vld [vmem:[%s0 + $0xa0] sm:$0xf]
  %v61 = vld [vmem:[%s0 + $0xa4] sm:$0xf]
  %v62 = vld [vmem:[%s0 + $0xa8] sm:$0xf]
  %v63 = vld [vmem:[%s0 + $0xac] sm:$0xf]
  %v64 = vld [vmem:[%s0 + $0xb0] sm:$0xf]
  %v65 = vld [vmem:[%s0 + $0xb4] sm:$0xf]
  %v66 = vld [vmem:[%s0 + $0xb8] sm:$0xf]
  %v67 = vld [vmem:[%s0 + $0xbc] sm:$0xf]
  %v68 = vld [vmem:[%s0 + $0xc0] sm:$0xf]
  %v69 = vld [vmem:[%s0 + $0xc4] sm:$0xf]
  %v70 = vld [vmem:[%s0 + $0xc8] sm:$0xf]
  %v71 = vld [vmem:[%s0 + $0xcc] sm:$0xf]
  %v72 = vld [vmem:[%s0 + $0xd0] sm:$0xf]
  %v73 = vld [vmem:[%s0 + $0xd4] sm:$0xf]
  %v74 = vld [vmem:[%s0 + $0xd8] sm:$0xf]
  %v75 = vld [vmem:[%s0 + $0xdc] sm:$0xf]
  %v76 = vld [vmem:[%s0 + $0xe0] sm:$0xf]
  %v77 = vld [vmem:[%s0 + $0xe4] sm:$0xf]
  %v78 = vld [vmem:[%s0 + $0xe8] sm:$0xf]
  %v79 = vld [vmem:[%s0 + $0xec] sm:$0xf]
  %v80 = vld [vmem:[%s0 + $0xf0] sm:$0xf]
  %v81 = vld [vmem:[%s0 + $0xf4] sm:$0xf]
  %v82 = vld [vmem:[%s0 + $0xf8] sm:$0xf]
  %v83 = vld [vmem:[%s0 + $0xfc] sm:$0xf]
  %v84 = vunpack.c.l.bf16 %v20
  %v85 = vunpack.c.l.bf16 %v21
  %v86 = vunpack.c.l.bf16 %v22
  %v87 = vunpack.c.l.bf16 %v23
  %v88 = vunpack.c.l.bf16 %v24
  %v89 = vunpack.c.l.bf16 %v25
  %v90 = vunpack.c.l.bf16 %v26
  %v91 = vunpack.c.l.bf16 %v27
  %v92 = vunpack.c.l.bf16 %v28
  %v93 = vunpack.c.l.bf16 %v29
  %v94 = vunpack.c.l.bf16 %v30
  %v95 = vunpack.c.l.bf16 %v31
  %v96 = vunpack.c.l.bf16 %v32
  %v97 = vunpack.c.l.bf16 %v33
  %v98 = vunpack.c.l.bf16 %v34
  %v99 = vunpack.c.l.bf16 %v35
  %v100 = vunpack.c.l.bf16 %v36
  %v101 = vunpack.c.l.bf16 %v37
  %v102 = vunpack.c.l.bf16 %v38
  %v103 = vunpack.c.l.bf16 %v39
  %v104 = vunpack.c.l.bf16 %v40
  %v105 = vunpack.c.l.bf16 %v41
  %v106 = vunpack.c.l.bf16 %v42
  %v107 = vunpack.c.l.bf16 %v43
  %v108 = vunpack.c.l.bf16 %v44
  %v109 = vunpack.c.l.bf16 %v45
  %v110 = vunpack.c.l.bf16 %v46
  %v111 = vunpack.c.l.bf16 %v47
  %v112 = vunpack.c.l.bf16 %v48
  %v113 = vunpack.c.l.bf16 %v49
  %v114 = vunpack.c.l.bf16 %v50
  %v115 = vunpack.c.l.bf16 %v51
  %v116 = vunpack.c.l.bf16 %v52
  %v117 = vunpack.c.l.bf16 %v53
  %v118 = vunpack.c.l.bf16 %v54
  %v119 = vunpack.c.l.bf16 %v55
  %v120 = vunpack.c.l.bf16 %v56
  %v121 = vunpack.c.l.bf16 %v57
  %v122 = vunpack.c.l.bf16 %v58
  %v123 = vunpack.c.l.bf16 %v59
  %v124 = vunpack.c.l.bf16 %v60
  %v125 = vunpack.c.l.bf16 %v61
  %v126 = vunpack.c.l.bf16 %v62
  %v127 = vunpack.c.l.bf16 %v63
  %v128 = vunpack.c.l.bf16 %v64
  %v129 = vunpack.c.l.bf16 %v65
  %v130 = vunpack.c.l.bf16 %v66
  %v131 = vunpack.c.l.bf16 %v67
  %v132 = vunpack.c.l.bf16 %v68
  %v133 = vunpack.c.l.bf16 %v69
  %v134 = vunpack.c.l.bf16 %v70
  %v135 = vunpack.c.l.bf16 %v71
  %v136 = vunpack.c.l.bf16 %v72
  %v137 = vunpack.c.l.bf16 %v73
  %v138 = vunpack.c.l.bf16 %v74
  %v139 = vunpack.c.l.bf16 %v75
  %v140 = vunpack.c.l.bf16 %v76
  %v141 = vunpack.c.l.bf16 %v77
  %v142 = vunpack.c.l.bf16 %v78
  %v143 = vunpack.c.l.bf16 %v79
  %v144 = vunpack.c.l.bf16 %v80
  %v145 = vunpack.c.l.bf16 %v81
  %v146 = vunpack.c.l.bf16 %v82
  %v147 = vunpack.c.l.bf16 %v83
  %v148 = vld [vmem:[%s1] sm:$0x1]
  %v150 = vlaneseq
  %v151 = vshrl.u32 %v150, 7
  %v152 = vsub.s32 0, %v151
  %v153 = vrot.slane %v148, %v152
  %v155 = vmul.f32 %v84, %v153
  %v156 = vmul.f32 %v85, %v153
  %v157 = vmul.f32 %v86, %v153
  %v158 = vmul.f32 %v87, %v153
  %v159 = vmul.f32 %v88, %v153
  %v160 = vmul.f32 %v89, %v153
  %v161 = vmul.f32 %v90, %v153
  %v162 = vmul.f32 %v91, %v153
  %v163 = vmul.f32 %v92, %v153
  %v164 = vmul.f32 %v93, %v153
  %v165 = vmul.f32 %v94, %v153
  %v166 = vmul.f32 %v95, %v153
  %v167 = vmul.f32 %v96, %v153
  %v168 = vmul.f32 %v97, %v153
  %v169 = vmul.f32 %v98, %v153
  %v170 = vmul.f32 %v99, %v153
  %v171 = vmul.f32 %v100, %v153
  %v172 = vmul.f32 %v101, %v153
  %v173 = vmul.f32 %v102, %v153
  %v174 = vmul.f32 %v103, %v153
  %v175 = vmul.f32 %v104, %v153
  %v176 = vmul.f32 %v105, %v153
  %v177 = vmul.f32 %v106, %v153
  %v178 = vmul.f32 %v107, %v153
  %v179 = vmul.f32 %v108, %v153
  %v180 = vmul.f32 %v109, %v153
  %v181 = vmul.f32 %v110, %v153
  %v182 = vmul.f32 %v111, %v153
  %v183 = vmul.f32 %v112, %v153
  %v184 = vmul.f32 %v113, %v153
  %v185 = vmul.f32 %v114, %v153
  %v186 = vmul.f32 %v115, %v153
  %v187 = vmul.f32 %v116, %v153
  %v188 = vmul.f32 %v117, %v153
  %v189 = vmul.f32 %v118, %v153
  %v190 = vmul.f32 %v119, %v153
  %v191 = vmul.f32 %v120, %v153
  %v192 = vmul.f32 %v121, %v153
  %v193 = vmul.f32 %v122, %v153
  %v194 = vmul.f32 %v123, %v153
  %v195 = vmul.f32 %v124, %v153
  %v196 = vmul.f32 %v125, %v153
  %v197 = vmul.f32 %v126, %v153
  %v198 = vmul.f32 %v127, %v153
  %v199 = vmul.f32 %v128, %v153
  %v200 = vmul.f32 %v129, %v153
  %v201 = vmul.f32 %v130, %v153
  %v202 = vmul.f32 %v131, %v153
  %v203 = vmul.f32 %v132, %v153
  %v204 = vmul.f32 %v133, %v153
  %v205 = vmul.f32 %v134, %v153
  %v206 = vmul.f32 %v135, %v153
  %v207 = vmul.f32 %v136, %v153
  %v208 = vmul.f32 %v137, %v153
  %v209 = vmul.f32 %v138, %v153
  %v210 = vmul.f32 %v139, %v153
  %v211 = vmul.f32 %v140, %v153
  %v212 = vmul.f32 %v141, %v153
  %v213 = vmul.f32 %v142, %v153
  %v214 = vmul.f32 %v143, %v153
  %v215 = vmul.f32 %v144, %v153
  %v216 = vmul.f32 %v145, %v153
  %v217 = vmul.f32 %v146, %v153
  %v218 = vmul.f32 %v147, %v153
  %v219 = vld [vmem:[%s2] sm:$0x1]
  %v221 = vlaneseq
  %v222 = vshrl.u32 %v221, 7
  %v223 = vsub.s32 0, %v222
  %v224 = vrot.slane %v219, %v223
  %v226 = vadd.f32 %v155, %v224
  %v227 = vadd.f32 %v156, %v224
  %v228 = vadd.f32 %v157, %v224
  %v229 = vadd.f32 %v158, %v224
  %v230 = vadd.f32 %v159, %v224
  %v231 = vadd.f32 %v160, %v224
  %v232 = vadd.f32 %v161, %v224
  %v233 = vadd.f32 %v162, %v224
  %v234 = vadd.f32 %v163, %v224
  %v235 = vadd.f32 %v164, %v224
  %v236 = vadd.f32 %v165, %v224
  %v237 = vadd.f32 %v166, %v224
  %v238 = vadd.f32 %v167, %v224
  %v239 = vadd.f32 %v168, %v224
  %v240 = vadd.f32 %v169, %v224
  %v241 = vadd.f32 %v170, %v224
  %v242 = vadd.f32 %v171, %v224
  %v243 = vadd.f32 %v172, %v224
  %v244 = vadd.f32 %v173, %v224
  %v245 = vadd.f32 %v174, %v224
  %v246 = vadd.f32 %v175, %v224
  %v247 = vadd.f32 %v176, %v224
  %v248 = vadd.f32 %v177, %v224
  %v249 = vadd.f32 %v178, %v224
  %v250 = vadd.f32 %v179, %v224
  %v251 = vadd.f32 %v180, %v224
  %v252 = vadd.f32 %v181, %v224
  %v253 = vadd.f32 %v182, %v224
  %v254 = vadd.f32 %v183, %v224
  %v255 = vadd.f32 %v184, %v224
  %v256 = vadd.f32 %v185, %v224
  %v257 = vadd.f32 %v186, %v224
  %v258 = vadd.f32 %v187, %v224
  %v259 = vadd.f32 %v188, %v224
  %v260 = vadd.f32 %v189, %v224
  %v261 = vadd.f32 %v190, %v224
  %v262 = vadd.f32 %v191, %v224
  %v263 = vadd.f32 %v192, %v224
  %v264 = vadd.f32 %v193, %v224
  %v265 = vadd.f32 %v194, %v224
  %v266 = vadd.f32 %v195, %v224
  %v267 = vadd.f32 %v196, %v224
  %v268 = vadd.f32 %v197, %v224
  %v269 = vadd.f32 %v198, %v224
  %v270 = vadd.f32 %v199, %v224
  %v271 = vadd.f32 %v200, %v224
  %v272 = vadd.f32 %v201, %v224
  %v273 = vadd.f32 %v202, %v224
  %v274 = vadd.f32 %v203, %v224
  %v275 = vadd.f32 %v204, %v224
  %v276 = vadd.f32 %v205, %v224
  %v277 = vadd.f32 %v206, %v224
  %v278 = vadd.f32 %v207, %v224
  %v279 = vadd.f32 %v208, %v224
  %v280 = vadd.f32 %v209, %v224
  %v281 = vadd.f32 %v210, %v224
  %v282 = vadd.f32 %v211, %v224
  %v283 = vadd.f32 %v212, %v224
  %v284 = vadd.f32 %v213, %v224
  %v285 = vadd.f32 %v214, %v224
  %v286 = vadd.f32 %v215, %v224
  %v287 = vadd.f32 %v216, %v224
  %v288 = vadd.f32 %v217, %v224
  %v289 = vadd.f32 %v218, %v224
  %v290 = vmax.f32 %v226, 0.0
  %v291 = vmax.f32 %v227, 0.0
  %v292 = vmax.f32 %v228, 0.0
  %v293 = vmax.f32 %v229, 0.0
  %v294 = vmax.f32 %v230, 0.0
  %v295 = vmax.f32 %v231, 0.0
  %v296 = vmax.f32 %v232, 0.0
  %v297 = vmax.f32 %v233, 0.0
  %v298 = vmax.f32 %v234, 0.0
  %v299 = vmax.f32 %v235, 0.0
  %v300 = vmax.f32 %v236, 0.0
  %v301 = vmax.f32 %v237, 0.0
  %v302 = vmax.f32 %v238, 0.0
  %v303 = vmax.f32 %v239, 0.0
  %v304 = vmax.f32 %v240, 0.0
  %v305 = vmax.f32 %v241, 0.0
  %v306 = vmax.f32 %v242, 0.0
  %v307 = vmax.f32 %v243, 0.0
  %v308 = vmax.f32 %v244, 0.0
  %v309 = vmax.f32 %v245, 0.0
  %v310 = vmax.f32 %v246, 0.0
  %v311 = vmax.f32 %v247, 0.0
  %v312 = vmax.f32 %v248, 0.0
  %v313 = vmax.f32 %v249, 0.0
  %v314 = vmax.f32 %v250, 0.0
  %v315 = vmax.f32 %v251, 0.0
  %v316 = vmax.f32 %v252, 0.0
  %v317 = vmax.f32 %v253, 0.0
  %v318 = vmax.f32 %v254, 0.0
  %v319 = vmax.f32 %v255, 0.0
  %v320 = vmax.f32 %v256, 0.0
  %v321 = vmax.f32 %v257, 0.0
  %v322 = vmax.f32 %v258, 0.0
  %v323 = vmax.f32 %v259, 0.0
  %v324 = vmax.f32 %v260, 0.0
  %v325 = vmax.f32 %v261, 0.0
  %v326 = vmax.f32 %v262, 0.0
  %v327 = vmax.f32 %v263, 0.0
  %v328 = vmax.f32 %v264, 0.0
  %v329 = vmax.f32 %v265, 0.0
  %v330 = vmax.f32 %v266, 0.0
  %v331 = vmax.f32 %v267, 0.0
  %v332 = vmax.f32 %v268, 0.0
  %v333 = vmax.f32 %v269, 0.0
  %v334 = vmax.f32 %v270, 0.0
  %v335 = vmax.f32 %v271, 0.0
  %v336 = vmax.f32 %v272, 0.0
  %v337 = vmax.f32 %v273, 0.0
  %v338 = vmax.f32 %v274, 0.0
  %v339 = vmax.f32 %v275, 0.0
  %v340 = vmax.f32 %v276, 0.0
  %v341 = vmax.f32 %v277, 0.0
  %v342 = vmax.f32 %v278, 0.0
  %v343 = vmax.f32 %v279, 0.0
  %v344 = vmax.f32 %v280, 0.0
  %v345 = vmax.f32 %v281, 0.0
  %v346 = vmax.f32 %v282, 0.0
  %v347 = vmax.f32 %v283, 0.0
  %v348 = vmax.f32 %v284, 0.0
  %v349 = vmax.f32 %v285, 0.0
  %v350 = vmax.f32 %v286, 0.0
  %v351 = vmax.f32 %v287, 0.0
  %v352 = vmax.f32 %v288, 0.0
  %v353 = vmax.f32 %v289, 0.0
  %v354 = vpack.c.bf16 %v291, %v290
  %v355 = vpack.c.bf16 %v293, %v292
  %v356 = vpack.c.bf16 %v295, %v294
  %v357 = vpack.c.bf16 %v297, %v296
  %v358 = vpack.c.bf16 %v299, %v298
  %v359 = vpack.c.bf16 %v301, %v300
  %v360 = vpack.c.bf16 %v303, %v302
  %v361 = vpack.c.bf16 %v305, %v304
  %v362 = vpack.c.bf16 %v307, %v306
  %v363 = vpack.c.bf16 %v309, %v308
  %v364 = vpack.c.bf16 %v311, %v310
  %v365 = vpack.c.bf16 %v313, %v312
  %v366 = vpack.c.bf16 %v315, %v314
  %v367 = vpack.c.bf16 %v317, %v316
  %v368 = vpack.c.bf16 %v319, %v318
  %v369 = vpack.c.bf16 %v321, %v320
  %v370 = vpack.c.bf16 %v323, %v322
  %v371 = vpack.c.bf16 %v325, %v324
  %v372 = vpack.c.bf16 %v327, %v326
  %v373 = vpack.c.bf16 %v329, %v328
  %v374 = vpack.c.bf16 %v331, %v330
  %v375 = vpack.c.bf16 %v333, %v332
  %v376 = vpack.c.bf16 %v335, %v334
  %v377 = vpack.c.bf16 %v337, %v336
  %v378 = vpack.c.bf16 %v339, %v338
  %v379 = vpack.c.bf16 %v341, %v340
  %v380 = vpack.c.bf16 %v343, %v342
  %v381 = vpack.c.bf16 %v345, %v344
  %v382 = vpack.c.bf16 %v347, %v346
  %v383 = vpack.c.bf16 %v349, %v348
  %v384 = vpack.c.bf16 %v351, %v350
  %v385 = vpack.c.bf16 %v353, %v352
  %v386 = vld [vmem:[%s3] sm:$0xf]
  %v387 = vld [vmem:[%s3 + $0x4] sm:$0xf]
  %v388 = vld [vmem:[%s3 + $0x8] sm:$0xf]
  %v389 = vld [vmem:[%s3 + $0xc] sm:$0xf]
  %v390 = vld [vmem:[%s3 + $0x10] sm:$0xf]
  %v391 = vld [vmem:[%s3 + $0x14] sm:$0xf]
  %v392 = vld [vmem:[%s3 + $0x18] sm:$0xf]
  %v393 = vld [vmem:[%s3 + $0x1c] sm:$0xf]
  %v394 = vld [vmem:[%s3 + $0x20] sm:$0xf]
  %v395 = vld [vmem:[%s3 + $0x24] sm:$0xf]
  %v396 = vld [vmem:[%s3 + $0x28] sm:$0xf]
  %v397 = vld [vmem:[%s3 + $0x2c] sm:$0xf]
  %v398 = vld [vmem:[%s3 + $0x30] sm:$0xf]
  %v399 = vld [vmem:[%s3 + $0x34] sm:$0xf]
  %v400 = vld [vmem:[%s3 + $0x38] sm:$0xf]
  %v401 = vld [vmem:[%s3 + $0x3c] sm:$0xf]
  %v418 = vunpack.c.l.b16 %v386
  %v419 = vunpack.c.l.b16 %v387
  %v420 = vunpack.c.l.b16 %v388
  %v421 = vunpack.c.l.b16 %v389
  %v422 = vunpack.c.l.b16 %v390
  %v423 = vunpack.c.l.b16 %v391
  %v424 = vunpack.c.l.b16 %v392
  %v425 = vunpack.c.l.b16 %v393
  %v426 = vunpack.c.l.b16 %v394
  %v427 = vunpack.c.l.b16 %v395
  %v428 = vunpack.c.l.b16 %v396
  %v429 = vunpack.c.l.b16 %v397
  %v430 = vunpack.c.l.b16 %v398
  %v431 = vunpack.c.l.b16 %v399
  %v432 = vunpack.c.l.b16 %v400
  %v433 = vunpack.c.l.b16 %v401
  %v434 = vpack.c.b16 %v419, %v418
  %v435 = vpack.c.b16 %v421, %v420
  %v436 = vpack.c.b16 %v423, %v422
  %v437 = vpack.c.b16 %v425, %v424
  %v438 = vpack.c.b16 %v427, %v426
  %v439 = vpack.c.b16 %v429, %v428
  %v440 = vpack.c.b16 %v431, %v430
  %v441 = vpack.c.b16 %v433, %v432
  %450 = vmatprep.subr.bf16.mxu0 0
  %451 = vmatpush1.bf16.msra.mxu0 %v441
  %452 = vmatprep.subr.bf16.mxu0 0
  %453 = vmatpush1.bf16.msra.mxu0 %v440
  %454 = vmatprep.subr.bf16.mxu0 0
  %455 = vmatpush1.bf16.msra.mxu0 %v439
  %456 = vmatprep.subr.bf16.mxu0 0
  %457 = vmatpush1.bf16.msra.mxu0 %v438
  %458 = vmatprep.subr.bf16.mxu0 0
  %459 = vmatpush1.bf16.msra.mxu0 %v437
  %460 = vmatprep.subr.bf16.mxu0 0
  %461 = vmatpush1.bf16.msra.mxu0 %v436
  %462 = vmatprep.subr.bf16.mxu0 0
  %463 = vmatpush1.bf16.msra.mxu0 %v435
  %464 = vmatprep.subr.bf16.mxu0 0
  %465 = vmatpush1.bf16.msra.mxu0 %v434
  %466 = vmatprep.subr.bf16.mxu0 0
  %467 = vmatpush2.bf16.msra.mxu0 0
  %468 = vmatprep.subr.bf16.mxu0 0
  %469 = vmatpush2.bf16.msra.mxu0 0
  %470 = vmatprep.subr.bf16.mxu0 0
  %471 = vmatpush2.bf16.msra.mxu0 0
  %472 = vmatprep.subr.bf16.mxu0 0
  %473 = vmatpush2.bf16.msra.mxu0 0
  %474 = vmatprep.subr.bf16.mxu0 0
  %475 = vmatpush2.bf16.msra.mxu0 0
  %476 = vmatprep.subr.bf16.mxu0 0
  %477 = vmatpush2.bf16.msra.mxu0 0
  %478 = vmatprep.subr.bf16.mxu0 0
  %479 = vmatpush2.bf16.msra.mxu0 0
  %480 = vmatprep.subr.bf16.mxu0 0
  %481 = vmatpush2.bf16.msra.mxu0 0
  %482 = vmatprep.mubr.bf16.mxu0 0
  %483 = vmatmul.mubr.bf16.gmra.mxu0 %v354
  %v484 = vpop.f32.mrf.mxu0
  %v485 = vadd.f32 0.0, %v484
  %v486 = vpop.f32.mrf.mxu0
  %v487 = vpop.f32.mrf.mxu0
  %v488 = vadd.f32 0.0, %v487
  %v489 = vpop.f32.mrf.mxu0
  %490 = vmatprep.mubr.bf16.mxu0 0
  %491 = vmatmul.mubr.bf16.gmra.mxu0 %v355
  %v492 = vpop.f32.mrf.mxu0
  %v493 = vadd.f32 0.0, %v492
  %v494 = vpop.f32.mrf.mxu0
  %v495 = vpop.f32.mrf.mxu0
  %v496 = vadd.f32 0.0, %v495
  %v497 = vpop.f32.mrf.mxu0
  %498 = vmatprep.mubr.bf16.mxu0 0
  %499 = vmatmul.mubr.bf16.gmra.mxu0 %v356
  %v500 = vpop.f32.mrf.mxu0
  %v501 = vadd.f32 0.0, %v500
  %v502 = vpop.f32.mrf.mxu0
  %v503 = vpop.f32.mrf.mxu0
  %v504 = vadd.f32 0.0, %v503
  %v505 = vpop.f32.mrf.mxu0
  %506 = vmatprep.mubr.bf16.mxu0 0
  %507 = vmatmul.mubr.bf16.gmra.mxu0 %v357
  %v508 = vpop.f32.mrf.mxu0
  %v509 = vadd.f32 0.0, %v508
  %v510 = vpop.f32.mrf.mxu0
  %v511 = vpop.f32.mrf.mxu0
  %v512 = vadd.f32 0.0, %v511
  %v513 = vpop.f32.mrf.mxu0
  %514 = vmatprep.mubr.bf16.mxu0 0
  %515 = vmatmul.mubr.bf16.gmra.mxu0 %v358
  %v516 = vpop.f32.mrf.mxu0
  %v517 = vadd.f32 0.0, %v516
  %v518 = vpop.f32.mrf.mxu0
  %v519 = vpop.f32.mrf.mxu0
  %v520 = vadd.f32 0.0, %v519
  %v521 = vpop.f32.mrf.mxu0
  %522 = vmatprep.mubr.bf16.mxu0 0
  %523 = vmatmul.mubr.bf16.gmra.mxu0 %v359
  %v524 = vpop.f32.mrf.mxu0
  %v525 = vadd.f32 0.0, %v524
  %v526 = vpop.f32.mrf.mxu0
  %v527 = vpop.f32.mrf.mxu0
  %v528 = vadd.f32 0.0, %v527
  %v529 = vpop.f32.mrf.mxu0
  %530 = vmatprep.mubr.bf16.mxu0 0
  %531 = vmatmul.mubr.bf16.gmra.mxu0 %v360
  %v532 = vpop.f32.mrf.mxu0
  %v533 = vadd.f32 0.0, %v532
  %v534 = vpop.f32.mrf.mxu0
  %v535 = vpop.f32.mrf.mxu0
  %v536 = vadd.f32 0.0, %v535
  %v537 = vpop.f32.mrf.mxu0
  %538 = vmatprep.mubr.bf16.mxu0 0
  %539 = vmatmul.mubr.bf16.gmra.mxu0 %v361
  %v540 = vpop.f32.mrf.mxu0
  %v541 = vadd.f32 0.0, %v540
  %v542 = vpop.f32.mrf.mxu0
  %v543 = vpop.f32.mrf.mxu0
  %v544 = vadd.f32 0.0, %v543
  %v545 = vpop.f32.mrf.mxu0
  %546 = vmatprep.mubr.bf16.mxu0 0
  %547 = vmatmul.mubr.bf16.gmra.mxu0 %v362
  %v548 = vpop.f32.mrf.mxu0
  %v549 = vadd.f32 0.0, %v548
  %v550 = vpop.f32.mrf.mxu0
  %v551 = vpop.f32.mrf.mxu0
  %v552 = vadd.f32 0.0, %v551
  %v553 = vpop.f32.mrf.mxu0
  %554 = vmatprep.mubr.bf16.mxu0 0
  %555 = vmatmul.mubr.bf16.gmra.mxu0 %v363
  %v556 = vpop.f32.mrf.mxu0
  %v557 = vadd.f32 0.0, %v556
  %v558 = vpop.f32.mrf.mxu0
  %v559 = vpop.f32.mrf.mxu0
  %v560 = vadd.f32 0.0, %v559
  %v561 = vpop.f32.mrf.mxu0
  %562 = vmatprep.mubr.bf16.mxu0 0
  %563 = vmatmul.mubr.bf16.gmra.mxu0 %v364
  %v564 = vpop.f32.mrf.mxu0
  %v565 = vadd.f32 0.0, %v564
  %v566 = vpop.f32.mrf.mxu0
  %v567 = vpop.f32.mrf.mxu0
  %v568 = vadd.f32 0.0, %v567
  %v569 = vpop.f32.mrf.mxu0
  %570 = vmatprep.mubr.bf16.mxu0 0
  %571 = vmatmul.mubr.bf16.gmra.mxu0 %v365
  %v572 = vpop.f32.mrf.mxu0
  %v573 = vadd.f32 0.0, %v572
  %v574 = vpop.f32.mrf.mxu0
  %v575 = vpop.f32.mrf.mxu0
  %v576 = vadd.f32 0.0, %v575
  %v577 = vpop.f32.mrf.mxu0
  %578 = vmatprep.mubr.bf16.mxu0 0
  %579 = vmatmul.mubr.bf16.gmra.mxu0 %v366
  %v580 = vpop.f32.mrf.mxu0
  %v581 = vadd.f32 0.0, %v580
  %v582 = vpop.f32.mrf.mxu0
  %v583 = vpop.f32.mrf.mxu0
  %v584 = vadd.f32 0.0, %v583
  %v585 = vpop.f32.mrf.mxu0
  %586 = vmatprep.mubr.bf16.mxu0 0
  %587 = vmatmul.mubr.bf16.gmra.mxu0 %v367
  %v588 = vpop.f32.mrf.mxu0
  %v589 = vadd.f32 0.0, %v588
  %v590 = vpop.f32.mrf.mxu0
  %v591 = vpop.f32.mrf.mxu0
  %v592 = vadd.f32 0.0, %v591
  %v593 = vpop.f32.mrf.mxu0
  %594 = vmatprep.mubr.bf16.mxu0 0
  %595 = vmatmul.mubr.bf16.gmra.mxu0 %v368
  %v596 = vpop.f32.mrf.mxu0
  %v597 = vadd.f32 0.0, %v596
  %v598 = vpop.f32.mrf.mxu0
  %v599 = vpop.f32.mrf.mxu0
  %v600 = vadd.f32 0.0, %v599
  %v601 = vpop.f32.mrf.mxu0
  %602 = vmatprep.mubr.bf16.mxu0 0
  %603 = vmatmul.mubr.bf16.gmra.mxu0 %v369
  %v604 = vpop.f32.mrf.mxu0
  %v605 = vadd.f32 0.0, %v604
  %v606 = vpop.f32.mrf.mxu0
  %v607 = vpop.f32.mrf.mxu0
  %v608 = vadd.f32 0.0, %v607
  %v609 = vpop.f32.mrf.mxu0
  %610 = vmatprep.mubr.bf16.mxu0 0
  %611 = vmatmul.mubr.bf16.gmra.mxu0 %v370
  %v612 = vpop.f32.mrf.mxu0
  %v613 = vadd.f32 0.0, %v612
  %v614 = vpop.f32.mrf.mxu0
  %v615 = vpop.f32.mrf.mxu0
  %v616 = vadd.f32 0.0, %v615
  %v617 = vpop.f32.mrf.mxu0
  %618 = vmatprep.mubr.bf16.mxu0 0
  %619 = vmatmul.mubr.bf16.gmra.mxu0 %v371
  %v620 = vpop.f32.mrf.mxu0
  %v621 = vadd.f32 0.0, %v620
  %v622 = vpop.f32.mrf.mxu0
  %v623 = vpop.f32.mrf.mxu0
  %v624 = vadd.f32 0.0, %v623
  %v625 = vpop.f32.mrf.mxu0
  %626 = vmatprep.mubr.bf16.mxu0 0
  %627 = vmatmul.mubr.bf16.gmra.mxu0 %v372
  %v628 = vpop.f32.mrf.mxu0
  %v629 = vadd.f32 0.0, %v628
  %v630 = vpop.f32.mrf.mxu0
  %v631 = vpop.f32.mrf.mxu0
  %v632 = vadd.f32 0.0, %v631
  %v633 = vpop.f32.mrf.mxu0
  %634 = vmatprep.mubr.bf16.mxu0 0
  %635 = vmatmul.mubr.bf16.gmra.mxu0 %v373
  %v636 = vpop.f32.mrf.mxu0
  %v637 = vadd.f32 0.0, %v636
  %v638 = vpop.f32.mrf.mxu0
  %v639 = vpop.f32.mrf.mxu0
  %v640 = vadd.f32 0.0, %v639
  %v641 = vpop.f32.mrf.mxu0
  %642 = vmatprep.mubr.bf16.mxu0 0
  %643 = vmatmul.mubr.bf16.gmra.mxu0 %v374
  %v644 = vpop.f32.mrf.mxu0
  %v645 = vadd.f32 0.0, %v644
  %v646 = vpop.f32.mrf.mxu0
  %v647 = vpop.f32.mrf.mxu0
  %v648 = vadd.f32 0.0, %v647
  %v649 = vpop.f32.mrf.mxu0
  %650 = vmatprep.mubr.bf16.mxu0 0
  %651 = vmatmul.mubr.bf16.gmra.mxu0 %v375
  %v652 = vpop.f32.mrf.mxu0
  %v653 = vadd.f32 0.0, %v652
  %v654 = vpop.f32.mrf.mxu0
  %v655 = vpop.f32.mrf.mxu0
  %v656 = vadd.f32 0.0, %v655
  %v657 = vpop.f32.mrf.mxu0
  %658 = vmatprep.mubr.bf16.mxu0 0
  %659 = vmatmul.mubr.bf16.gmra.mxu0 %v376
  %v660 = vpop.f32.mrf.mxu0
  %v661 = vadd.f32 0.0, %v660
  %v662 = vpop.f32.mrf.mxu0
  %v663 = vpop.f32.mrf.mxu0
  %v664 = vadd.f32 0.0, %v663
  %v665 = vpop.f32.mrf.mxu0
  %666 = vmatprep.mubr.bf16.mxu0 0
  %667 = vmatmul.mubr.bf16.gmra.mxu0 %v377
  %v668 = vpop.f32.mrf.mxu0
  %v669 = vadd.f32 0.0, %v668
  %v670 = vpop.f32.mrf.mxu0
  %v671 = vpop.f32.mrf.mxu0
  %v672 = vadd.f32 0.0, %v671
  %v673 = vpop.f32.mrf.mxu0
  %674 = vmatprep.mubr.bf16.mxu0 0
  %675 = vmatmul.mubr.bf16.gmra.mxu0 %v378
  %v676 = vpop.f32.mrf.mxu0
  %v677 = vadd.f32 0.0, %v676
  %v678 = vpop.f32.mrf.mxu0
  %v679 = vpop.f32.mrf.mxu0
  %v680 = vadd.f32 0.0, %v679
  %v681 = vpop.f32.mrf.mxu0
  %682 = vmatprep.mubr.bf16.mxu0 0
  %683 = vmatmul.mubr.bf16.gmra.mxu0 %v379
  %v684 = vpop.f32.mrf.mxu0
  %v685 = vadd.f32 0.0, %v684
  %v686 = vpop.f32.mrf.mxu0
  %v687 = vpop.f32.mrf.mxu0
  %v688 = vadd.f32 0.0, %v687
  %v689 = vpop.f32.mrf.mxu0
  %690 = vmatprep.mubr.bf16.mxu0 0
  %691 = vmatmul.mubr.bf16.gmra.mxu0 %v380
  %v692 = vpop.f32.mrf.mxu0
  %v693 = vadd.f32 0.0, %v692
  %v694 = vpop.f32.mrf.mxu0
  %v695 = vpop.f32.mrf.mxu0
  %v696 = vadd.f32 0.0, %v695
  %v697 = vpop.f32.mrf.mxu0
  %698 = vmatprep.mubr.bf16.mxu0 0
  %699 = vmatmul.mubr.bf16.gmra.mxu0 %v381
  %v700 = vpop.f32.mrf.mxu0
  %v701 = vadd.f32 0.0, %v700
  %v702 = vpop.f32.mrf.mxu0
  %v703 = vpop.f32.mrf.mxu0
  %v704 = vadd.f32 0.0, %v703
  %v705 = vpop.f32.mrf.mxu0
  %706 = vmatprep.mubr.bf16.mxu0 0
  %707 = vmatmul.mubr.bf16.gmra.mxu0 %v382
  %v708 = vpop.f32.mrf.mxu0
  %v709 = vadd.f32 0.0, %v708
  %v710 = vpop.f32.mrf.mxu0
  %v711 = vpop.f32.mrf.mxu0
  %v712 = vadd.f32 0.0, %v711
  %v713 = vpop.f32.mrf.mxu0
  %714 = vmatprep.mubr.bf16.mxu0 0
  %715 = vmatmul.mubr.bf16.gmra.mxu0 %v383
  %v716 = vpop.f32.mrf.mxu0
  %v717 = vadd.f32 0.0, %v716
  %v718 = vpop.f32.mrf.mxu0
  %v719 = vpop.f32.mrf.mxu0
  %v720 = vadd.f32 0.0, %v719
  %v721 = vpop.f32.mrf.mxu0
  %722 = vmatprep.mubr.bf16.mxu0 0
  %723 = vmatmul.mubr.bf16.gmra.mxu0 %v384
  %v724 = vpop.f32.mrf.mxu0
  %v725 = vadd.f32 0.0, %v724
  %v726 = vpop.f32.mrf.mxu0
  %v727 = vpop.f32.mrf.mxu0
  %v728 = vadd.f32 0.0, %v727
  %v729 = vpop.f32.mrf.mxu0
  %730 = vmatprep.mubr.bf16.mxu0 0
  %731 = vmatmul.mubr.bf16.gmra.mxu0 %v385
  %v732 = vpop.f32.mrf.mxu0
  %v733 = vadd.f32 0.0, %v732
  %v734 = vpop.f32.mrf.mxu0
  %v735 = vpop.f32.mrf.mxu0
  %v736 = vadd.f32 0.0, %v735
  %v737 = vpop.f32.mrf.mxu0
  %738 = vdwg.mxu0
  %739 = vst [vmem:[%s4] sm:$0xff] %v485
  %740 = vst [vmem:[%s4 + $0x8] sm:$0xff] %v488
  %741 = vst [vmem:[%s4 + $0x10] sm:$0xff] %v493
  %742 = vst [vmem:[%s4 + $0x18] sm:$0xff] %v496
  %743 = vst [vmem:[%s4 + $0x20] sm:$0xff] %v501
  %744 = vst [vmem:[%s4 + $0x28] sm:$0xff] %v504
  %745 = vst [vmem:[%s4 + $0x30] sm:$0xff] %v509
  %746 = vst [vmem:[%s4 + $0x38] sm:$0xff] %v512
  %747 = vst [vmem:[%s4 + $0x40] sm:$0xff] %v517
  %748 = vst [vmem:[%s4 + $0x48] sm:$0xff] %v520
  %749 = vst [vmem:[%s4 + $0x50] sm:$0xff] %v525
  %750 = vst [vmem:[%s4 + $0x58] sm:$0xff] %v528
  %751 = vst [vmem:[%s4 + $0x60] sm:$0xff] %v533
  %752 = vst [vmem:[%s4 + $0x68] sm:$0xff] %v536
  %753 = vst [vmem:[%s4 + $0x70] sm:$0xff] %v541
  %754 = vst [vmem:[%s4 + $0x78] sm:$0xff] %v544
  %755 = vst [vmem:[%s4 + $0x80] sm:$0xff] %v549
  %756 = vst [vmem:[%s4 + $0x88] sm:$0xff] %v552
  %757 = vst [vmem:[%s4 + $0x90] sm:$0xff] %v557
  %758 = vst [vmem:[%s4 + $0x98] sm:$0xff] %v560
  %759 = vst [vmem:[%s4 + $0xa0] sm:$0xff] %v565
  %760 = vst [vmem:[%s4 + $0xa8] sm:$0xff] %v568
  %761 = vst [vmem:[%s4 + $0xb0] sm:$0xff] %v573
  %762 = vst [vmem:[%s4 + $0xb8] sm:$0xff] %v576
  %763 = vst [vmem:[%s4 + $0xc0] sm:$0xff] %v581
  %764 = vst [vmem:[%s4 + $0xc8] sm:$0xff] %v584
  %765 = vst [vmem:[%s4 + $0xd0] sm:$0xff] %v589
  %766 = vst [vmem:[%s4 + $0xd8] sm:$0xff] %v592
  %767 = vst [vmem:[%s4 + $0xe0] sm:$0xff] %v597
  %768 = vst [vmem:[%s4 + $0xe8] sm:$0xff] %v600
  %769 = vst [vmem:[%s4 + $0xf0] sm:$0xff] %v605
  %770 = vst [vmem:[%s4 + $0xf8] sm:$0xff] %v608
  %771 = vst [vmem:[%s4 + $0x100] sm:$0xff] %v613
  %772 = vst [vmem:[%s4 + $0x108] sm:$0xff] %v616
  %773 = vst [vmem:[%s4 + $0x110] sm:$0xff] %v621
  %774 = vst [vmem:[%s4 + $0x118] sm:$0xff] %v624
  %775 = vst [vmem:[%s4 + $0x120] sm:$0xff] %v629
  %776 = vst [vmem:[%s4 + $0x128] sm:$0xff] %v632
  %777 = vst [vmem:[%s4 + $0x130] sm:$0xff] %v637
  %778 = vst [vmem:[%s4 + $0x138] sm:$0xff] %v640
  %779 = vst [vmem:[%s4 + $0x140] sm:$0xff] %v645
  %780 = vst [vmem:[%s4 + $0x148] sm:$0xff] %v648
  %781 = vst [vmem:[%s4 + $0x150] sm:$0xff] %v653
  %782 = vst [vmem:[%s4 + $0x158] sm:$0xff] %v656
  %783 = vst [vmem:[%s4 + $0x160] sm:$0xff] %v661
  %784 = vst [vmem:[%s4 + $0x168] sm:$0xff] %v664
  %785 = vst [vmem:[%s4 + $0x170] sm:$0xff] %v669
  %786 = vst [vmem:[%s4 + $0x178] sm:$0xff] %v672
  %787 = vst [vmem:[%s4 + $0x180] sm:$0xff] %v677
  %788 = vst [vmem:[%s4 + $0x188] sm:$0xff] %v680
  %789 = vst [vmem:[%s4 + $0x190] sm:$0xff] %v685
  %790 = vst [vmem:[%s4 + $0x198] sm:$0xff] %v688
  %791 = vst [vmem:[%s4 + $0x1a0] sm:$0xff] %v693
  %792 = vst [vmem:[%s4 + $0x1a8] sm:$0xff] %v696
  %793 = vst [vmem:[%s4 + $0x1b0] sm:$0xff] %v701
  %794 = vst [vmem:[%s4 + $0x1b8] sm:$0xff] %v704
  %795 = vst [vmem:[%s4 + $0x1c0] sm:$0xff] %v709
  %796 = vst [vmem:[%s4 + $0x1c8] sm:$0xff] %v712
  %797 = vst [vmem:[%s4 + $0x1d0] sm:$0xff] %v717
  %798 = vst [vmem:[%s4 + $0x1d8] sm:$0xff] %v720
  %799 = vst [vmem:[%s4 + $0x1e0] sm:$0xff] %v725
  %800 = vst [vmem:[%s4 + $0x1e8] sm:$0xff] %v728
  %801 = vst [vmem:[%s4 + $0x1f0] sm:$0xff] %v733
  %802 = vst [vmem:[%s4 + $0x1f8] sm:$0xff] %v736
  %v803 = vadd.f32 %v485, %v488
  %v804 = vadd.f32 %v803, %v493
  %v805 = vadd.f32 %v804, %v496
  %v806 = vadd.f32 %v805, %v501
  %v807 = vadd.f32 %v806, %v504
  %v808 = vadd.f32 %v807, %v509
  %v809 = vadd.f32 %v808, %v512
  %v810 = vadd.f32 %v809, %v517
  %v811 = vadd.f32 %v810, %v520
  %v812 = vadd.f32 %v811, %v525
  %v813 = vadd.f32 %v812, %v528
  %v814 = vadd.f32 %v813, %v533
  %v815 = vadd.f32 %v814, %v536
  %v816 = vadd.f32 %v815, %v541
  %v817 = vadd.f32 %v816, %v544
  %v818 = vadd.f32 %v817, %v549
  %v819 = vadd.f32 %v818, %v552
  %v820 = vadd.f32 %v819, %v557
  %v821 = vadd.f32 %v820, %v560
  %v822 = vadd.f32 %v821, %v565
  %v823 = vadd.f32 %v822, %v568
  %v824 = vadd.f32 %v823, %v573
  %v825 = vadd.f32 %v824, %v576
  %v826 = vadd.f32 %v825, %v581
  %v827 = vadd.f32 %v826, %v584
  %v828 = vadd.f32 %v827, %v589
  %v829 = vadd.f32 %v828, %v592
  %v830 = vadd.f32 %v829, %v597
  %v831 = vadd.f32 %v830, %v600
  %v832 = vadd.f32 %v831, %v605
  %v833 = vadd.f32 %v832, %v608
  %v834 = vadd.f32 %v833, %v613
  %v835 = vadd.f32 %v834, %v616
  %v836 = vadd.f32 %v835, %v621
  %v837 = vadd.f32 %v836, %v624
  %v838 = vadd.f32 %v837, %v629
  %v839 = vadd.f32 %v838, %v632
  %v840 = vadd.f32 %v839, %v637
  %v841 = vadd.f32 %v840, %v640
  %v842 = vadd.f32 %v841, %v645
  %v843 = vadd.f32 %v842, %v648
  %v844 = vadd.f32 %v843, %v653
  %v845 = vadd.f32 %v844, %v656
  %v846 = vadd.f32 %v845, %v661
  %v847 = vadd.f32 %v846, %v664
  %v848 = vadd.f32 %v847, %v669
  %v849 = vadd.f32 %v848, %v672
  %v850 = vadd.f32 %v849, %v677
  %v851 = vadd.f32 %v850, %v680
  %v852 = vadd.f32 %v851, %v685
  %v853 = vadd.f32 %v852, %v688
  %v854 = vadd.f32 %v853, %v693
  %v855 = vadd.f32 %v854, %v696
  %v856 = vadd.f32 %v855, %v701
  %v857 = vadd.f32 %v856, %v704
  %v858 = vadd.f32 %v857, %v709
  %v859 = vadd.f32 %v858, %v712
  %v860 = vadd.f32 %v859, %v717
  %v861 = vadd.f32 %v860, %v720
  %v862 = vadd.f32 %v861, %v725
  %v863 = vadd.f32 %v862, %v728
  %v864 = vadd.f32 %v863, %v733
  %v865 = vadd.f32 %v864, %v736
  %v866 = vrot.slane %v865, 4
  %v867 = vadd.f32 %v865, %v866
  %v868 = vrot.slane %v867, 2
  %v869 = vadd.f32 %v867, %v868
  %v870 = vrot.slane %v869, 1
  %v871 = vadd.f32 %v869, %v870
  %v872 = vmul.f32 %v485, %v485
  %v873 = vmul.f32 %v488, %v488
  %v874 = vmul.f32 %v493, %v493
  %v875 = vmul.f32 %v496, %v496
  %v876 = vmul.f32 %v501, %v501
  %v877 = vmul.f32 %v504, %v504
  %v878 = vmul.f32 %v509, %v509
  %v879 = vmul.f32 %v512, %v512
  %v880 = vmul.f32 %v517, %v517
  %v881 = vmul.f32 %v520, %v520
  %v882 = vmul.f32 %v525, %v525
  %v883 = vmul.f32 %v528, %v528
  %v884 = vmul.f32 %v533, %v533
  %v885 = vmul.f32 %v536, %v536
  %v886 = vmul.f32 %v541, %v541
  %v887 = vmul.f32 %v544, %v544
  %v888 = vmul.f32 %v549, %v549
  %v889 = vmul.f32 %v552, %v552
  %v890 = vmul.f32 %v557, %v557
  %v891 = vmul.f32 %v560, %v560
  %v892 = vmul.f32 %v565, %v565
  %v893 = vmul.f32 %v568, %v568
  %v894 = vmul.f32 %v573, %v573
  %v895 = vmul.f32 %v576, %v576
  %v896 = vmul.f32 %v581, %v581
  %v897 = vmul.f32 %v584, %v584
  %v898 = vmul.f32 %v589, %v589
  %v899 = vmul.f32 %v592, %v592
  %v900 = vmul.f32 %v597, %v597
  %v901 = vmul.f32 %v600, %v600
  %v902 = vmul.f32 %v605, %v605
  %v903 = vmul.f32 %v608, %v608
  %v904 = vmul.f32 %v613, %v613
  %v905 = vmul.f32 %v616, %v616
  %v906 = vmul.f32 %v621, %v621
  %v907 = vmul.f32 %v624, %v624
  %v908 = vmul.f32 %v629, %v629
  %v909 = vmul.f32 %v632, %v632
  %v910 = vmul.f32 %v637, %v637
  %v911 = vmul.f32 %v640, %v640
  %v912 = vmul.f32 %v645, %v645
  %v913 = vmul.f32 %v648, %v648
  %v914 = vmul.f32 %v653, %v653
  %v915 = vmul.f32 %v656, %v656
  %v916 = vmul.f32 %v661, %v661
  %v917 = vmul.f32 %v664, %v664
  %v918 = vmul.f32 %v669, %v669
  %v919 = vmul.f32 %v672, %v672
  %v920 = vmul.f32 %v677, %v677
  %v921 = vmul.f32 %v680, %v680
  %v922 = vmul.f32 %v685, %v685
  %v923 = vmul.f32 %v688, %v688
  %v924 = vmul.f32 %v693, %v693
  %v925 = vmul.f32 %v696, %v696
  %v926 = vmul.f32 %v701, %v701
  %v927 = vmul.f32 %v704, %v704
  %v928 = vmul.f32 %v709, %v709
  %v929 = vmul.f32 %v712, %v712
  %v930 = vmul.f32 %v717, %v717
  %v931 = vmul.f32 %v720, %v720
  %v932 = vmul.f32 %v725, %v725
  %v933 = vmul.f32 %v728, %v728
  %v934 = vmul.f32 %v733, %v733
  %v935 = vmul.f32 %v736, %v736
  %v936 = vadd.f32 %v872, %v873
  %v937 = vadd.f32 %v936, %v874
  %v938 = vadd.f32 %v937, %v875
  %v939 = vadd.f32 %v938, %v876
  %v940 = vadd.f32 %v939, %v877
  %v941 = vadd.f32 %v940, %v878
  %v942 = vadd.f32 %v941, %v879
  %v943 = vadd.f32 %v942, %v880
  %v944 = vadd.f32 %v943, %v881
  %v945 = vadd.f32 %v944, %v882
  %v946 = vadd.f32 %v945, %v883
  %v947 = vadd.f32 %v946, %v884
  %v948 = vadd.f32 %v947, %v885
  %v949 = vadd.f32 %v948, %v886
  %v950 = vadd.f32 %v949, %v887
  %v951 = vadd.f32 %v950, %v888
  %v952 = vadd.f32 %v951, %v889
  %v953 = vadd.f32 %v952, %v890
  %v954 = vadd.f32 %v953, %v891
  %v955 = vadd.f32 %v954, %v892
  %v956 = vadd.f32 %v955, %v893
  %v957 = vadd.f32 %v956, %v894
  %v958 = vadd.f32 %v957, %v895
  %v959 = vadd.f32 %v958, %v896
  %v960 = vadd.f32 %v959, %v897
  %v961 = vadd.f32 %v960, %v898
  %v962 = vadd.f32 %v961, %v899
  %v963 = vadd.f32 %v962, %v900
  %v964 = vadd.f32 %v963, %v901
  %v965 = vadd.f32 %v964, %v902
  %v966 = vadd.f32 %v965, %v903
  %v967 = vadd.f32 %v966, %v904
  %v968 = vadd.f32 %v967, %v905
  %v969 = vadd.f32 %v968, %v906
  %v970 = vadd.f32 %v969, %v907
  %v971 = vadd.f32 %v970, %v908
  %v972 = vadd.f32 %v971, %v909
  %v973 = vadd.f32 %v972, %v910
  %v974 = vadd.f32 %v973, %v911
  %v975 = vadd.f32 %v974, %v912
  %v976 = vadd.f32 %v975, %v913
  %v977 = vadd.f32 %v976, %v914
  %v978 = vadd.f32 %v977, %v915
  %v979 = vadd.f32 %v978, %v916
  %v980 = vadd.f32 %v979, %v917
  %v981 = vadd.f32 %v980, %v918
  %v982 = vadd.f32 %v981, %v919
  %v983 = vadd.f32 %v982, %v920
  %v984 = vadd.f32 %v983, %v921
  %v985 = vadd.f32 %v984, %v922
  %v986 = vadd.f32 %v985, %v923
  %v987 = vadd.f32 %v986, %v924
  %v988 = vadd.f32 %v987, %v925
  %v989 = vadd.f32 %v988, %v926
  %v990 = vadd.f32 %v989, %v927
  %v991 = vadd.f32 %v990, %v928
  %v992 = vadd.f32 %v991, %v929
  %v993 = vadd.f32 %v992, %v930
  %v994 = vadd.f32 %v993, %v931
  %v995 = vadd.f32 %v994, %v932
  %v996 = vadd.f32 %v995, %v933
  %v997 = vadd.f32 %v996, %v934
  %v998 = vadd.f32 %v997, %v935
  %v999 = vrot.slane %v998, 4
  %v1000 = vadd.f32 %v998, %v999
  %v1001 = vrot.slane %v1000, 2
  %v1002 = vadd.f32 %v1000, %v1001
  %v1003 = vrot.slane %v1002, 1
  %v1004 = vadd.f32 %v1002, %v1003
  %vm1005 = vcmask 1040384
  %v1006 = vsel %vm1005, %v871, %v1004
  %1007 = vst [vmem:[%s5] sm:$0x3] %v1006
  // Predicated region
  $region18: #{bottleneck_forward.6} parent=0 // pred_check
    _
  $region19: #{bottleneck_forward.6} parent=0 // pred_check_branch
    %1009 = sbr.rel (0) target = $region21
  $region20: #{bottleneck_forward.6} parent=0 // pred_region
    _
  $region21: #{bottleneck_forward.6} parent=0 // pred_fallthru
    _
  // Predicated region
  $region22: #{bottleneck_forward.6} parent=0 // pred_check
    _
  $region23: #{bottleneck_forward.6} parent=0 // pred_check_branch
    %1011 = sbr.rel (0) target = $region25
  $region24: #{bottleneck_forward.6} parent=0 // pred_region
    _
  $region25: #{bottleneck_forward.6} parent=0 // pred_fallthru
    _
  // Predicated region
  $region26: #{bottleneck_forward.6} parent=0 // pred_check
    _
  $region27: #{bottleneck_forward.6} parent=0 // pred_check_branch
    %1013 = sbr.rel (0) target = $region29
  $region28: #{bottleneck_forward.6} parent=0 // pred_region
    _
  $region29: #{bottleneck_forward.6} parent=0 // pred_fallthru
    _
  // Predicated region
  $region30: #{bottleneck_forward.6} parent=0 // pred_check
    _
  $region31: #{bottleneck_forward.6} parent=0 // pred_check_branch
    %1015 = sbr.rel (0) target = $region33
  $region32: #{bottleneck_forward.6} parent=0 // pred_region
    _
  $region33: #{bottleneck_forward.6} parent=0 // pred_fallthru
    _

// kernel: bottleneck_forward.5
$region0: #{bottleneck_forward.5}
  #allocation0 [shape = 'u32[]', space=smem, size = 0x4, offset = 0x4, fixed_abs, tag = 'smem constant byte address 0x4 - core index']
  #allocation1 [shape = 'u32[144,128]{1,0:T(1,128)}', space=vmem, size = 0x12000, scoped, tag = 'internal scratch']
  %s0 = inlined_call_operand.vmem [shape: bf16[2,16,16,128], index: 0, kind: input, shape index: {}, may-alias: {0,1,2}]
  %s1 = inlined_call_operand.vmem [shape: bf16[2,16,16,128], index: 1, kind: input, shape index: {}, may-alias: {0,1,2}]
  %s2 = inlined_call_operand.vmem [shape: bf16[2,16,16,128], index: 2, kind: input, shape index: {}, may-alias: {0,1,2}]
  %s3 = inlined_call_operand.vmem [shape: f32[1,128], index: 3, kind: input, shape index: {}]
  %s4 = inlined_call_operand.vmem [shape: f32[1,128], index: 4, kind: input, shape index: {}]
  %s5 = inlined_call_operand.vmem [shape: bf16[9,128,128], index: 5, kind: input, shape index: {}]
  %s6 = inlined_call_operand.vmem [shape: bf16[2,1,256,128], index: 6, kind: output, shape index: {0}]
  %s7 = inlined_call_operand.vmem [shape: f32[2,1,2,128], index: 7, kind: output, shape index: {1}]
  %8 = xla_tuple %s6, %s7
  %s9 = sld [smem:[#allocation0]]
  $region65: #{bottleneck_forward.5} parent=0
    _
  %s11 = ssub.s32 1, %s9
  %s12 = scalar_select 0, %s11, %s9
  loop: start=0, step=1, limit=4
  $region2: #{bottleneck_forward.5} parent=0 // loop_pre_header
    _
  $region3: #{bottleneck_forward.5} parent=0 // loop_header
    %s14 = sphi 0, %s18
    %p15 = scmp.ge.s32.totalorder %s14, 4
    %s21 = sphi 0, %s33
    %s22 = sphi 0, %s29
    %s23 = sphi 0, %s21
    %s24 = sphi 0, %s22
    %s25 = sphi 0, %s23
    %s26 = sphi 0, %s24
    %s38 = sphi 0, %s40
    %s41 = sphi 0, %s38
    %s42 = sphi 0, %s41
    %s58 = sphi 0, %s42
    %s74 = sphi 0, %s76
    %s77 = sphi 0, %s74
    %s78 = sphi 0, %s77
    %s94 = sphi 0, %s78
    %s110 = sphi 0, %s112
    %s113 = sphi 0, %s110
    %s114 = sphi 0, %s113
    %s130 = sphi 0, %s114
    %s134 = sphi 0, %s134
    %s136 = sphi 0, %s134
    %s137 = sphi 0, %s136
    %s151 = sphi 0, %s137
    %s155 = sphi 0, %s155
    %s157 = sphi 0, %s155
    %s158 = sphi 0, %s157
    %s172 = sphi 0, %s158
    %s176 = sphi 0, %s176
    %s178 = sphi 0, %s176
    %s179 = sphi 0, %s178
    %s193 = sphi 0, %s179
    %s201 = sphi 0, %s203
    %s204 = sphi 0, %s201
    %s205 = sphi 0, %s204
    %s221 = sphi 0, %s205
    %s229 = sphi 0, %s231
    %s232 = sphi 0, %s229
    %s233 = sphi 0, %s232
    %s249 = sphi 0, %s233
  $region4: #{bottleneck_forward.5} parent=0 // loop_header_branch
    %17 = sbr.rel (%p15) target = $region8
  $region5: #{bottleneck_forward.5} parent=0 // loop_body
    %s19 = ssub.s32 %s14, 1
    %s20 = ssub.s32 %s14, 2
    %s27 = sadd.s32 1, %s22
    %p28 = scmp.ge.s32.totalorder %s27, 1
    %s29 = scalar_select %p28, 0, %s27
    %s30 = sadd.s32 1, %s21
    %s31 = scalar_select %p28, %s30, %s21
    %p32 = scmp.ge.s32.totalorder %s31, 2
    %s33 = scalar_select %p32, 0, %s31
    %s34 = ssub.s32 %s21, %s33
    %s35 = ssub.s32 %s22, %s29
    %s36 = sor.u32 %s34, %s35
    %p37 = scmp.eq.s32.totalorder %s36, 0
    %s39 = sadd.s32 %s38, 1
    %s40 = scalar_select %p37, %s38, %s39
    %p43 = pneg %p37
    %p44 = scmp.eq.s32.totalorder %s14, 1
    %p45 = por %p43, %p44
    %p46 = scmp.ne.s32.totalorder %s38, %s41
    %p47 = scmp.eq.s32.totalorder %s14, 0
    %p48 = por %p46, %p47
    %p49 = scmp.ne.s32.totalorder %s38, %s41
    %p50 = scmp.eq.s32.totalorder %s19, 1
    %p51 = por %p49, %p50
    %p52 = scmp.ne.s32.totalorder %s41, %s42
    %p53 = scmp.eq.s32.totalorder %s19, 0
    %p54 = por %p52, %p53
    %p55 = scmp.ne.s32.totalorder %s41, %s42
    %p56 = scmp.eq.s32.totalorder %s20, 1
    %p57 = por %p55, %p56
    %p59 = scmp.ne.s32.totalorder %s42, %s58
    %p60 = scmp.eq.s32.totalorder %s20, 0
    %p61 = por %p59, %p60
    %s62 = smul.u32 %s22, 16
    %s63 = ssub.s32 %s62, 1
    %p64 = scmp.gt.s32.totalorder %s63, 0
    %s65 = scalar_select %p64, %s63, 0
    %s66 = smul.u32 %s29, 16
    %s67 = ssub.s32 %s66, 1
    %p68 = scmp.gt.s32.totalorder %s67, 0
    %s69 = scalar_select %p68, %s67, 0
    %s70 = ssub.s32 %s21, %s33
    %s71 = ssub.s32 %s65, %s69
    %s72 = sor.u32 %s70, %s71
    %p73 = scmp.eq.s32.totalorder %s72, 0
    %s75 = sadd.s32 %s74, 1
    %s76 = scalar_select %p73, %s74, %s75
    %p79 = pneg %p73
    %p80 = scmp.eq.s32.totalorder %s14, 1
    %p81 = por %p79, %p80
    %p82 = scmp.ne.s32.totalorder %s74, %s77
    %p83 = scmp.eq.s32.totalorder %s14, 0
    %p84 = por %p82, %p83
    %p85 = scmp.ne.s32.totalorder %s74, %s77
    %p86 = scmp.eq.s32.totalorder %s19, 1
    %p87 = por %p85, %p86
    %p88 = scmp.ne.s32.totalorder %s77, %s78
    %p89 = scmp.eq.s32.totalorder %s19, 0
    %p90 = por %p88, %p89
    %p91 = scmp.ne.s32.totalorder %s77, %s78
    %p92 = scmp.eq.s32.totalorder %s20, 1
    %p93 = por %p91, %p92
    %p95 = scmp.ne.s32.totalorder %s78, %s94
    %p96 = scmp.eq.s32.totalorder %s20, 0
    %p97 = por %p95, %p96
    %s98 = smul.u32 %s22, 16
    %s99 = sadd.s32 %s98, 16
    %p100 = scmp.lt.s32.totalorder %s99, 15
    %s101 = scalar_select %p100, %s99, 15
    %s102 = smul.u32 %s29, 16
    %s103 = sadd.s32 %s102, 16
    %p104 = scmp.lt.s32.totalorder %s103, 15
    %s105 = scalar_select %p104, %s103, 15
    %s106 = ssub.s32 %s21, %s33
    %s107 = ssub.s32 %s101, %s105
    %s108 = sor.u32 %s106, %s107
    %p109 = scmp.eq.s32.totalorder %s108, 0
    %s111 = sadd.s32 %s110, 1
    %s112 = scalar_select %p109, %s110, %s111
    %p115 = pneg %p109
    %p116 = scmp.eq.s32.totalorder %s14, 1
    %p117 = por %p115, %p116
    %p118 = scmp.ne.s32.totalorder %s110, %s113
    %p119 = scmp.eq.s32.totalorder %s14, 0
    %p120 = por %p118, %p119
    %p121 = scmp.ne.s32.totalorder %s110, %s113
    %p122 = scmp.eq.s32.totalorder %s19, 1
    %p123 = por %p121, %p122
    %p124 = scmp.ne.s32.totalorder %s113, %s114
    %p125 = scmp.eq.s32.totalorder %s19, 0
    %p126 = por %p124, %p125
    %p127 = scmp.ne.s32.totalorder %s113, %s114
    %p128 = scmp.eq.s32.totalorder %s20, 1
    %p129 = por %p127, %p128
    %p131 = scmp.ne.s32.totalorder %s114, %s130
    %p132 = scmp.eq.s32.totalorder %s20, 0
    %p133 = por %p131, %p132
    %s135 = sadd.s32 %s134, 1
    %p138 = scmp.eq.s32.totalorder %s14, 1
    %p139 = scmp.ne.s32.totalorder %s134, %s136
    %p140 = scmp.eq.s32.totalorder %s14, 0
    %p141 = por %p139, %p140
    %p142 = scmp.ne.s32.totalorder %s134, %s136
    %p143 = scmp.eq.s32.totalorder %s19, 1
    %p144 = por %p142, %p143
    %p145 = scmp.ne.s32.totalorder %s136, %s137
    %p146 = scmp.eq.s32.totalorder %s19, 0
    %p147 = por %p145, %p146
    %p148 = scmp.ne.s32.totalorder %s136, %s137
    %p149 = scmp.eq.s32.totalorder %s20, 1
    %p150 = por %p148, %p149
    %p152 = scmp.ne.s32.totalorder %s137, %s151
    %p153 = scmp.eq.s32.totalorder %s20, 0
    %p154 = por %p152, %p153
    %s156 = sadd.s32 %s155, 1
    %p159 = scmp.eq.s32.totalorder %s14, 1
    %p160 = scmp.ne.s32.totalorder %s155, %s157
    %p161 = scmp.eq.s32.totalorder %s14, 0
    %p162 = por %p160, %p161
    %p163 = scmp.ne.s32.totalorder %s155, %s157
    %p164 = scmp.eq.s32.totalorder %s19, 1
    %p165 = por %p163, %p164
    %p166 = scmp.ne.s32.totalorder %s157, %s158
    %p167 = scmp.eq.s32.totalorder %s19, 0
    %p168 = por %p166, %p167
    %p169 = scmp.ne.s32.totalorder %s157, %s158
    %p170 = scmp.eq.s32.totalorder %s20, 1
    %p171 = por %p169, %p170
    %p173 = scmp.ne.s32.totalorder %s158, %s172
    %p174 = scmp.eq.s32.totalorder %s20, 0
    %p175 = por %p173, %p174
    %s177 = sadd.s32 %s176, 1
    %p180 = scmp.eq.s32.totalorder %s14, 1
    %p181 = scmp.ne.s32.totalorder %s176, %s178
    %p182 = scmp.eq.s32.totalorder %s14, 0
    %p183 = por %p181, %p182
    %p184 = scmp.ne.s32.totalorder %s176, %s178
    %p185 = scmp.eq.s32.totalorder %s19, 1
    %p186 = por %p184, %p185
    %p187 = scmp.ne.s32.totalorder %s178, %s179
    %p188 = scmp.eq.s32.totalorder %s19, 0
    %p189 = por %p187, %p188
    %p190 = scmp.ne.s32.totalorder %s178, %s179
    %p191 = scmp.eq.s32.totalorder %s20, 1
    %p192 = por %p190, %p191
    %p194 = scmp.ne.s32.totalorder %s179, %s193
    %p195 = scmp.eq.s32.totalorder %s20, 0
    %p196 = por %p194, %p195
    %s197 = ssub.s32 %s21, %s33
    %s198 = ssub.s32 %s22, %s29
    %s199 = sor.u32 %s197, %s198
    %p200 = scmp.eq.s32.totalorder %s199, 0
    %s202 = sadd.s32 %s201, 1
    %s203 = scalar_select %p200, %s201, %s202
    %p206 = pneg %p200
    %p207 = scmp.eq.s32.totalorder %s14, 1
    %p208 = por %p206, %p207
    %p209 = scmp.ne.s32.totalorder %s201, %s204
    %p210 = scmp.eq.s32.totalorder %s14, 0
    %p211 = por %p209, %p210
    %p212 = scmp.ne.s32.totalorder %s201, %s204
    %p213 = scmp.eq.s32.totalorder %s19, 1
    %p214 = por %p212, %p213
    %p215 = scmp.ne.s32.totalorder %s204, %s205
    %p216 = scmp.eq.s32.totalorder %s19, 0
    %p217 = por %p215, %p216
    %p218 = scmp.ne.s32.totalorder %s204, %s205
    %p219 = scmp.eq.s32.totalorder %s20, 1
    %p220 = por %p218, %p219
    %p222 = scmp.ne.s32.totalorder %s205, %s221
    %p223 = scmp.eq.s32.totalorder %s20, 0
    %p224 = por %p222, %p223
    %s225 = ssub.s32 %s21, %s33
    %s226 = ssub.s32 %s22, %s29
    %s227 = sor.u32 %s225, %s226
    %p228 = scmp.eq.s32.totalorder %s227, 0
    %s230 = sadd.s32 %s229, 1
    %s231 = scalar_select %p228, %s229, %s230
    %p234 = pneg %p228
    %p235 = scmp.eq.s32.totalorder %s14, 1
    %p236 = por %p234, %p235
    %p237 = scmp.ne.s32.totalorder %s229, %s232
    %p238 = scmp.eq.s32.totalorder %s14, 0
    %p239 = por %p237, %p238
    %p240 = scmp.ne.s32.totalorder %s229, %s232
    %p241 = scmp.eq.s32.totalorder %s19, 1
    %p242 = por %p240, %p241
    %p243 = scmp.ne.s32.totalorder %s232, %s233
    %p244 = scmp.eq.s32.totalorder %s19, 0
    %p245 = por %p243, %p244
    %p246 = scmp.ne.s32.totalorder %s232, %s233
    %p247 = scmp.eq.s32.totalorder %s20, 1
    %p248 = por %p246, %p247
    %p250 = scmp.ne.s32.totalorder %s233, %s249
    %p251 = scmp.eq.s32.totalorder %s20, 0
    %p252 = por %p250, %p251
    %p253 = scmp.le.s32.totalorder 1, %s14
    %p254 = scmp.lt.s32.totalorder %s14, 3
    %p255 = pnand %p253, %p254
    %p256 = pneg %p255
    // Predicated region
    $region9: #{bottleneck_forward.5} parent=5 // pred_check
      _
    $region10: #{bottleneck_forward.5} parent=5 // pred_check_branch
      %258 = sbr.rel (%p255) target = $region12
    $region11: #{bottleneck_forward.5} parent=5 // pred_region
      %s259 = ssub.s32 %s14, 1
      // Predicated region
      $region13: #{bottleneck_forward.5} parent=11 // pred_check
        %p260 = pneg %p147
      $region14: #{bottleneck_forward.5} parent=11 // pred_check_branch
        %262 = sbr.rel (%p260) target = $region16
      $region15: #{bottleneck_forward.5} parent=11 // pred_region
        _
      $region16: #{bottleneck_forward.5} parent=11 // pred_fallthru
        _
      // Predicated region
      $region17: #{bottleneck_forward.5} parent=11 // pred_check
        %p263 = pneg %p168
      $region18: #{bottleneck_forward.5} parent=11 // pred_check_branch
        %265 = sbr.rel (%p263) target = $region20
      $region19: #{bottleneck_forward.5} parent=11 // pred_region
        _
      $region20: #{bottleneck_forward.5} parent=11 // pred_fallthru
        _
      // Predicated region
      $region21: #{bottleneck_forward.5} parent=11 // pred_check
        %p266 = pneg %p189
      $region22: #{bottleneck_forward.5} parent=11 // pred_check_branch
        %268 = sbr.rel (%p266) target = $region24
      $region23: #{bottleneck_forward.5} parent=11 // pred_region
        _
      $region24: #{bottleneck_forward.5} parent=11 // pred_fallthru
        _
    $region12: #{bottleneck_forward.5} parent=5 // pred_fallthru
      _
    %p269 = scmp.lt.s32.totalorder %s14, 2
    // Predicated region
    $region25: #{bottleneck_forward.5} parent=5 // pred_check
      %p270 = pneg %p269
    $region26: #{bottleneck_forward.5} parent=5 // pred_check_branch
      %272 = sbr.rel (%p270) target = $region28
    $region27: #{bottleneck_forward.5} parent=5 // pred_region
      // Predicated region
      $region29: #{bottleneck_forward.5} parent=27 // pred_check
        %p273 = pneg %p48
      $region30: #{bottleneck_forward.5} parent=27 // pred_check_branch
        %275 = sbr.rel (%p273) target = $region32
      $region31: #{bottleneck_forward.5} parent=27 // pred_region
        %s276 = smul.u32 16, %s22
        %p277 = scmp.lt.s32.totalorder %s21, 1
        %s278 = scalar_select %p277, %s21, 1
        %p279 = scmp.lt.s32.totalorder %s276, 15
        %s280 = scalar_select %p279, %s276, 15
        %s281 = smul.addr %s280, 2
        %s282 = smul.addr %s278, 32
        %s283 = sadd.s32 %s281, %s282
        %s284 = smul.addr %s283, 4
        %s285 = scalar_lea.vmem %s0, %s284
        %s286 = smul.u32 16, %s22
      $region32: #{bottleneck_forward.5} parent=27 // pred_fallthru
        _
      // Predicated region
      $region33: #{bottleneck_forward.5} parent=27 // pred_check
        %p287 = pneg %p84
      $region34: #{bottleneck_forward.5} parent=27 // pred_check_branch
        %289 = sbr.rel (%p287) target = $region36
      $region35: #{bottleneck_forward.5} parent=27 // pred_region
        %s290 = smul.u32 %s22, 16
        %s291 = ssub.s32 %s290, 1
        %p292 = scmp.gt.s32.totalorder %s291, 0
        %s293 = scalar_select %p292, %s291, 0
        %p294 = scmp.lt.s32.totalorder %s21, 1
        %s295 = scalar_select %p294, %s21, 1
        %p296 = scmp.lt.s32.totalorder %s293, 15
        %s297 = scalar_select %p296, %s293, 15
        %s298 = smul.addr %s297, 2
        %s299 = smul.addr %s295, 32
        %s300 = sadd.s32 %s298, %s299
        %s301 = smul.addr %s300, 4
        %s302 = scalar_lea.vmem %s1, %s301
        %s303 = smul.u32 %s22, 16
        %s304 = ssub.s32 %s303, 1
        %p305 = scmp.gt.s32.totalorder %s304, 0
        %s306 = scalar_select %p305, %s304, 0
      $region36: #{bottleneck_forward.5} parent=27 // pred_fallthru
        _
      // Predicated region
      $region37: #{bottleneck_forward.5} parent=27 // pred_check
        %p307 = pneg %p120
      $region38: #{bottleneck_forward.5} parent=27 // pred_check_branch
        %309 = sbr.rel (%p307) target = $region40
      $region39: #{bottleneck_forward.5} parent=27 // pred_region
        %s310 = smul.u32 %s22, 16
        %s311 = sadd.s32 %s310, 16
        %p312 = scmp.lt.s32.totalorder %s311, 15
        %s313 = scalar_select %p312, %s311, 15
        %p314 = scmp.lt.s32.totalorder %s21, 1
        %s315 = scalar_select %p314, %s21, 1
        %p316 = scmp.lt.s32.totalorder %s313, 15
        %s317 = scalar_select %p316, %s313, 15
        %s318 = smul.addr %s317, 2
        %s319 = smul.addr %s315, 32
        %s320 = sadd.s32 %s318, %s319
        %s321 = smul.addr %s320, 4
        %s322 = scalar_lea.vmem %s2, %s321
        %s323 = smul.u32 %s22, 16
        %s324 = sadd.s32 %s323, 16
        %p325 = scmp.lt.s32.totalorder %s324, 15
        %s326 = scalar_select %p325, %s324, 15
      $region40: #{bottleneck_forward.5} parent=27 // pred_fallthru
        _
    $region28: #{bottleneck_forward.5} parent=5 // pred_fallthru
      _
    %p327 = scmp.le.s32.totalorder 1, %s14
    %p328 = scmp.lt.s32.totalorder %s14, 3
    %p329 = pnand %p327, %p328
    %p330 = pneg %p329
    // Predicated region
    $region41: #{bottleneck_forward.5} parent=5 // pred_check
      _
    $region42: #{bottleneck_forward.5} parent=5 // pred_check_branch
      %332 = sbr.rel (%p329) target = $region44
    $region43: #{bottleneck_forward.5} parent=5 // pred_region
      %s333 = ssub.s32 %s14, 1
      %s334 = smul.u32 16, %s24
      %p335 = scmp.lt.s32.totalorder %s23, 1
      %s336 = scalar_select %p335, %s23, 1
      %p337 = scmp.lt.s32.totalorder %s334, 15
      %s338 = scalar_select %p337, %s334, 15
      %s339 = smul.addr %s338, 2
      %s340 = smul.addr %s336, 32
      %s341 = sadd.s32 %s339, %s340
      %s342 = smul.addr %s341, 4
      %s343 = scalar_lea.vmem %s0, %s342
      %p344 = pneg %p54
      %p345 = pneg %p51
      %s346 = smul.u32 %s24, 16
      %s347 = ssub.s32 %s346, 1
      %p348 = scmp.gt.s32.totalorder %s347, 0
      %s349 = scalar_select %p348, %s347, 0
      %p350 = scmp.lt.s32.totalorder %s23, 1
      %s351 = scalar_select %p350, %s23, 1
      %p352 = scmp.lt.s32.totalorder %s349, 15
      %s353 = scalar_select %p352, %s349, 15
      %s354 = smul.addr %s353, 2
      %s355 = smul.addr %s351, 32
      %s356 = sadd.s32 %s354, %s355
      %s357 = smul.addr %s356, 4
      %s358 = scalar_lea.vmem %s1, %s357
      %p359 = pneg %p90
      %p360 = pneg %p87
      %s361 = smul.u32 %s24, 16
      %s362 = sadd.s32 %s361, 16
      %p363 = scmp.lt.s32.totalorder %s362, 15
      %s364 = scalar_select %p363, %s362, 15
      %p365 = scmp.lt.s32.totalorder %s23, 1
      %s366 = scalar_select %p365, %s23, 1
      %p367 = scmp.lt.s32.totalorder %s364, 15
      %s368 = scalar_select %p367, %s364, 15
      %s369 = smul.addr %s368, 2
      %s370 = smul.addr %s366, 32
      %s371 = sadd.s32 %s369, %s370
      %s372 = smul.addr %s371, 4
      %s373 = scalar_lea.vmem %s2, %s372
      %p374 = pneg %p126
      %p375 = pneg %p123
      %p376 = pneg %p147
      %p377 = pneg %p144
      %p378 = pneg %p168
      %p379 = pneg %p165
      %p380 = pneg %p189
      %p381 = pneg %p186
      %p382 = pneg %p217
      %p383 = pneg %p214
      %p384 = scmp.lt.s32.totalorder %s23, 1
      %s385 = scalar_select %p384, %s23, 1
      %p386 = scmp.lt.s32.totalorder %s24, 0
      %s387 = scalar_select %p386, %s24, 0
      %s388 = smul.addr %s387, 32
      %s389 = smul.addr %s385, 32
      %s390 = sadd.s32 %s388, %s389
      %s391 = smul.addr %s390, 4
      %s392 = scalar_lea.vmem %s6, %s391
      %p393 = pneg %p245
      %p394 = pneg %p242
      %p395 = scmp.lt.s32.totalorder %s23, 1
      %s396 = scalar_select %p395, %s23, 1
      %p397 = scmp.lt.s32.totalorder %s24, 0
      %s398 = scalar_select %p397, %s24, 0
      %s399 = sadd.s32 %s398, %s396
      %s400 = smul.addr %s399, 2
      %s401 = scalar_lea.vmem %s7, %s400
      %s402 = smul.u32 16, %s24
      %p403 = scmp.lt.s32.totalorder %s23, 1
      %s404 = scalar_select %p403, %s23, 1
      %p405 = scmp.lt.s32.totalorder %s402, 15
      %s406 = scalar_select %p405, %s402, 15
      %s407 = smul.addr %s406, 2
      %s408 = smul.addr %s404, 32
      %s409 = sadd.s32 %s407, %s408
      %s410 = smul.addr %s409, 4
      %s411 = scalar_lea.vmem %s0, %s410
      %s412 = smul.u32 16, %s24
      %s413 = smul.u32 %s24, 16
      %s414 = ssub.s32 %s413, 1
      %p415 = scmp.gt.s32.totalorder %s414, 0
      %s416 = scalar_select %p415, %s414, 0
      %p417 = scmp.lt.s32.totalorder %s23, 1
      %s418 = scalar_select %p417, %s23, 1
      %p419 = scmp.lt.s32.totalorder %s416, 15
      %s420 = scalar_select %p419, %s416, 15
      %s421 = smul.addr %s420, 2
      %s422 = smul.addr %s418, 32
      %s423 = sadd.s32 %s421, %s422
      %s424 = smul.addr %s423, 4
      %s425 = scalar_lea.vmem %s1, %s424
      %s426 = smul.u32 %s24, 16
      %s427 = ssub.s32 %s426, 1
      %p428 = scmp.gt.s32.totalorder %s427, 0
      %s429 = scalar_select %p428, %s427, 0
      %s430 = smul.u32 %s24, 16
      %s431 = sadd.s32 %s430, 16
      %p432 = scmp.lt.s32.totalorder %s431, 15
      %s433 = scalar_select %p432, %s431, 15
      %p434 = scmp.lt.s32.totalorder %s23, 1
      %s435 = scalar_select %p434, %s23, 1
      %p436 = scmp.lt.s32.totalorder %s433, 15
      %s437 = scalar_select %p436, %s433, 15
      %s438 = smul.addr %s437, 2
      %s439 = smul.addr %s435, 32
      %s440 = sadd.s32 %s438, %s439
      %s441 = smul.addr %s440, 4
      %s442 = scalar_lea.vmem %s2, %s441
      %s443 = smul.u32 %s24, 16
      %s444 = sadd.s32 %s443, 16
      %p445 = scmp.lt.s32.totalorder %s444, 15
      %s446 = scalar_select %p445, %s444, 15
      %p447 = scmp.lt.s32.totalorder %s23, 1
      %s448 = scalar_select %p447, %s23, 1
      %p449 = scmp.lt.s32.totalorder %s24, 0
      %s450 = scalar_select %p449, %s24, 0
      %s451 = smul.addr %s450, 32
      %s452 = smul.addr %s448, 32
      %s453 = sadd.s32 %s451, %s452
      %s454 = smul.addr %s453, 4
      %s455 = scalar_lea.vmem %s6, %s454
      %p456 = scmp.lt.s32.totalorder %s23, 1
      %s457 = scalar_select %p456, %s23, 1
      %p458 = scmp.lt.s32.totalorder %s24, 0
      %s459 = scalar_select %p458, %s24, 0
      %s460 = sadd.s32 %s459, %s457
      %s461 = smul.addr %s460, 2
      %s462 = scalar_lea.vmem %s7, %s461
      %v464 = vld [vmem:[%s3] sm:$0x1]
      %v465 = vld [vmem:[%s4] sm:$0x1]
      %v466 = vld [vmem:[%s411] sm:$0xf]
      %v467 = vld [vmem:[%s411 + $0x4] sm:$0xf]
      %v468 = vld [vmem:[%s411 + $0x8] sm:$0xf]
      %v469 = vld [vmem:[%s411 + $0xc] sm:$0xf]
      %v470 = vld [vmem:[%s411 + $0x10] sm:$0xf]
      %v471 = vld [vmem:[%s411 + $0x14] sm:$0xf]
      %v472 = vld [vmem:[%s411 + $0x18] sm:$0xf]
      %v473 = vld [vmem:[%s411 + $0x1c] sm:$0xf]
      %v474 = vld [vmem:[%s411 + $0x20] sm:$0xf]
      %v475 = vld [vmem:[%s411 + $0x24] sm:$0xf]
      %v476 = vld [vmem:[%s411 + $0x28] sm:$0xf]
      %v477 = vld [vmem:[%s411 + $0x2c] sm:$0xf]
      %v478 = vld [vmem:[%s411 + $0x30] sm:$0xf]
      %v479 = vld [vmem:[%s411 + $0x34] sm:$0xf]
      %v480 = vld [vmem:[%s411 + $0x38] sm:$0xf]
      %v481 = vld [vmem:[%s411 + $0x3c] sm:$0xf]
      %v482 = vld [vmem:[%s411 + $0x40] sm:$0xf]
      %v483 = vld [vmem:[%s411 + $0x44] sm:$0xf]
      %v484 = vld [vmem:[%s411 + $0x48] sm:$0xf]
      %v485 = vld [vmem:[%s411 + $0x4c] sm:$0xf]
      %v486 = vld [vmem:[%s411 + $0x50] sm:$0xf]
      %v487 = vld [vmem:[%s411 + $0x54] sm:$0xf]
      %v488 = vld [vmem:[%s411 + $0x58] sm:$0xf]
      %v489 = vld [vmem:[%s411 + $0x5c] sm:$0xf]
      %v490 = vld [vmem:[%s411 + $0x60] sm:$0xf]
      %v491 = vld [vmem:[%s411 + $0x64] sm:$0xf]
      %v492 = vld [vmem:[%s411 + $0x68] sm:$0xf]
      %v493 = vld [vmem:[%s411 + $0x6c] sm:$0xf]
      %v494 = vld [vmem:[%s411 + $0x70] sm:$0xf]
      %v495 = vld [vmem:[%s411 + $0x74] sm:$0xf]
      %v496 = vld [vmem:[%s411 + $0x78] sm:$0xf]
      %v497 = vld [vmem:[%s411 + $0x7c] sm:$0xf]
      %v498 = vld [vmem:[%s425] sm:$0xf]
      %v499 = vld [vmem:[%s425 + $0x4] sm:$0xf]
      %v500 = vld [vmem:[%s442] sm:$0xf]
      %v501 = vld [vmem:[%s442 + $0x4] sm:$0xf]
      %p502 = scmp.gt.s32.totalorder %s24, 0
      %v503 = vunpack.c.l.bf16 %v498
      %v504 = vunpack.c.l.bf16 %v499
      %v506 = vlaneseq
      %v507 = vshrl.u32 %v506, 7
      %v508 = vsub.s32 0, %v507
      %v509 = vrot.slane %v464, %v508
      %v511 = vmul.f32 %v503, %v509
      %v512 = vmul.f32 %v504, %v509
      %v514 = vlaneseq
      %v515 = vshrl.u32 %v514, 7
      %v516 = vsub.s32 0, %v515
      %v517 = vrot.slane %v465, %v516
      %v519 = vadd.f32 %v511, %v517
      %v520 = vadd.f32 %v512, %v517
      %v521 = vmax.f32 %v519, 0.0
      %v522 = vmax.f32 %v520, 0.0
      %v523 = vpack.c.bf16 %v522, %v521
      %s524 = scalar_select %p502, 1, 0
      %v525 = vstv %s524
      %vm526 = vcmp.eq.s32.totalorder %v525, 1
      %v527 = vsel %vm526, %v523, 0
      %p528 = scmp.lt.s32.totalorder %s24, 0
      %v529 = vunpack.c.l.bf16 %v500
      %v530 = vunpack.c.l.bf16 %v501
      %v531 = vmul.f32 %v529, %v509
      %v532 = vmul.f32 %v530, %v509
      %v533 = vadd.f32 %v531, %v517
      %v534 = vadd.f32 %v532, %v517
      %v535 = vmax.f32 %v533, 0.0
      %v536 = vmax.f32 %v534, 0.0
      %v537 = vpack.c.bf16 %v536, %v535
      %s538 = scalar_select %p528, 1, 0
      %v539 = vstv %s538
      %vm540 = vcmp.eq.s32.totalorder %v539, 1
      %v541 = vsel %vm540, %v537, 0
      %v542 = vunpack.c.l.bf16 %v466
      %v543 = vunpack.c.l.bf16 %v467
      %v544 = vunpack.c.l.bf16 %v468
      %v545 = vunpack.c.l.bf16 %v469
      %v546 = vunpack.c.l.bf16 %v470
      %v547 = vunpack.c.l.bf16 %v471
      %v548 = vunpack.c.l.bf16 %v472
      %v549 = vunpack.c.l.bf16 %v473
      %v550 = vunpack.c.l.bf16 %v474
      %v551 = vunpack.c.l.bf16 %v475
      %v552 = vunpack.c.l.bf16 %v476
      %v553 = vunpack.c.l.bf16 %v477
      %v554 = vunpack.c.l.bf16 %v478
      %v555 = vunpack.c.l.bf16 %v479
      %v556 = vunpack.c.l.bf16 %v480
      %v557 = vunpack.c.l.bf16 %v481
      %v558 = vunpack.c.l.bf16 %v482
      %v559 = vunpack.c.l.bf16 %v483
      %v560 = vunpack.c.l.bf16 %v484
      %v561 = vunpack.c.l.bf16 %v485
      %v562 = vunpack.c.l.bf16 %v486
      %v563 = vunpack.c.l.bf16 %v487
      %v564 = vunpack.c.l.bf16 %v488
      %v565 = vunpack.c.l.bf16 %v489
      %v566 = vunpack.c.l.bf16 %v490
      %v567 = vunpack.c.l.bf16 %v491
      %v568 = vunpack.c.l.bf16 %v492
      %v569 = vunpack.c.l.bf16 %v493
      %v570 = vunpack.c.l.bf16 %v494
      %v571 = vunpack.c.l.bf16 %v495
      %v572 = vunpack.c.l.bf16 %v496
      %v573 = vunpack.c.l.bf16 %v497
      %v574 = vmul.f32 %v542, %v509
      %v575 = vmul.f32 %v543, %v509
      %v576 = vmul.f32 %v544, %v509
      %v577 = vmul.f32 %v545, %v509
      %v578 = vmul.f32 %v546, %v509
      %v579 = vmul.f32 %v547, %v509
      %v580 = vmul.f32 %v548, %v509
      %v581 = vmul.f32 %v549, %v509
      %v582 = vmul.f32 %v550, %v509
      %v583 = vmul.f32 %v551, %v509
      %v584 = vmul.f32 %v552, %v509
      %v585 = vmul.f32 %v553, %v509
      %v586 = vmul.f32 %v554, %v509
      %v587 = vmul.f32 %v555, %v509
      %v588 = vmul.f32 %v556, %v509
      %v589 = vmul.f32 %v557, %v509
      %v590 = vmul.f32 %v558, %v509
      %v591 = vmul.f32 %v559, %v509
      %v592 = vmul.f32 %v560, %v509
      %v593 = vmul.f32 %v561, %v509
      %v594 = vmul.f32 %v562, %v509
      %v595 = vmul.f32 %v563, %v509
      %v596 = vmul.f32 %v564, %v509
      %v597 = vmul.f32 %v565, %v509
      %v598 = vmul.f32 %v566, %v509
      %v599 = vmul.f32 %v567, %v509
      %v600 = vmul.f32 %v568, %v509
      %v601 = vmul.f32 %v569, %v509
      %v602 = vmul.f32 %v570, %v509
      %v603 = vmul.f32 %v571, %v509
      %v604 = vmul.f32 %v572, %v509
      %v605 = vmul.f32 %v573, %v509
      %v606 = vadd.f32 %v574, %v517
      %v607 = vadd.f32 %v575, %v517
      %v608 = vadd.f32 %v576, %v517
      %v609 = vadd.f32 %v577, %v517
      %v610 = vadd.f32 %v578, %v517
      %v611 = vadd.f32 %v579, %v517
      %v612 = vadd.f32 %v580, %v517
      %v613 = vadd.f32 %v581, %v517
      %v614 = vadd.f32 %v582, %v517
      %v615 = vadd.f32 %v583, %v517
      %v616 = vadd.f32 %v584, %v517
      %v617 = vadd.f32 %v585, %v517
      %v618 = vadd.f32 %v586, %v517
      %v619 = vadd.f32 %v587, %v517
      %v620 = vadd.f32 %v588, %v517
      %v621 = vadd.f32 %v589, %v517
      %v622 = vadd.f32 %v590, %v517
      %v623 = vadd.f32 %v591, %v517
      %v624 = vadd.f32 %v592, %v517
      %v625 = vadd.f32 %v593, %v517
      %v626 = vadd.f32 %v594, %v517
      %v627 = vadd.f32 %v595, %v517
      %v628 = vadd.f32 %v596, %v517
      %v629 = vadd.f32 %v597, %v517
      %v630 = vadd.f32 %v598, %v517
      %v631 = vadd.f32 %v599, %v517
      %v632 = vadd.f32 %v600, %v517
      %v633 = vadd.f32 %v601, %v517
      %v634 = vadd.f32 %v602, %v517
      %v635 = vadd.f32 %v603, %v517
      %v636 = vadd.f32 %v604, %v517
      %v637 = vadd.f32 %v605, %v517
      %v638 = vmax.f32 %v606, 0.0
      %v639 = vmax.f32 %v607, 0.0
      %v640 = vmax.f32 %v608, 0.0
      %v641 = vmax.f32 %v609, 0.0
      %v642 = vmax.f32 %v610, 0.0
      %v643 = vmax.f32 %v611, 0.0
      %v644 = vmax.f32 %v612, 0.0
      %v645 = vmax.f32 %v613, 0.0
      %v646 = vmax.f32 %v614, 0.0
      %v647 = vmax.f32 %v615, 0.0
      %v648 = vmax.f32 %v616, 0.0
      %v649 = vmax.f32 %v617, 0.0
      %v650 = vmax.f32 %v618, 0.0
      %v651 = vmax.f32 %v619, 0.0
      %v652 = vmax.f32 %v620, 0.0
      %v653 = vmax.f32 %v621, 0.0
      %v654 = vmax.f32 %v622, 0.0
      %v655 = vmax.f32 %v623, 0.0
      %v656 = vmax.f32 %v624, 0.0
      %v657 = vmax.f32 %v625, 0.0
      %v658 = vmax.f32 %v626, 0.0
      %v659 = vmax.f32 %v627, 0.0
      %v660 = vmax.f32 %v628, 0.0
      %v661 = vmax.f32 %v629, 0.0
      %v662 = vmax.f32 %v630, 0.0
      %v663 = vmax.f32 %v631, 0.0
      %v664 = vmax.f32 %v632, 0.0
      %v665 = vmax.f32 %v633, 0.0
      %v666 = vmax.f32 %v634, 0.0
      %v667 = vmax.f32 %v635, 0.0
      %v668 = vmax.f32 %v636, 0.0
      %v669 = vmax.f32 %v637, 0.0
      %v670 = vpack.c.bf16 %v639, %v638
      %v671 = vpack.c.bf16 %v641, %v640
      %v672 = vpack.c.bf16 %v643, %v642
      %v673 = vpack.c.bf16 %v645, %v644
      %v674 = vpack.c.bf16 %v647, %v646
      %v675 = vpack.c.bf16 %v649, %v648
      %v676 = vpack.c.bf16 %v651, %v650
      %v677 = vpack.c.bf16 %v653, %v652
      %v678 = vpack.c.bf16 %v655, %v654
      %v679 = vpack.c.bf16 %v657, %v656
      %v680 = vpack.c.bf16 %v659, %v658
      %v681 = vpack.c.bf16 %v661, %v660
      %v682 = vpack.c.bf16 %v663, %v662
      %v683 = vpack.c.bf16 %v665, %v664
      %v684 = vpack.c.bf16 %v667, %v666
      %v685 = vpack.c.bf16 %v669, %v668
      %v687 = vshrl.u32 %v527, 16
      %v689 = vrot.slane %v687, 7
      %v690 = vshll.u32 %v527, 16
      %v692 = vor.u32 %v689, %v690
      %v694 = vshrl.u32 %v670, 16
      %v696 = vrot.slane %v694, 7
      %v697 = vshll.u32 %v670, 16
      %v699 = vor.u32 %v696, %v697
      %v701 = vshrl.u32 %v671, 16
      %v703 = vrot.slane %v701, 7
      %v704 = vshll.u32 %v671, 16
      %v706 = vor.u32 %v703, %v704
      %v708 = vshrl.u32 %v672, 16
      %v710 = vrot.slane %v708, 7
      %v711 = vshll.u32 %v672, 16
      %v713 = vor.u32 %v710, %v711
      %v715 = vshrl.u32 %v673, 16
      %v717 = vrot.slane %v715, 7
      %v718 = vshll.u32 %v673, 16
      %v720 = vor.u32 %v717, %v718
      %v722 = vshrl.u32 %v674, 16
      %v724 = vrot.slane %v722, 7
      %v725 = vshll.u32 %v674, 16
      %v727 = vor.u32 %v724, %v725
      %v729 = vshrl.u32 %v675, 16
      %v731 = vrot.slane %v729, 7
      %v732 = vshll.u32 %v675, 16
      %v734 = vor.u32 %v731, %v732
      %v736 = vshrl.u32 %v676, 16
      %v738 = vrot.slane %v736, 7
      %v739 = vshll.u32 %v676, 16
      %v741 = vor.u32 %v738, %v739
      %v743 = vshrl.u32 %v677, 16
      %v745 = vrot.slane %v743, 7
      %v746 = vshll.u32 %v677, 16
      %v748 = vor.u32 %v745, %v746
      %v750 = vshrl.u32 %v678, 16
      %v752 = vrot.slane %v750, 7
      %v753 = vshll.u32 %v678, 16
      %v755 = vor.u32 %v752, %v753
      %v757 = vshrl.u32 %v679, 16
      %v759 = vrot.slane %v757, 7
      %v760 = vshll.u32 %v679, 16
      %v762 = vor.u32 %v759, %v760
      %v764 = vshrl.u32 %v680, 16
      %v766 = vrot.slane %v764, 7
      %v767 = vshll.u32 %v680, 16
      %v769 = vor.u32 %v766, %v767
      %v771 = vshrl.u32 %v681, 16
      %v773 = vrot.slane %v771, 7
      %v774 = vshll.u32 %v681, 16
      %v776 = vor.u32 %v773, %v774
      %v778 = vshrl.u32 %v682, 16
      %v780 = vrot.slane %v778, 7
      %v781 = vshll.u32 %v682, 16
      %v783 = vor.u32 %v780, %v781
      %v785 = vshrl.u32 %v683, 16
      %v787 = vrot.slane %v785, 7
      %v788 = vshll.u32 %v683, 16
      %v790 = vor.u32 %v787, %v788
      %v792 = vshrl.u32 %v684, 16
      %v794 = vrot.slane %v792, 7
      %v795 = vshll.u32 %v684, 16
      %v797 = vor.u32 %v794, %v795
      %v799 = vshrl.u32 %v685, 16
      %v801 = vrot.slane %v799, 7
      %v802 = vshll.u32 %v685, 16
      %v804 = vor.u32 %v801, %v802
      %v806 = vshrl.u32 %v541, 16
      %v808 = vrot.slane %v806, 7
      %v809 = vshll.u32 %v541, 16
      %v811 = vor.u32 %v808, %v809
      %vm848 = vcmask 1040384
      %vm849 = vsmask.f32 256
      %vm850 = vmand %vm848, %vm849
      %v851 = vsel %vm850, 0, %v692
      %v852 = vsel %vm850, 0, %v699
      %v853 = vsel %vm850, 0, %v706
      %v854 = vsel %vm850, 0, %v713
      %v855 = vsel %vm850, 0, %v720
      %v856 = vsel %vm850, 0, %v727
      %v857 = vsel %vm850, 0, %v734
      %v858 = vsel %vm850, 0, %v741
      %v859 = vsel %vm850, 0, %v748
      %v860 = vsel %vm850, 0, %v755
      %v861 = vsel %vm850, 0, %v762
      %v862 = vsel %vm850, 0, %v769
      %v863 = vsel %vm850, 0, %v776
      %v864 = vsel %vm850, 0, %v783
      %v865 = vsel %vm850, 0, %v790
      %v866 = vsel %vm850, 0, %v797
      %v867 = vsel %vm850, 0, %v804
      %v868 = vsel %vm850, 0, %v811
      %v869 = vsel %vm850, %v689, 0
      %v870 = vsel %vm850, %v696, 0
      %v871 = vsel %vm850, %v703, 0
      %v872 = vsel %vm850, %v710, 0
      %v873 = vsel %vm850, %v717, 0
      %v874 = vsel %vm850, %v724, 0
      %v875 = vsel %vm850, %v731, 0
      %v876 = vsel %vm850, %v738, 0
      %v877 = vsel %vm850, %v745, 0
      %v878 = vsel %vm850, %v752, 0
      %v879 = vsel %vm850, %v759, 0
      %v880 = vsel %vm850, %v766, 0
      %v881 = vsel %vm850, %v773, 0
      %v882 = vsel %vm850, %v780, 0
      %v883 = vsel %vm850, %v787, 0
      %v884 = vsel %vm850, %v794, 0
      %v885 = vsel %vm850, %v801, 0
      %v886 = vsel %vm850, %v808, 0
      %v887 = vld [vmem:[%s5] sm:$0xf]
      %v888 = vld [vmem:[%s5 + $0x4] sm:$0xf]
      %v889 = vld [vmem:[%s5 + $0x8] sm:$0xf]
      %v890 = vld [vmem:[%s5 + $0xc] sm:$0xf]
      %v891 = vld [vmem:[%s5 + $0x10] sm:$0xf]
      %v892 = vld [vmem:[%s5 + $0x14] sm:$0xf]
      %v893 = vld [vmem:[%s5 + $0x18] sm:$0xf]
      %v894 = vld [vmem:[%s5 + $0x1c] sm:$0xf]
      %v895 = vld [vmem:[%s5 + $0x20] sm:$0xf]
      %v896 = vld [vmem:[%s5 + $0x24] sm:$0xf]
      %v897 = vld [vmem:[%s5 + $0x28] sm:$0xf]
      %v898 = vld [vmem:[%s5 + $0x2c] sm:$0xf]
      %v899 = vld [vmem:[%s5 + $0x30] sm:$0xf]
      %v900 = vld [vmem:[%s5 + $0x34] sm:$0xf]
      %v901 = vld [vmem:[%s5 + $0x38] sm:$0xf]
      %v902 = vld [vmem:[%s5 + $0x3c] sm:$0xf]
      %vm903 = vsmask.f32 7424
      %v905 = vshrl.u32 %v851, 16
      %v907 = vshll.u32 %v851, 16
      %v909 = vrot.slane %v907, 1
      %v910 = vor.u32 %v905, %v909
      %v912 = vshll.u32 %v869, 16
      %v914 = vrot.slane %v912, 1
      %v915 = vsel %vm903, %v910, %v914
      %v917 = vshrl.u32 %v852, 16
      %v919 = vshll.u32 %v852, 16
      %v921 = vrot.slane %v919, 1
      %v922 = vor.u32 %v917, %v921
      %v924 = vshll.u32 %v870, 16
      %v926 = vrot.slane %v924, 1
      %v927 = vsel %vm903, %v922, %v926
      %v929 = vshrl.u32 %v853, 16
      %v931 = vshll.u32 %v853, 16
      %v933 = vrot.slane %v931, 1
      %v934 = vor.u32 %v929, %v933
      %v936 = vshll.u32 %v871, 16
      %v938 = vrot.slane %v936, 1
      %v939 = vsel %vm903, %v934, %v938
      %v941 = vshrl.u32 %v854, 16
      %v943 = vshll.u32 %v854, 16
      %v945 = vrot.slane %v943, 1
      %v946 = vor.u32 %v941, %v945
      %v948 = vshll.u32 %v872, 16
      %v950 = vrot.slane %v948, 1
      %v951 = vsel %vm903, %v946, %v950
      %v953 = vshrl.u32 %v855, 16
      %v955 = vshll.u32 %v855, 16
      %v957 = vrot.slane %v955, 1
      %v958 = vor.u32 %v953, %v957
      %v960 = vshll.u32 %v873, 16
      %v962 = vrot.slane %v960, 1
      %v963 = vsel %vm903, %v958, %v962
      %v965 = vshrl.u32 %v856, 16
      %v967 = vshll.u32 %v856, 16
      %v969 = vrot.slane %v967, 1
      %v970 = vor.u32 %v965, %v969
      %v972 = vshll.u32 %v874, 16
      %v974 = vrot.slane %v972, 1
      %v975 = vsel %vm903, %v970, %v974
      %v977 = vshrl.u32 %v857, 16
      %v979 = vshll.u32 %v857, 16
      %v981 = vrot.slane %v979, 1
      %v982 = vor.u32 %v977, %v981
      %v984 = vshll.u32 %v875, 16
      %v986 = vrot.slane %v984, 1
      %v987 = vsel %vm903, %v982, %v986
      %v989 = vshrl.u32 %v858, 16
      %v991 = vshll.u32 %v858, 16
      %v993 = vrot.slane %v991, 1
      %v994 = vor.u32 %v989, %v993
      %v996 = vshll.u32 %v876, 16
      %v998 = vrot.slane %v996, 1
      %v999 = vsel %vm903, %v994, %v998
      %v1001 = vshrl.u32 %v859, 16
      %v1003 = vshll.u32 %v859, 16
      %v1005 = vrot.slane %v1003, 1
      %v1006 = vor.u32 %v1001, %v1005
      %v1008 = vshll.u32 %v877, 16
      %v1010 = vrot.slane %v1008, 1
      %v1011 = vsel %vm903, %v1006, %v1010
      %v1013 = vshrl.u32 %v860, 16
      %v1015 = vshll.u32 %v860, 16
      %v1017 = vrot.slane %v1015, 1
      %v1018 = vor.u32 %v1013, %v1017
      %v1020 = vshll.u32 %v878, 16
      %v1022 = vrot.slane %v1020, 1
      %v1023 = vsel %vm903, %v1018, %v1022
      %v1025 = vshrl.u32 %v861, 16
      %v1027 = vshll.u32 %v861, 16
      %v1029 = vrot.slane %v1027, 1
      %v1030 = vor.u32 %v1025, %v1029
      %v1032 = vshll.u32 %v879, 16
      %v1034 = vrot.slane %v1032, 1
      %v1035 = vsel %vm903, %v1030, %v1034
      %v1037 = vshrl.u32 %v862, 16
      %v1039 = vshll.u32 %v862, 16
      %v1041 = vrot.slane %v1039, 1
      %v1042 = vor.u32 %v1037, %v1041
      %v1044 = vshll.u32 %v880, 16
      %v1046 = vrot.slane %v1044, 1
      %v1047 = vsel %vm903, %v1042, %v1046
      %v1049 = vshrl.u32 %v863, 16
      %v1051 = vshll.u32 %v863, 16
      %v1053 = vrot.slane %v1051, 1
      %v1054 = vor.u32 %v1049, %v1053
      %v1056 = vshll.u32 %v881, 16
      %v1058 = vrot.slane %v1056, 1
      %v1059 = vsel %vm903, %v1054, %v1058
      %v1061 = vshrl.u32 %v864, 16
      %v1063 = vshll.u32 %v864, 16
      %v1065 = vrot.slane %v1063, 1
      %v1066 = vor.u32 %v1061, %v1065
      %v1068 = vshll.u32 %v882, 16
      %v1070 = vrot.slane %v1068, 1
      %v1071 = vsel %vm903, %v1066, %v1070
      %v1073 = vshrl.u32 %v865, 16
      %v1075 = vshll.u32 %v865, 16
      %v1077 = vrot.slane %v1075, 1
      %v1078 = vor.u32 %v1073, %v1077
      %v1080 = vshll.u32 %v883, 16
      %v1082 = vrot.slane %v1080, 1
      %v1083 = vsel %vm903, %v1078, %v1082
      %v1085 = vshrl.u32 %v866, 16
      %v1087 = vshll.u32 %v866, 16
      %v1089 = vrot.slane %v1087, 1
      %v1090 = vor.u32 %v1085, %v1089
      %v1092 = vshll.u32 %v884, 16
      %v1094 = vrot.slane %v1092, 1
      %v1095 = vsel %vm903, %v1090, %v1094
      %s1112 = scalar_lea.vmem %s5, 64
      %v1113 = vld [vmem:[%s1112] sm:$0xf]
      %v1114 = vld [vmem:[%s1112 + $0x4] sm:$0xf]
      %v1115 = vld [vmem:[%s1112 + $0x8] sm:$0xf]
      %v1116 = vld [vmem:[%s1112 + $0xc] sm:$0xf]
      %v1117 = vld [vmem:[%s1112 + $0x10] sm:$0xf]
      %v1118 = vld [vmem:[%s1112 + $0x14] sm:$0xf]
      %v1119 = vld [vmem:[%s1112 + $0x18] sm:$0xf]
      %v1120 = vld [vmem:[%s1112 + $0x1c] sm:$0xf]
      %v1121 = vld [vmem:[%s1112 + $0x20] sm:$0xf]
      %v1122 = vld [vmem:[%s1112 + $0x24] sm:$0xf]
      %v1123 = vld [vmem:[%s1112 + $0x28] sm:$0xf]
      %v1124 = vld [vmem:[%s1112 + $0x2c] sm:$0xf]
      %v1125 = vld [vmem:[%s1112 + $0x30] sm:$0xf]
      %v1126 = vld [vmem:[%s1112 + $0x34] sm:$0xf]
      %v1127 = vld [vmem:[%s1112 + $0x38] sm:$0xf]
      %v1128 = vld [vmem:[%s1112 + $0x3c] sm:$0xf]
      %v1145 = vunpack.c.l.b16 %v1113
      %v1146 = vunpack.c.l.b16 %v1114
      %v1147 = vunpack.c.l.b16 %v1115
      %v1148 = vunpack.c.l.b16 %v1116
      %v1149 = vunpack.c.l.b16 %v1117
      %v1150 = vunpack.c.l.b16 %v1118
      %v1151 = vunpack.c.l.b16 %v1119
      %v1152 = vunpack.c.l.b16 %v1120
      %v1153 = vunpack.c.l.b16 %v1121
      %v1154 = vunpack.c.l.b16 %v1122
      %v1155 = vunpack.c.l.b16 %v1123
      %v1156 = vunpack.c.l.b16 %v1124
      %v1157 = vunpack.c.l.b16 %v1125
      %v1158 = vunpack.c.l.b16 %v1126
      %v1159 = vunpack.c.l.b16 %v1127
      %v1160 = vunpack.c.l.b16 %v1128
      %v1161 = vpack.c.b16 %v1146, %v1145
      %v1162 = vpack.c.b16 %v1148, %v1147
      %v1163 = vpack.c.b16 %v1150, %v1149
      %v1164 = vpack.c.b16 %v1152, %v1151
      %v1165 = vpack.c.b16 %v1154, %v1153
      %v1166 = vpack.c.b16 %v1156, %v1155
      %v1167 = vpack.c.b16 %v1158, %v1157
      %v1168 = vpack.c.b16 %v1160, %v1159
      %1177 = vmatprep.subr.bf16.mxu0 0
      %1178 = vmatpush1.bf16.msra.mxu0 %v1168
      %1179 = vmatprep.subr.bf16.mxu0 0
      %1180 = vmatpush1.bf16.msra.mxu0 %v1167
      %1181 = vmatprep.subr.bf16.mxu0 0
      %1182 = vmatpush1.bf16.msra.mxu0 %v1166
      %1183 = vmatprep.subr.bf16.mxu0 0
      %1184 = vmatpush1.bf16.msra.mxu0 %v1165
      %1185 = vmatprep.subr.bf16.mxu0 0
      %1186 = vmatpush1.bf16.msra.mxu0 %v1164
      %1187 = vmatprep.subr.bf16.mxu0 0
      %1188 = vmatpush1.bf16.msra.mxu0 %v1163
      %1189 = vmatprep.subr.bf16.mxu0 0
      %1190 = vmatpush1.bf16.msra.mxu0 %v1162
      %1191 = vmatprep.subr.bf16.mxu0 0
      %1192 = vmatpush1.bf16.msra.mxu0 %v1161
      %1193 = vmatprep.subr.bf16.mxu0 0
      %1194 = vmatpush2.bf16.msra.mxu0 0
      %1195 = vmatprep.subr.bf16.mxu0 0
      %1196 = vmatpush2.bf16.msra.mxu0 0
      %1197 = vmatprep.subr.bf16.mxu0 0
      %1198 = vmatpush2.bf16.msra.mxu0 0
      %1199 = vmatprep.subr.bf16.mxu0 0
      %1200 = vmatpush2.bf16.msra.mxu0 0
      %1201 = vmatprep.subr.bf16.mxu0 0
      %1202 = vmatpush2.bf16.msra.mxu0 0
      %1203 = vmatprep.subr.bf16.mxu0 0
      %1204 = vmatpush2.bf16.msra.mxu0 0
      %1205 = vmatprep.subr.bf16.mxu0 0
      %1206 = vmatpush2.bf16.msra.mxu0 0
      %1207 = vmatprep.subr.bf16.mxu0 0
      %1208 = vmatpush2.bf16.msra.mxu0 0
      %1209 = vmatprep.mubr.bf16.mxu0 0
      %1210 = vmatmul.mubr.bf16.gmra.mxu0 %v915
      %v1211 = vpop.f32.mrf.mxu0
      %v1212 = vadd.f32 0.0, %v1211
      %v1213 = vpop.f32.mrf.mxu0
      %v1214 = vpop.f32.mrf.mxu0
      %v1215 = vadd.f32 0.0, %v1214
      %v1216 = vpop.f32.mrf.mxu0
      %1217 = vmatprep.mubr.bf16.mxu0 0
      %1218 = vmatmul.mubr.bf16.gmra.mxu0 %v927
      %v1219 = vpop.f32.mrf.mxu0
      %v1220 = vadd.f32 0.0, %v1219
      %v1221 = vpop.f32.mrf.mxu0
      %v1222 = vpop.f32.mrf.mxu0
      %v1223 = vadd.f32 0.0, %v1222
      %v1224 = vpop.f32.mrf.mxu0
      %1225 = vmatprep.mubr.bf16.mxu0 0
      %1226 = vmatmul.mubr.bf16.gmra.mxu0 %v939
      %v1227 = vpop.f32.mrf.mxu0
      %v1228 = vadd.f32 0.0, %v1227
      %v1229 = vpop.f32.mrf.mxu0
      %v1230 = vpop.f32.mrf.mxu0
      %v1231 = vadd.f32 0.0, %v1230
      %v1232 = vpop.f32.mrf.mxu0
      %1233 = vmatprep.mubr.bf16.mxu0 0
      %1234 = vmatmul.mubr.bf16.gmra.mxu0 %v951
      %v1235 = vpop.f32.mrf.mxu0
      %v1236 = vadd.f32 0.0, %v1235
      %v1237 = vpop.f32.mrf.mxu0
      %v1238 = vpop.f32.mrf.mxu0
      %v1239 = vadd.f32 0.0, %v1238
      %v1240 = vpop.f32.mrf.mxu0
      %1241 = vmatprep.mubr.bf16.mxu0 0
      %1242 = vmatmul.mubr.bf16.gmra.mxu0 %v963
      %v1243 = vpop.f32.mrf.mxu0
      %v1244 = vadd.f32 0.0, %v1243
      %v1245 = vpop.f32.mrf.mxu0
      %v1246 = vpop.f32.mrf.mxu0
      %v1247 = vadd.f32 0.0, %v1246
      %v1248 = vpop.f32.mrf.mxu0
      %1249 = vmatprep.mubr.bf16.mxu0 0
      %1250 = vmatmul.mubr.bf16.gmra.mxu0 %v975
      %v1251 = vpop.f32.mrf.mxu0
      %v1252 = vadd.f32 0.0, %v1251
      %v1253 = vpop.f32.mrf.mxu0
      %v1254 = vpop.f32.mrf.mxu0
      %v1255 = vadd.f32 0.0, %v1254
      %v1256 = vpop.f32.mrf.mxu0
      %1257 = vmatprep.mubr.bf16.mxu0 0
      %1258 = vmatmul.mubr.bf16.gmra.mxu0 %v987
      %v1259 = vpop.f32.mrf.mxu0
      %v1260 = vadd.f32 0.0, %v1259
      %v1261 = vpop.f32.mrf.mxu0
      %v1262 = vpop.f32.mrf.mxu0
      %v1263 = vadd.f32 0.0, %v1262
      %v1264 = vpop.f32.mrf.mxu0
      %1265 = vmatprep.mubr.bf16.mxu0 0
      %1266 = vmatmul.mubr.bf16.gmra.mxu0 %v999
      %v1267 = vpop.f32.mrf.mxu0
      %v1268 = vadd.f32 0.0, %v1267
      %v1269 = vpop.f32.mrf.mxu0
      %v1270 = vpop.f32.mrf.mxu0
      %v1271 = vadd.f32 0.0, %v1270
      %v1272 = vpop.f32.mrf.mxu0
      %1273 = vmatprep.mubr.bf16.mxu0 0
      %1274 = vmatmul.mubr.bf16.gmra.mxu0 %v1011
      %v1275 = vpop.f32.mrf.mxu0
      %v1276 = vadd.f32 0.0, %v1275
      %v1277 = vpop.f32.mrf.mxu0
      %v1278 = vpop.f32.mrf.mxu0
      %v1279 = vadd.f32 0.0, %v1278
      %v1280 = vpop.f32.mrf.mxu0
      %1281 = vmatprep.mubr.bf16.mxu0 0
      %1282 = vmatmul.mubr.bf16.gmra.mxu0 %v1023
      %v1283 = vpop.f32.mrf.mxu0
      %v1284 = vadd.f32 0.0, %v1283
      %v1285 = vpop.f32.mrf.mxu0
      %v1286 = vpop.f32.mrf.mxu0
      %v1287 = vadd.f32 0.0, %v1286
      %v1288 = vpop.f32.mrf.mxu0
      %1289 = vmatprep.mubr.bf16.mxu0 0
      %1290 = vmatmul.mubr.bf16.gmra.mxu0 %v1035
      %v1291 = vpop.f32.mrf.mxu0
      %v1292 = vadd.f32 0.0, %v1291
      %v1293 = vpop.f32.mrf.mxu0
      %v1294 = vpop.f32.mrf.mxu0
      %v1295 = vadd.f32 0.0, %v1294
      %v1296 = vpop.f32.mrf.mxu0
      %1297 = vmatprep.mubr.bf16.mxu0 0
      %1298 = vmatmul.mubr.bf16.gmra.mxu0 %v1047
      %v1299 = vpop.f32.mrf.mxu0
      %v1300 = vadd.f32 0.0, %v1299
      %v1301 = vpop.f32.mrf.mxu0
      %v1302 = vpop.f32.mrf.mxu0
      %v1303 = vadd.f32 0.0, %v1302
      %v1304 = vpop.f32.mrf.mxu0
      %1305 = vmatprep.mubr.bf16.mxu0 0
      %1306 = vmatmul.mubr.bf16.gmra.mxu0 %v1059
      %v1307 = vpop.f32.mrf.mxu0
      %v1308 = vadd.f32 0.0, %v1307
      %v1309 = vpop.f32.mrf.mxu0
      %v1310 = vpop.f32.mrf.mxu0
      %v1311 = vadd.f32 0.0, %v1310
      %v1312 = vpop.f32.mrf.mxu0
      %1313 = vmatprep.mubr.bf16.mxu0 0
      %1314 = vmatmul.mubr.bf16.gmra.mxu0 %v1071
      %v1315 = vpop.f32.mrf.mxu0
      %v1316 = vadd.f32 0.0, %v1315
      %v1317 = vpop.f32.mrf.mxu0
      %v1318 = vpop.f32.mrf.mxu0
      %v1319 = vadd.f32 0.0, %v1318
      %v1320 = vpop.f32.mrf.mxu0
      %1321 = vmatprep.mubr.bf16.mxu0 0
      %1322 = vmatmul.mubr.bf16.gmra.mxu0 %v1083
      %v1323 = vpop.f32.mrf.mxu0
      %v1324 = vadd.f32 0.0, %v1323
      %v1325 = vpop.f32.mrf.mxu0
      %v1326 = vpop.f32.mrf.mxu0
      %v1327 = vadd.f32 0.0, %v1326
      %v1328 = vpop.f32.mrf.mxu0
      %1329 = vmatprep.mubr.bf16.mxu0 0
      %1330 = vmatmul.mubr.bf16.gmra.mxu0 %v1095
      %v1331 = vpop.f32.mrf.mxu0
      %v1332 = vadd.f32 0.0, %v1331
      %v1333 = vpop.f32.mrf.mxu0
      %v1334 = vpop.f32.mrf.mxu0
      %v1335 = vadd.f32 0.0, %v1334
      %v1336 = vpop.f32.mrf.mxu0
      %1337 = vdwg.mxu0
      %v1354 = vunpack.c.l.b16 %v887
      %v1355 = vunpack.c.l.b16 %v888
      %v1356 = vunpack.c.l.b16 %v889
      %v1357 = vunpack.c.l.b16 %v890
      %v1358 = vunpack.c.l.b16 %v891
      %v1359 = vunpack.c.l.b16 %v892
      %v1360 = vunpack.c.l.b16 %v893
      %v1361 = vunpack.c.l.b16 %v894
      %v1362 = vunpack.c.l.b16 %v895
      %v1363 = vunpack.c.l.b16 %v896
      %v1364 = vunpack.c.l.b16 %v897
      %v1365 = vunpack.c.l.b16 %v898
      %v1366 = vunpack.c.l.b16 %v899
      %v1367 = vunpack.c.l.b16 %v900
      %v1368 = vunpack.c.l.b16 %v901
      %v1369 = vunpack.c.l.b16 %v902
      %v1370 = vpack.c.b16 %v1355, %v1354
      %v1371 = vpack.c.b16 %v1357, %v1356
      %v1372 = vpack.c.b16 %v1359, %v1358
      %v1373 = vpack.c.b16 %v1361, %v1360
      %v1374 = vpack.c.b16 %v1363, %v1362
      %v1375 = vpack.c.b16 %v1365, %v1364
      %v1376 = vpack.c.b16 %v1367, %v1366
      %v1377 = vpack.c.b16 %v1369, %v1368
      %1386 = vmatprep.subr.bf16.mxu0 0
      %1387 = vmatpush1.bf16.msra.mxu0 %v1377
      %1388 = vmatprep.subr.bf16.mxu0 0
      %1389 = vmatpush1.bf16.msra.mxu0 %v1376
      %1390 = vmatprep.subr.bf16.mxu0 0
      %1391 = vmatpush1.bf16.msra.mxu0 %v1375
      %1392 = vmatprep.subr.bf16.mxu0 0
      %1393 = vmatpush1.bf16.msra.mxu0 %v1374
      %1394 = vmatprep.subr.bf16.mxu0 0
      %1395 = vmatpush1.bf16.msra.mxu0 %v1373
      %1396 = vmatprep.subr.bf16.mxu0 0
      %1397 = vmatpush1.bf16.msra.mxu0 %v1372
      %1398 = vmatprep.subr.bf16.mxu0 0
      %1399 = vmatpush1.bf16.msra.mxu0 %v1371
      %1400 = vmatprep.subr.bf16.mxu0 0
      %1401 = vmatpush1.bf16.msra.mxu0 %v1370
      %1402 = vmatprep.subr.bf16.mxu0 0
      %1403 = vmatpush2.bf16.msra.mxu0 0
      %1404 = vmatprep.subr.bf16.mxu0 0
      %1405 = vmatpush2.bf16.msra.mxu0 0
      %1406 = vmatprep.subr.bf16.mxu0 0
      %1407 = vmatpush2.bf16.msra.mxu0 0
      %1408 = vmatprep.subr.bf16.mxu0 0
      %1409 = vmatpush2.bf16.msra.mxu0 0
      %1410 = vmatprep.subr.bf16.mxu0 0
      %1411 = vmatpush2.bf16.msra.mxu0 0
      %1412 = vmatprep.subr.bf16.mxu0 0
      %1413 = vmatpush2.bf16.msra.mxu0 0
      %1414 = vmatprep.subr.bf16.mxu0 0
      %1415 = vmatpush2.bf16.msra.mxu0 0
      %1416 = vmatprep.subr.bf16.mxu0 0
      %1417 = vmatpush2.bf16.msra.mxu0 0
      %1418 = vmatprep.mubr.bf16.mxu0 0
      %1419 = vmatmul.mubr.bf16.gmra.mxu0 %v851
      %v1420 = vpop.f32.mrf.mxu0
      %v1421 = vadd.f32 %v1212, %v1420
      %v1422 = vpop.f32.mrf.mxu0
      %v1423 = vpop.f32.mrf.mxu0
      %v1424 = vadd.f32 %v1215, %v1423
      %v1425 = vpop.f32.mrf.mxu0
      %1426 = vmatprep.mubr.bf16.mxu0 0
      %1427 = vmatmul.mubr.bf16.gmra.mxu0 %v852
      %v1428 = vpop.f32.mrf.mxu0
      %v1429 = vadd.f32 %v1220, %v1428
      %v1430 = vpop.f32.mrf.mxu0
      %v1431 = vpop.f32.mrf.mxu0
      %v1432 = vadd.f32 %v1223, %v1431
      %v1433 = vpop.f32.mrf.mxu0
      %1434 = vmatprep.mubr.bf16.mxu0 0
      %1435 = vmatmul.mubr.bf16.gmra.mxu0 %v853
      %v1436 = vpop.f32.mrf.mxu0
      %v1437 = vadd.f32 %v1228, %v1436
      %v1438 = vpop.f32.mrf.mxu0
      %v1439 = vpop.f32.mrf.mxu0
      %v1440 = vadd.f32 %v1231, %v1439
      %v1441 = vpop.f32.mrf.mxu0
      %1442 = vmatprep.mubr.bf16.mxu0 0
      %1443 = vmatmul.mubr.bf16.gmra.mxu0 %v854
      %v1444 = vpop.f32.mrf.mxu0
      %v1445 = vadd.f32 %v1236, %v1444
      %v1446 = vpop.f32.mrf.mxu0
      %v1447 = vpop.f32.mrf.mxu0
      %v1448 = vadd.f32 %v1239, %v1447
      %v1449 = vpop.f32.mrf.mxu0
      %1450 = vmatprep.mubr.bf16.mxu0 0
      %1451 = vmatmul.mubr.bf16.gmra.mxu0 %v855
      %v1452 = vpop.f32.mrf.mxu0
      %v1453 = vadd.f32 %v1244, %v1452
      %v1454 = vpop.f32.mrf.mxu0
      %v1455 = vpop.f32.mrf.mxu0
      %v1456 = vadd.f32 %v1247, %v1455
      %v1457 = vpop.f32.mrf.mxu0
      %1458 = vmatprep.mubr.bf16.mxu0 0
      %1459 = vmatmul.mubr.bf16.gmra.mxu0 %v856
      %v1460 = vpop.f32.mrf.mxu0
      %v1461 = vadd.f32 %v1252, %v1460
      %v1462 = vpop.f32.mrf.mxu0
      %v1463 = vpop.f32.mrf.mxu0
      %v1464 = vadd.f32 %v1255, %v1463
      %v1465 = vpop.f32.mrf.mxu0
      %1466 = vmatprep.mubr.bf16.mxu0 0
      %1467 = vmatmul.mubr.bf16.gmra.mxu0 %v857
      %v1468 = vpop.f32.mrf.mxu0
      %v1469 = vadd.f32 %v1260, %v1468
      %v1470 = vpop.f32.mrf.mxu0
      %v1471 = vpop.f32.mrf.mxu0
      %v1472 = vadd.f32 %v1263, %v1471
      %v1473 = vpop.f32.mrf.mxu0
      %1474 = vmatprep.mubr.bf16.mxu0 0
      %1475 = vmatmul.mubr.bf16.gmra.mxu0 %v858
      %v1476 = vpop.f32.mrf.mxu0
      %v1477 = vadd.f32 %v1268, %v1476
      %v1478 = vpop.f32.mrf.mxu0
      %v1479 = vpop.f32.mrf.mxu0
      %v1480 = vadd.f32 %v1271, %v1479
      %v1481 = vpop.f32.mrf.mxu0
      %1482 = vmatprep.mubr.bf16.mxu0 0
      %1483 = vmatmul.mubr.bf16.gmra.mxu0 %v859
      %v1484 = vpop.f32.mrf.mxu0
      %v1485 = vadd.f32 %v1276, %v1484
      %v1486 = vpop.f32.mrf.mxu0
      %v1487 = vpop.f32.mrf.mxu0
      %v1488 = vadd.f32 %v1279, %v1487
      %v1489 = vpop.f32.mrf.mxu0
      %1490 = vmatprep.mubr.bf16.mxu0 0
      %1491 = vmatmul.mubr.bf16.gmra.mxu0 %v860
      %v1492 = vpop.f32.mrf.mxu0
      %v1493 = vadd.f32 %v1284, %v1492
      %v1494 = vpop.f32.mrf.mxu0
      %v1495 = vpop.f32.mrf.mxu0
      %v1496 = vadd.f32 %v1287, %v1495
      %v1497 = vpop.f32.mrf.mxu0
      %1498 = vmatprep.mubr.bf16.mxu0 0
      %1499 = vmatmul.mubr.bf16.gmra.mxu0 %v861
      %v1500 = vpop.f32.mrf.mxu0
      %v1501 = vadd.f32 %v1292, %v1500
      %v1502 = vpop.f32.mrf.mxu0
      %v1503 = vpop.f32.mrf.mxu0
      %v1504 = vadd.f32 %v1295, %v1503
      %v1505 = vpop.f32.mrf.mxu0
      %1506 = vmatprep.mubr.bf16.mxu0 0
      %1507 = vmatmul.mubr.bf16.gmra.mxu0 %v862
      %v1508 = vpop.f32.mrf.mxu0
      %v1509 = vadd.f32 %v1300, %v1508
      %v1510 = vpop.f32.mrf.mxu0
      %v1511 = vpop.f32.mrf.mxu0
      %v1512 = vadd.f32 %v1303, %v1511
      %v1513 = vpop.f32.mrf.mxu0
      %1514 = vmatprep.mubr.bf16.mxu0 0
      %1515 = vmatmul.mubr.bf16.gmra.mxu0 %v863
      %v1516 = vpop.f32.mrf.mxu0
      %v1517 = vadd.f32 %v1308, %v1516
      %v1518 = vpop.f32.mrf.mxu0
      %v1519 = vpop.f32.mrf.mxu0
      %v1520 = vadd.f32 %v1311, %v1519
      %v1521 = vpop.f32.mrf.mxu0
      %1522 = vmatprep.mubr.bf16.mxu0 0
      %1523 = vmatmul.mubr.bf16.gmra.mxu0 %v864
      %v1524 = vpop.f32.mrf.mxu0
      %v1525 = vadd.f32 %v1316, %v1524
      %v1526 = vpop.f32.mrf.mxu0
      %v1527 = vpop.f32.mrf.mxu0
      %v1528 = vadd.f32 %v1319, %v1527
      %v1529 = vpop.f32.mrf.mxu0
      %1530 = vmatprep.mubr.bf16.mxu0 0
      %1531 = vmatmul.mubr.bf16.gmra.mxu0 %v865
      %v1532 = vpop.f32.mrf.mxu0
      %v1533 = vadd.f32 %v1324, %v1532
      %v1534 = vpop.f32.mrf.mxu0
      %v1535 = vpop.f32.mrf.mxu0
      %v1536 = vadd.f32 %v1327, %v1535
      %v1537 = vpop.f32.mrf.mxu0
      %1538 = vmatprep.mubr.bf16.mxu0 0
      %1539 = vmatmul.mubr.bf16.gmra.mxu0 %v866
      %v1540 = vpop.f32.mrf.mxu0
      %v1541 = vadd.f32 %v1332, %v1540
      %v1542 = vpop.f32.mrf.mxu0
      %v1543 = vpop.f32.mrf.mxu0
      %v1544 = vadd.f32 %v1335, %v1543
      %v1545 = vpop.f32.mrf.mxu0
      %1546 = vdwg.mxu0
      %vm1579 = vcmask 1046528
      %v1580 = vrot.slane %v851, 1
      %v1581 = vrot.slane %v869, 1
      %v1582 = vsel %vm1579, %v1580, %v1581
      %v1583 = vrot.slane %v852, 1
      %v1584 = vrot.slane %v870, 1
      %v1585 = vsel %vm1579, %v1583, %v1584
      %v1586 = vrot.slane %v853, 1
      %v1587 = vrot.slane %v871, 1
      %v1588 = vsel %vm1579, %v1586, %v1587
      %v1589 = vrot.slane %v854, 1
      %v1590 = vrot.slane %v872, 1
      %v1591 = vsel %vm1579, %v1589, %v1590
      %v1592 = vrot.slane %v855, 1
      %v1593 = vrot.slane %v873, 1
      %v1594 = vsel %vm1579, %v1592, %v1593
      %v1595 = vrot.slane %v856, 1
      %v1596 = vrot.slane %v874, 1
      %v1597 = vsel %vm1579, %v1595, %v1596
      %v1598 = vrot.slane %v857, 1
      %v1599 = vrot.slane %v875, 1
      %v1600 = vsel %vm1579, %v1598, %v1599
      %v1601 = vrot.slane %v858, 1
      %v1602 = vrot.slane %v876, 1
      %v1603 = vsel %vm1579, %v1601, %v1602
      %v1604 = vrot.slane %v859, 1
      %v1605 = vrot.slane %v877, 1
      %v1606 = vsel %vm1579, %v1604, %v1605
      %v1607 = vrot.slane %v860, 1
      %v1608 = vrot.slane %v878, 1
      %v1609 = vsel %vm1579, %v1607, %v1608
      %v1610 = vrot.slane %v861, 1
      %v1611 = vrot.slane %v879, 1
      %v1612 = vsel %vm1579, %v1610, %v1611
      %v1613 = vrot.slane %v862, 1
      %v1614 = vrot.slane %v880, 1
      %v1615 = vsel %vm1579, %v1613, %v1614
      %v1616 = vrot.slane %v863, 1
      %v1617 = vrot.slane %v881, 1
      %v1618 = vsel %vm1579, %v1616, %v1617
      %v1619 = vrot.slane %v864, 1
      %v1620 = vrot.slane %v882, 1
      %v1621 = vsel %vm1579, %v1619, %v1620
      %v1622 = vrot.slane %v865, 1
      %v1623 = vrot.slane %v883, 1
      %v1624 = vsel %vm1579, %v1622, %v1623
      %v1625 = vrot.slane %v866, 1
      %v1626 = vrot.slane %v884, 1
      %v1627 = vsel %vm1579, %v1625, %v1626
      %s1644 = scalar_lea.vmem %s5, 128
      %v1645 = vld [vmem:[%s1644] sm:$0xf]
      %v1646 = vld [vmem:[%s1644 + $0x4] sm:$0xf]
      %v1647 = vld [vmem:[%s1644 + $0x8] sm:$0xf]
      %v1648 = vld [vmem:[%s1644 + $0xc] sm:$0xf]
      %v1649 = vld [vmem:[%s1644 + $0x10] sm:$0xf]
      %v1650 = vld [vmem:[%s1644 + $0x14] sm:$0xf]
      %v1651 = vld [vmem:[%s1644 + $0x18] sm:$0xf]
      %v1652 = vld [vmem:[%s1644 + $0x1c] sm:$0xf]
      %v1653 = vld [vmem:[%s1644 + $0x20] sm:$0xf]
      %v1654 = vld [vmem:[%s1644 + $0x24] sm:$0xf]
      %v1655 = vld [vmem:[%s1644 + $0x28] sm:$0xf]
      %v1656 = vld [vmem:[%s1644 + $0x2c] sm:$0xf]
      %v1657 = vld [vmem:[%s1644 + $0x30] sm:$0xf]
      %v1658 = vld [vmem:[%s1644 + $0x34] sm:$0xf]
      %v1659 = vld [vmem:[%s1644 + $0x38] sm:$0xf]
      %v1660 = vld [vmem:[%s1644 + $0x3c] sm:$0xf]
      %v1677 = vunpack.c.l.b16 %v1645
      %v1678 = vunpack.c.l.b16 %v1646
      %v1679 = vunpack.c.l.b16 %v1647
      %v1680 = vunpack.c.l.b16 %v1648
      %v1681 = vunpack.c.l.b16 %v1649
      %v1682 = vunpack.c.l.b16 %v1650
      %v1683 = vunpack.c.l.b16 %v1651
      %v1684 = vunpack.c.l.b16 %v1652
      %v1685 = vunpack.c.l.b16 %v1653
      %v1686 = vunpack.c.l.b16 %v1654
      %v1687 = vunpack.c.l.b16 %v1655
      %v1688 = vunpack.c.l.b16 %v1656
      %v1689 = vunpack.c.l.b16 %v1657
      %v1690 = vunpack.c.l.b16 %v1658
      %v1691 = vunpack.c.l.b16 %v1659
      %v1692 = vunpack.c.l.b16 %v1660
      %v1693 = vpack.c.b16 %v1678, %v1677
      %v1694 = vpack.c.b16 %v1680, %v1679
      %v1695 = vpack.c.b16 %v1682, %v1681
      %v1696 = vpack.c.b16 %v1684, %v1683
      %v1697 = vpack.c.b16 %v1686, %v1685
      %v1698 = vpack.c.b16 %v1688, %v1687
      %v1699 = vpack.c.b16 %v1690, %v1689
      %v1700 = vpack.c.b16 %v1692, %v1691
      %1709 = vmatprep.subr.bf16.mxu0 0
      %1710 = vmatpush1.bf16.msra.mxu0 %v1700
      %1711 = vmatprep.subr.bf16.mxu0 0
      %1712 = vmatpush1.bf16.msra.mxu0 %v1699
      %1713 = vmatprep.subr.bf16.mxu0 0
      %1714 = vmatpush1.bf16.msra.mxu0 %v1698
      %1715 = vmatprep.subr.bf16.mxu0 0
      %1716 = vmatpush1.bf16.msra.mxu0 %v1697
      %1717 = vmatprep.subr.bf16.mxu0 0
      %1718 = vmatpush1.bf16.msra.mxu0 %v1696
      %1719 = vmatprep.subr.bf16.mxu0 0
      %1720 = vmatpush1.bf16.msra.mxu0 %v1695
      %1721 = vmatprep.subr.bf16.mxu0 0
      %1722 = vmatpush1.bf16.msra.mxu0 %v1694
      %1723 = vmatprep.subr.bf16.mxu0 0
      %1724 = vmatpush1.bf16.msra.mxu0 %v1693
      %1725 = vmatprep.subr.bf16.mxu0 0
      %1726 = vmatpush2.bf16.msra.mxu0 0
      %1727 = vmatprep.subr.bf16.mxu0 0
      %1728 = vmatpush2.bf16.msra.mxu0 0
      %1729 = vmatprep.subr.bf16.mxu0 0
      %1730 = vmatpush2.bf16.msra.mxu0 0
      %1731 = vmatprep.subr.bf16.mxu0 0
      %1732 = vmatpush2.bf16.msra.mxu0 0
      %1733 = vmatprep.subr.bf16.mxu0 0
      %1734 = vmatpush2.bf16.msra.mxu0 0
      %1735 = vmatprep.subr.bf16.mxu0 0
      %1736 = vmatpush2.bf16.msra.mxu0 0
      %1737 = vmatprep.subr.bf16.mxu0 0
      %1738 = vmatpush2.bf16.msra.mxu0 0
      %1739 = vmatprep.subr.bf16.mxu0 0
      %1740 = vmatpush2.bf16.msra.mxu0 0
      %1741 = vmatprep.mubr.bf16.mxu0 0
      %1742 = vmatmul.mubr.bf16.gmra.mxu0 %v1582
      %v1743 = vpop.f32.mrf.mxu0
      %v1744 = vadd.f32 0.0, %v1743
      %v1745 = vpop.f32.mrf.mxu0
      %v1746 = vpop.f32.mrf.mxu0
      %v1747 = vadd.f32 0.0, %v1746
      %v1748 = vpop.f32.mrf.mxu0
      %1749 = vmatprep.mubr.bf16.mxu0 0
      %1750 = vmatmul.mubr.bf16.gmra.mxu0 %v1585
      %v1751 = vpop.f32.mrf.mxu0
      %v1752 = vadd.f32 0.0, %v1751
      %v1753 = vpop.f32.mrf.mxu0
      %v1754 = vpop.f32.mrf.mxu0
      %v1755 = vadd.f32 0.0, %v1754
      %v1756 = vpop.f32.mrf.mxu0
      %1757 = vmatprep.mubr.bf16.mxu0 0
      %1758 = vmatmul.mubr.bf16.gmra.mxu0 %v1588
      %v1759 = vpop.f32.mrf.mxu0
      %v1760 = vadd.f32 0.0, %v1759
      %v1761 = vpop.f32.mrf.mxu0
      %v1762 = vpop.f32.mrf.mxu0
      %v1763 = vadd.f32 0.0, %v1762
      %v1764 = vpop.f32.mrf.mxu0
      %1765 = vmatprep.mubr.bf16.mxu0 0
      %1766 = vmatmul.mubr.bf16.gmra.mxu0 %v1591
      %v1767 = vpop.f32.mrf.mxu0
      %v1768 = vadd.f32 0.0, %v1767
      %v1769 = vpop.f32.mrf.mxu0
      %v1770 = vpop.f32.mrf.mxu0
      %v1771 = vadd.f32 0.0, %v1770
      %v1772 = vpop.f32.mrf.mxu0
      %1773 = vmatprep.mubr.bf16.mxu0 0
      %1774 = vmatmul.mubr.bf16.gmra.mxu0 %v1594
      %v1775 = vpop.f32.mrf.mxu0
      %v1776 = vadd.f32 0.0, %v1775
      %v1777 = vpop.f32.mrf.mxu0
      %v1778 = vpop.f32.mrf.mxu0
      %v1779 = vadd.f32 0.0, %v1778
      %v1780 = vpop.f32.mrf.mxu0
      %1781 = vmatprep.mubr.bf16.mxu0 0
      %1782 = vmatmul.mubr.bf16.gmra.mxu0 %v1597
      %v1783 = vpop.f32.mrf.mxu0
      %v1784 = vadd.f32 0.0, %v1783
      %v1785 = vpop.f32.mrf.mxu0
      %v1786 = vpop.f32.mrf.mxu0
      %v1787 = vadd.f32 0.0, %v1786
      %v1788 = vpop.f32.mrf.mxu0
      %1789 = vmatprep.mubr.bf16.mxu0 0
      %1790 = vmatmul.mubr.bf16.gmra.mxu0 %v1600
      %v1791 = vpop.f32.mrf.mxu0
      %v1792 = vadd.f32 0.0, %v1791
      %v1793 = vpop.f32.mrf.mxu0
      %v1794 = vpop.f32.mrf.mxu0
      %v1795 = vadd.f32 0.0, %v1794
      %v1796 = vpop.f32.mrf.mxu0
      %1797 = vmatprep.mubr.bf16.mxu0 0
      %1798 = vmatmul.mubr.bf16.gmra.mxu0 %v1603
      %v1799 = vpop.f32.mrf.mxu0
      %v1800 = vadd.f32 0.0, %v1799
      %v1801 = vpop.f32.mrf.mxu0
      %v1802 = vpop.f32.mrf.mxu0
      %v1803 = vadd.f32 0.0, %v1802
      %v1804 = vpop.f32.mrf.mxu0
      %1805 = vmatprep.mubr.bf16.mxu0 0
      %1806 = vmatmul.mubr.bf16.gmra.mxu0 %v1606
      %v1807 = vpop.f32.mrf.mxu0
      %v1808 = vadd.f32 0.0, %v1807
      %v1809 = vpop.f32.mrf.mxu0
      %v1810 = vpop.f32.mrf.mxu0
      %v1811 = vadd.f32 0.0, %v1810
      %v1812 = vpop.f32.mrf.mxu0
      %1813 = vmatprep.mubr.bf16.mxu0 0
      %1814 = vmatmul.mubr.bf16.gmra.mxu0 %v1609
      %v1815 = vpop.f32.mrf.mxu0
      %v1816 = vadd.f32 0.0, %v1815
      %v1817 = vpop.f32.mrf.mxu0
      %v1818 = vpop.f32.mrf.mxu0
      %v1819 = vadd.f32 0.0, %v1818
      %v1820 = vpop.f32.mrf.mxu0
      %1821 = vmatprep.mubr.bf16.mxu0 0
      %1822 = vmatmul.mubr.bf16.gmra.mxu0 %v1612
      %v1823 = vpop.f32.mrf.mxu0
      %v1824 = vadd.f32 0.0, %v1823
      %v1825 = vpop.f32.mrf.mxu0
      %v1826 = vpop.f32.mrf.mxu0
      %v1827 = vadd.f32 0.0, %v1826
      %v1828 = vpop.f32.mrf.mxu0
      %1829 = vmatprep.mubr.bf16.mxu0 0
      %1830 = vmatmul.mubr.bf16.gmra.mxu0 %v1615
      %v1831 = vpop.f32.mrf.mxu0
      %v1832 = vadd.f32 0.0, %v1831
      %v1833 = vpop.f32.mrf.mxu0
      %v1834 = vpop.f32.mrf.mxu0
      %v1835 = vadd.f32 0.0, %v1834
      %v1836 = vpop.f32.mrf.mxu0
      %1837 = vmatprep.mubr.bf16.mxu0 0
      %1838 = vmatmul.mubr.bf16.gmra.mxu0 %v1618
      %v1839 = vpop.f32.mrf.mxu0
      %v1840 = vadd.f32 0.0, %v1839
      %v1841 = vpop.f32.mrf.mxu0
      %v1842 = vpop.f32.mrf.mxu0
      %v1843 = vadd.f32 0.0, %v1842
      %v1844 = vpop.f32.mrf.mxu0
      %1845 = vmatprep.mubr.bf16.mxu0 0
      %1846 = vmatmul.mubr.bf16.gmra.mxu0 %v1621
      %v1847 = vpop.f32.mrf.mxu0
      %v1848 = vadd.f32 0.0, %v1847
      %v1849 = vpop.f32.mrf.mxu0
      %v1850 = vpop.f32.mrf.mxu0
      %v1851 = vadd.f32 0.0, %v1850
      %v1852 = vpop.f32.mrf.mxu0
      %1853 = vmatprep.mubr.bf16.mxu0 0
      %1854 = vmatmul.mubr.bf16.gmra.mxu0 %v1624
      %v1855 = vpop.f32.mrf.mxu0
      %v1856 = vadd.f32 0.0, %v1855
      %v1857 = vpop.f32.mrf.mxu0
      %v1858 = vpop.f32.mrf.mxu0
      %v1859 = vadd.f32 0.0, %v1858
      %v1860 = vpop.f32.mrf.mxu0
      %1861 = vmatprep.mubr.bf16.mxu0 0
      %1862 = vmatmul.mubr.bf16.gmra.mxu0 %v1627
      %v1863 = vpop.f32.mrf.mxu0
      %v1864 = vadd.f32 0.0, %v1863
      %v1865 = vpop.f32.mrf.mxu0
      %v1866 = vpop.f32.mrf.mxu0
      %v1867 = vadd.f32 0.0, %v1866
      %v1868 = vpop.f32.mrf.mxu0
      %1869 = vdwg.mxu0
      %v1870 = vadd.f32 %v1421, %v1744
      %v1871 = vadd.f32 %v1424, %v1747
      %v1872 = vadd.f32 %v1429, %v1752
      %v1873 = vadd.f32 %v1432, %v1755
      %v1874 = vadd.f32 %v1437, %v1760
      %v1875 = vadd.f32 %v1440, %v1763
      %v1876 = vadd.f32 %v1445, %v1768
      %v1877 = vadd.f32 %v1448, %v1771
      %v1878 = vadd.f32 %v1453, %v1776
      %v1879 = vadd.f32 %v1456, %v1779
      %v1880 = vadd.f32 %v1461, %v1784
      %v1881 = vadd.f32 %v1464, %v1787
      %v1882 = vadd.f32 %v1469, %v1792
      %v1883 = vadd.f32 %v1472, %v1795
      %v1884 = vadd.f32 %v1477, %v1800
      %v1885 = vadd.f32 %v1480, %v1803
      %v1886 = vadd.f32 %v1485, %v1808
      %v1887 = vadd.f32 %v1488, %v1811
      %v1888 = vadd.f32 %v1493, %v1816
      %v1889 = vadd.f32 %v1496, %v1819
      %v1890 = vadd.f32 %v1501, %v1824
      %v1891 = vadd.f32 %v1504, %v1827
      %v1892 = vadd.f32 %v1509, %v1832
      %v1893 = vadd.f32 %v1512, %v1835
      %v1894 = vadd.f32 %v1517, %v1840
      %v1895 = vadd.f32 %v1520, %v1843
      %v1896 = vadd.f32 %v1525, %v1848
      %v1897 = vadd.f32 %v1528, %v1851
      %v1898 = vadd.f32 %v1533, %v1856
      %v1899 = vadd.f32 %v1536, %v1859
      %v1900 = vadd.f32 %v1541, %v1864
      %v1901 = vadd.f32 %v1544, %v1867
      %s1902 = scalar_lea.vmem %s5, 192
      %v1903 = vld [vmem:[%s1902] sm:$0xf]
      %v1904 = vld [vmem:[%s1902 + $0x4] sm:$0xf]
      %v1905 = vld [vmem:[%s1902 + $0x8] sm:$0xf]
      %v1906 = vld [vmem:[%s1902 + $0xc] sm:$0xf]
      %v1907 = vld [vmem:[%s1902 + $0x10] sm:$0xf]
      %v1908 = vld [vmem:[%s1902 + $0x14] sm:$0xf]
      %v1909 = vld [vmem:[%s1902 + $0x18] sm:$0xf]
      %v1910 = vld [vmem:[%s1902 + $0x1c] sm:$0xf]
      %v1911 = vld [vmem:[%s1902 + $0x20] sm:$0xf]
      %v1912 = vld [vmem:[%s1902 + $0x24] sm:$0xf]
      %v1913 = vld [vmem:[%s1902 + $0x28] sm:$0xf]
      %v1914 = vld [vmem:[%s1902 + $0x2c] sm:$0xf]
      %v1915 = vld [vmem:[%s1902 + $0x30] sm:$0xf]
      %v1916 = vld [vmem:[%s1902 + $0x34] sm:$0xf]
      %v1917 = vld [vmem:[%s1902 + $0x38] sm:$0xf]
      %v1918 = vld [vmem:[%s1902 + $0x3c] sm:$0xf]
      %v1935 = vunpack.c.l.b16 %v1903
      %v1936 = vunpack.c.l.b16 %v1904
      %v1937 = vunpack.c.l.b16 %v1905
      %v1938 = vunpack.c.l.b16 %v1906
      %v1939 = vunpack.c.l.b16 %v1907
      %v1940 = vunpack.c.l.b16 %v1908
      %v1941 = vunpack.c.l.b16 %v1909
      %v1942 = vunpack.c.l.b16 %v1910
      %v1943 = vunpack.c.l.b16 %v1911
      %v1944 = vunpack.c.l.b16 %v1912
      %v1945 = vunpack.c.l.b16 %v1913
      %v1946 = vunpack.c.l.b16 %v1914
      %v1947 = vunpack.c.l.b16 %v1915
      %v1948 = vunpack.c.l.b16 %v1916
      %v1949 = vunpack.c.l.b16 %v1917
      %v1950 = vunpack.c.l.b16 %v1918
      %v1951 = vpack.c.b16 %v1936, %v1935
      %v1952 = vpack.c.b16 %v1938, %v1937
      %v1953 = vpack.c.b16 %v1940, %v1939
      %v1954 = vpack.c.b16 %v1942, %v1941
      %v1955 = vpack.c.b16 %v1944, %v1943
      %v1956 = vpack.c.b16 %v1946, %v1945
      %v1957 = vpack.c.b16 %v1948, %v1947
      %v1958 = vpack.c.b16 %v1950, %v1949
      %1967 = vmatprep.subr.bf16.mxu0 0
      %1968 = vmatpush1.bf16.msra.mxu0 %v1958
      %1969 = vmatprep.subr.bf16.mxu0 0
      %1970 = vmatpush1.bf16.msra.mxu0 %v1957
      %1971 = vmatprep.subr.bf16.mxu0 0
      %1972 = vmatpush1.bf16.msra.mxu0 %v1956
      %1973 = vmatprep.subr.bf16.mxu0 0
      %1974 = vmatpush1.bf16.msra.mxu0 %v1955
      %1975 = vmatprep.subr.bf16.mxu0 0
      %1976 = vmatpush1.bf16.msra.mxu0 %v1954
      %1977 = vmatprep.subr.bf16.mxu0 0
      %1978 = vmatpush1.bf16.msra.mxu0 %v1953
      %1979 = vmatprep.subr.bf16.mxu0 0
      %1980 = vmatpush1.bf16.msra.mxu0 %v1952
      %1981 = vmatprep.subr.bf16.mxu0 0
      %1982 = vmatpush1.bf16.msra.mxu0 %v1951
      %1983 = vmatprep.subr.bf16.mxu0 0
      %1984 = vmatpush2.bf16.msra.mxu0 0
      %1985 = vmatprep.subr.bf16.mxu0 0
      %1986 = vmatpush2.bf16.msra.mxu0 0
      %1987 = vmatprep.subr.bf16.mxu0 0
      %1988 = vmatpush2.bf16.msra.mxu0 0
      %1989 = vmatprep.subr.bf16.mxu0 0
      %1990 = vmatpush2.bf16.msra.mxu0 0
      %1991 = vmatprep.subr.bf16.mxu0 0
      %1992 = vmatpush2.bf16.msra.mxu0 0
      %1993 = vmatprep.subr.bf16.mxu0 0
      %1994 = vmatpush2.bf16.msra.mxu0 0
      %1995 = vmatprep.subr.bf16.mxu0 0
      %1996 = vmatpush2.bf16.msra.mxu0 0
      %1997 = vmatprep.subr.bf16.mxu0 0
      %1998 = vmatpush2.bf16.msra.mxu0 0
      %1999 = vmatprep.mubr.bf16.mxu0 0
      %2000 = vmatmul.mubr.bf16.gmra.mxu0 %v852
      %v2001 = vpop.f32.mrf.mxu0
      %v2002 = vadd.f32 0.0, %v2001
      %v2003 = vpop.f32.mrf.mxu0
      %v2004 = vpop.f32.mrf.mxu0
      %v2005 = vadd.f32 0.0, %v2004
      %v2006 = vpop.f32.mrf.mxu0
      %2007 = vmatprep.mubr.bf16.mxu0 0
      %2008 = vmatmul.mubr.bf16.gmra.mxu0 %v853
      %v2009 = vpop.f32.mrf.mxu0
      %v2010 = vadd.f32 0.0, %v2009
      %v2011 = vpop.f32.mrf.mxu0
      %v2012 = vpop.f32.mrf.mxu0
      %v2013 = vadd.f32 0.0, %v2012
      %v2014 = vpop.f32.mrf.mxu0
      %2015 = vmatprep.mubr.bf16.mxu0 0
      %2016 = vmatmul.mubr.bf16.gmra.mxu0 %v854
      %v2017 = vpop.f32.mrf.mxu0
      %v2018 = vadd.f32 0.0, %v2017
      %v2019 = vpop.f32.mrf.mxu0
      %v2020 = vpop.f32.mrf.mxu0
      %v2021 = vadd.f32 0.0, %v2020
      %v2022 = vpop.f32.mrf.mxu0
      %2023 = vmatprep.mubr.bf16.mxu0 0
      %2024 = vmatmul.mubr.bf16.gmra.mxu0 %v855
      %v2025 = vpop.f32.mrf.mxu0
      %v2026 = vadd.f32 0.0, %v2025
      %v2027 = vpop.f32.mrf.mxu0
      %v2028 = vpop.f32.mrf.mxu0
      %v2029 = vadd.f32 0.0, %v2028
      %v2030 = vpop.f32.mrf.mxu0
      %2031 = vmatprep.mubr.bf16.mxu0 0
      %2032 = vmatmul.mubr.bf16.gmra.mxu0 %v856
      %v2033 = vpop.f32.mrf.mxu0
      %v2034 = vadd.f32 0.0, %v2033
      %v2035 = vpop.f32.mrf.mxu0
      %v2036 = vpop.f32.mrf.mxu0
      %v2037 = vadd.f32 0.0, %v2036
      %v2038 = vpop.f32.mrf.mxu0
      %2039 = vmatprep.mubr.bf16.mxu0 0
      %2040 = vmatmul.mubr.bf16.gmra.mxu0 %v857
      %v2041 = vpop.f32.mrf.mxu0
      %v2042 = vadd.f32 0.0, %v2041
      %v2043 = vpop.f32.mrf.mxu0
      %v2044 = vpop.f32.mrf.mxu0
      %v2045 = vadd.f32 0.0, %v2044
      %v2046 = vpop.f32.mrf.mxu0
      %2047 = vmatprep.mubr.bf16.mxu0 0
      %2048 = vmatmul.mubr.bf16.gmra.mxu0 %v858
      %v2049 = vpop.f32.mrf.mxu0
      %v2050 = vadd.f32 0.0, %v2049
      %v2051 = vpop.f32.mrf.mxu0
      %v2052 = vpop.f32.mrf.mxu0
      %v2053 = vadd.f32 0.0, %v2052
      %v2054 = vpop.f32.mrf.mxu0
      %2055 = vmatprep.mubr.bf16.mxu0 0
      %2056 = vmatmul.mubr.bf16.gmra.mxu0 %v859
      %v2057 = vpop.f32.mrf.mxu0
      %v2058 = vadd.f32 0.0, %v2057
      %v2059 = vpop.f32.mrf.mxu0
      %v2060 = vpop.f32.mrf.mxu0
      %v2061 = vadd.f32 0.0, %v2060
      %v2062 = vpop.f32.mrf.mxu0
      %2063 = vmatprep.mubr.bf16.mxu0 0
      %2064 = vmatmul.mubr.bf16.gmra.mxu0 %v860
      %v2065 = vpop.f32.mrf.mxu0
      %v2066 = vadd.f32 0.0, %v2065
      %v2067 = vpop.f32.mrf.mxu0
      %v2068 = vpop.f32.mrf.mxu0
      %v2069 = vadd.f32 0.0, %v2068
      %v2070 = vpop.f32.mrf.mxu0
      %2071 = vmatprep.mubr.bf16.mxu0 0
      %2072 = vmatmul.mubr.bf16.gmra.mxu0 %v861
      %v2073 = vpop.f32.mrf.mxu0
      %v2074 = vadd.f32 0.0, %v2073
      %v2075 = vpop.f32.mrf.mxu0
      %v2076 = vpop.f32.mrf.mxu0
      %v2077 = vadd.f32 0.0, %v2076
      %v2078 = vpop.f32.mrf.mxu0
      %2079 = vmatprep.mubr.bf16.mxu0 0
      %2080 = vmatmul.mubr.bf16.gmra.mxu0 %v862
      %v2081 = vpop.f32.mrf.mxu0
      %v2082 = vadd.f32 0.0, %v2081
      %v2083 = vpop.f32.mrf.mxu0
      %v2084 = vpop.f32.mrf.mxu0
      %v2085 = vadd.f32 0.0, %v2084
      %v2086 = vpop.f32.mrf.mxu0
      %2087 = vmatprep.mubr.bf16.mxu0 0
      %2088 = vmatmul.mubr.bf16.gmra.mxu0 %v863
      %v2089 = vpop.f32.mrf.mxu0
      %v2090 = vadd.f32 0.0, %v2089
      %v2091 = vpop.f32.mrf.mxu0
      %v2092 = vpop.f32.mrf.mxu0
      %v2093 = vadd.f32 0.0, %v2092
      %v2094 = vpop.f32.mrf.mxu0
      %2095 = vmatprep.mubr.bf16.mxu0 0
      %2096 = vmatmul.mubr.bf16.gmra.mxu0 %v864
      %v2097 = vpop.f32.mrf.mxu0
      %v2098 = vadd.f32 0.0, %v2097
      %v2099 = vpop.f32.mrf.mxu0
      %v2100 = vpop.f32.mrf.mxu0
      %v2101 = vadd.f32 0.0, %v2100
      %v2102 = vpop.f32.mrf.mxu0
      %2103 = vmatprep.mubr.bf16.mxu0 0
      %2104 = vmatmul.mubr.bf16.gmra.mxu0 %v865
      %v2105 = vpop.f32.mrf.mxu0
      %v2106 = vadd.f32 0.0, %v2105
      %v2107 = vpop.f32.mrf.mxu0
      %v2108 = vpop.f32.mrf.mxu0
      %v2109 = vadd.f32 0.0, %v2108
      %v2110 = vpop.f32.mrf.mxu0
      %2111 = vmatprep.mubr.bf16.mxu0 0
      %2112 = vmatmul.mubr.bf16.gmra.mxu0 %v866
      %v2113 = vpop.f32.mrf.mxu0
      %v2114 = vadd.f32 0.0, %v2113
      %v2115 = vpop.f32.mrf.mxu0
      %v2116 = vpop.f32.mrf.mxu0
      %v2117 = vadd.f32 0.0, %v2116
      %v2118 = vpop.f32.mrf.mxu0
      %2119 = vmatprep.mubr.bf16.mxu0 0
      %2120 = vmatmul.mubr.bf16.gmra.mxu0 %v867
      %v2121 = vpop.f32.mrf.mxu0
      %v2122 = vadd.f32 0.0, %v2121
      %v2123 = vpop.f32.mrf.mxu0
      %v2124 = vpop.f32.mrf.mxu0
      %v2125 = vadd.f32 0.0, %v2124
      %v2126 = vpop.f32.mrf.mxu0
      %2127 = vdwg.mxu0
      %v2128 = vadd.f32 %v1870, %v2002
      %v2129 = vadd.f32 %v1871, %v2005
      %v2130 = vadd.f32 %v1872, %v2010
      %v2131 = vadd.f32 %v1873, %v2013
      %v2132 = vadd.f32 %v1874, %v2018
      %v2133 = vadd.f32 %v1875, %v2021
      %v2134 = vadd.f32 %v1876, %v2026
      %v2135 = vadd.f32 %v1877, %v2029
      %v2136 = vadd.f32 %v1878, %v2034
      %v2137 = vadd.f32 %v1879, %v2037
      %v2138 = vadd.f32 %v1880, %v2042
      %v2139 = vadd.f32 %v1881, %v2045
      %v2140 = vadd.f32 %v1882, %v2050
      %v2141 = vadd.f32 %v1883, %v2053
      %v2142 = vadd.f32 %v1884, %v2058
      %v2143 = vadd.f32 %v1885, %v2061
      %v2144 = vadd.f32 %v1886, %v2066
      %v2145 = vadd.f32 %v1887, %v2069
      %v2146 = vadd.f32 %v1888, %v2074
      %v2147 = vadd.f32 %v1889, %v2077
      %v2148 = vadd.f32 %v1890, %v2082
      %v2149 = vadd.f32 %v1891, %v2085
      %v2150 = vadd.f32 %v1892, %v2090
      %v2151 = vadd.f32 %v1893, %v2093
      %v2152 = vadd.f32 %v1894, %v2098
      %v2153 = vadd.f32 %v1895, %v2101
      %v2154 = vadd.f32 %v1896, %v2106
      %v2155 = vadd.f32 %v1897, %v2109
      %v2156 = vadd.f32 %v1898, %v2114
      %v2157 = vadd.f32 %v1899, %v2117
      %v2158 = vadd.f32 %v1900, %v2122
      %v2159 = vadd.f32 %v1901, %v2125
      %v2161 = vshrl.u32 %v867, 16
      %v2163 = vshll.u32 %v867, 16
      %v2165 = vrot.slane %v2163, 1
      %v2166 = vor.u32 %v2161, %v2165
      %v2168 = vshll.u32 %v885, 16
      %v2170 = vrot.slane %v2168, 1
      %v2171 = vsel %vm903, %v2166, %v2170
      %s2173 = scalar_lea.vmem %s5, 256
      %v2174 = vld [vmem:[%s2173] sm:$0xf]
      %v2175 = vld [vmem:[%s2173 + $0x4] sm:$0xf]
      %v2176 = vld [vmem:[%s2173 + $0x8] sm:$0xf]
      %v2177 = vld [vmem:[%s2173 + $0xc] sm:$0xf]
      %v2178 = vld [vmem:[%s2173 + $0x10] sm:$0xf]
      %v2179 = vld [vmem:[%s2173 + $0x14] sm:$0xf]
      %v2180 = vld [vmem:[%s2173 + $0x18] sm:$0xf]
      %v2181 = vld [vmem:[%s2173 + $0x1c] sm:$0xf]
      %v2182 = vld [vmem:[%s2173 + $0x20] sm:$0xf]
      %v2183 = vld [vmem:[%s2173 + $0x24] sm:$0xf]
      %v2184 = vld [vmem:[%s2173 + $0x28] sm:$0xf]
      %v2185 = vld [vmem:[%s2173 + $0x2c] sm:$0xf]
      %v2186 = vld [vmem:[%s2173 + $0x30] sm:$0xf]
      %v2187 = vld [vmem:[%s2173 + $0x34] sm:$0xf]
      %v2188 = vld [vmem:[%s2173 + $0x38] sm:$0xf]
      %v2189 = vld [vmem:[%s2173 + $0x3c] sm:$0xf]
      %v2206 = vunpack.c.l.b16 %v2174
      %v2207 = vunpack.c.l.b16 %v2175
      %v2208 = vunpack.c.l.b16 %v2176
      %v2209 = vunpack.c.l.b16 %v2177
      %v2210 = vunpack.c.l.b16 %v2178
      %v2211 = vunpack.c.l.b16 %v2179
      %v2212 = vunpack.c.l.b16 %v2180
      %v2213 = vunpack.c.l.b16 %v2181
      %v2214 = vunpack.c.l.b16 %v2182
      %v2215 = vunpack.c.l.b16 %v2183
      %v2216 = vunpack.c.l.b16 %v2184
      %v2217 = vunpack.c.l.b16 %v2185
      %v2218 = vunpack.c.l.b16 %v2186
      %v2219 = vunpack.c.l.b16 %v2187
      %v2220 = vunpack.c.l.b16 %v2188
      %v2221 = vunpack.c.l.b16 %v2189
      %v2222 = vpack.c.b16 %v2207, %v2206
      %v2223 = vpack.c.b16 %v2209, %v2208
      %v2224 = vpack.c.b16 %v2211, %v2210
      %v2225 = vpack.c.b16 %v2213, %v2212
      %v2226 = vpack.c.b16 %v2215, %v2214
      %v2227 = vpack.c.b16 %v2217, %v2216
      %v2228 = vpack.c.b16 %v2219, %v2218
      %v2229 = vpack.c.b16 %v2221, %v2220
      %2238 = vmatprep.subr.bf16.mxu0 0
      %2239 = vmatpush1.bf16.msra.mxu0 %v2229
      %2240 = vmatprep.subr.bf16.mxu0 0
      %2241 = vmatpush1.bf16.msra.mxu0 %v2228
      %2242 = vmatprep.subr.bf16.mxu0 0
      %2243 = vmatpush1.bf16.msra.mxu0 %v2227
      %2244 = vmatprep.subr.bf16.mxu0 0
      %2245 = vmatpush1.bf16.msra.mxu0 %v2226
      %2246 = vmatprep.subr.bf16.mxu0 0
      %2247 = vmatpush1.bf16.msra.mxu0 %v2225
      %2248 = vmatprep.subr.bf16.mxu0 0
      %2249 = vmatpush1.bf16.msra.mxu0 %v2224
      %2250 = vmatprep.subr.bf16.mxu0 0
      %2251 = vmatpush1.bf16.msra.mxu0 %v2223
      %2252 = vmatprep.subr.bf16.mxu0 0
      %2253 = vmatpush1.bf16.msra.mxu0 %v2222
      %2254 = vmatprep.subr.bf16.mxu0 0
      %2255 = vmatpush2.bf16.msra.mxu0 0
      %2256 = vmatprep.subr.bf16.mxu0 0
      %2257 = vmatpush2.bf16.msra.mxu0 0
      %2258 = vmatprep.subr.bf16.mxu0 0
      %2259 = vmatpush2.bf16.msra.mxu0 0
      %2260 = vmatprep.subr.bf16.mxu0 0
      %2261 = vmatpush2.bf16.msra.mxu0 0
      %2262 = vmatprep.subr.bf16.mxu0 0
      %2263 = vmatpush2.bf16.msra.mxu0 0
      %2264 = vmatprep.subr.bf16.mxu0 0
      %2265 = vmatpush2.bf16.msra.mxu0 0
      %2266 = vmatprep.subr.bf16.mxu0 0
      %2267 = vmatpush2.bf16.msra.mxu0 0
      %2268 = vmatprep.subr.bf16.mxu0 0
      %2269 = vmatpush2.bf16.msra.mxu0 0
      %2270 = vmatprep.mubr.bf16.mxu0 0
      %2271 = vmatmul.mubr.bf16.gmra.mxu0 %v927
      %v2272 = vpop.f32.mrf.mxu0
      %v2273 = vadd.f32 0.0, %v2272
      %v2274 = vpop.f32.mrf.mxu0
      %v2275 = vpop.f32.mrf.mxu0
      %v2276 = vadd.f32 0.0, %v2275
      %v2277 = vpop.f32.mrf.mxu0
      %2278 = vmatprep.mubr.bf16.mxu0 0
      %2279 = vmatmul.mubr.bf16.gmra.mxu0 %v939
      %v2280 = vpop.f32.mrf.mxu0
      %v2281 = vadd.f32 0.0, %v2280
      %v2282 = vpop.f32.mrf.mxu0
      %v2283 = vpop.f32.mrf.mxu0
      %v2284 = vadd.f32 0.0, %v2283
      %v2285 = vpop.f32.mrf.mxu0
      %2286 = vmatprep.mubr.bf16.mxu0 0
      %2287 = vmatmul.mubr.bf16.gmra.mxu0 %v951
      %v2288 = vpop.f32.mrf.mxu0
      %v2289 = vadd.f32 0.0, %v2288
      %v2290 = vpop.f32.mrf.mxu0
      %v2291 = vpop.f32.mrf.mxu0
      %v2292 = vadd.f32 0.0, %v2291
      %v2293 = vpop.f32.mrf.mxu0
      %2294 = vmatprep.mubr.bf16.mxu0 0
      %2295 = vmatmul.mubr.bf16.gmra.mxu0 %v963
      %v2296 = vpop.f32.mrf.mxu0
      %v2297 = vadd.f32 0.0, %v2296
      %v2298 = vpop.f32.mrf.mxu0
      %v2299 = vpop.f32.mrf.mxu0
      %v2300 = vadd.f32 0.0, %v2299
      %v2301 = vpop.f32.mrf.mxu0
      %2302 = vmatprep.mubr.bf16.mxu0 0
      %2303 = vmatmul.mubr.bf16.gmra.mxu0 %v975
      %v2304 = vpop.f32.mrf.mxu0
      %v2305 = vadd.f32 0.0, %v2304
      %v2306 = vpop.f32.mrf.mxu0
      %v2307 = vpop.f32.mrf.mxu0
      %v2308 = vadd.f32 0.0, %v2307
      %v2309 = vpop.f32.mrf.mxu0
      %2310 = vmatprep.mubr.bf16.mxu0 0
      %2311 = vmatmul.mubr.bf16.gmra.mxu0 %v987
      %v2312 = vpop.f32.mrf.mxu0
      %v2313 = vadd.f32 0.0, %v2312
      %v2314 = vpop.f32.mrf.mxu0
      %v2315 = vpop.f32.mrf.mxu0
      %v2316 = vadd.f32 0.0, %v2315
      %v2317 = vpop.f32.mrf.mxu0
      %2318 = vmatprep.mubr.bf16.mxu0 0
      %2319 = vmatmul.mubr.bf16.gmra.mxu0 %v999
      %v2320 = vpop.f32.mrf.mxu0
      %v2321 = vadd.f32 0.0, %v2320
      %v2322 = vpop.f32.mrf.mxu0
      %v2323 = vpop.f32.mrf.mxu0
      %v2324 = vadd.f32 0.0, %v2323
      %v2325 = vpop.f32.mrf.mxu0
      %2326 = vmatprep.mubr.bf16.mxu0 0
      %2327 = vmatmul.mubr.bf16.gmra.mxu0 %v1011
      %v2328 = vpop.f32.mrf.mxu0
      %v2329 = vadd.f32 0.0, %v2328
      %v2330 = vpop.f32.mrf.mxu0
      %v2331 = vpop.f32.mrf.mxu0
      %v2332 = vadd.f32 0.0, %v2331
      %v2333 = vpop.f32.mrf.mxu0
      %2334 = vmatprep.mubr.bf16.mxu0 0
      %2335 = vmatmul.mubr.bf16.gmra.mxu0 %v1023
      %v2336 = vpop.f32.mrf.mxu0
      %v2337 = vadd.f32 0.0, %v2336
      %v2338 = vpop.f32.mrf.mxu0
      %v2339 = vpop.f32.mrf.mxu0
      %v2340 = vadd.f32 0.0, %v2339
      %v2341 = vpop.f32.mrf.mxu0
      %2342 = vmatprep.mubr.bf16.mxu0 0
      %2343 = vmatmul.mubr.bf16.gmra.mxu0 %v1035
      %v2344 = vpop.f32.mrf.mxu0
      %v2345 = vadd.f32 0.0, %v2344
      %v2346 = vpop.f32.mrf.mxu0
      %v2347 = vpop.f32.mrf.mxu0
      %v2348 = vadd.f32 0.0, %v2347
      %v2349 = vpop.f32.mrf.mxu0
      %2350 = vmatprep.mubr.bf16.mxu0 0
      %2351 = vmatmul.mubr.bf16.gmra.mxu0 %v1047
      %v2352 = vpop.f32.mrf.mxu0
      %v2353 = vadd.f32 0.0, %v2352
      %v2354 = vpop.f32.mrf.mxu0
      %v2355 = vpop.f32.mrf.mxu0
      %v2356 = vadd.f32 0.0, %v2355
      %v2357 = vpop.f32.mrf.mxu0
      %2358 = vmatprep.mubr.bf16.mxu0 0
      %2359 = vmatmul.mubr.bf16.gmra.mxu0 %v1059
      %v2360 = vpop.f32.mrf.mxu0
      %v2361 = vadd.f32 0.0, %v2360
      %v2362 = vpop.f32.mrf.mxu0
      %v2363 = vpop.f32.mrf.mxu0
      %v2364 = vadd.f32 0.0, %v2363
      %v2365 = vpop.f32.mrf.mxu0
      %2366 = vmatprep.mubr.bf16.mxu0 0
      %2367 = vmatmul.mubr.bf16.gmra.mxu0 %v1071
      %v2368 = vpop.f32.mrf.mxu0
      %v2369 = vadd.f32 0.0, %v2368
      %v2370 = vpop.f32.mrf.mxu0
      %v2371 = vpop.f32.mrf.mxu0
      %v2372 = vadd.f32 0.0, %v2371
      %v2373 = vpop.f32.mrf.mxu0
      %2374 = vmatprep.mubr.bf16.mxu0 0
      %2375 = vmatmul.mubr.bf16.gmra.mxu0 %v1083
      %v2376 = vpop.f32.mrf.mxu0
      %v2377 = vadd.f32 0.0, %v2376
      %v2378 = vpop.f32.mrf.mxu0
      %v2379 = vpop.f32.mrf.mxu0
      %v2380 = vadd.f32 0.0, %v2379
      %v2381 = vpop.f32.mrf.mxu0
      %2382 = vmatprep.mubr.bf16.mxu0 0
      %2383 = vmatmul.mubr.bf16.gmra.mxu0 %v1095
      %v2384 = vpop.f32.mrf.mxu0
      %v2385 = vadd.f32 0.0, %v2384
      %v2386 = vpop.f32.mrf.mxu0
      %v2387 = vpop.f32.mrf.mxu0
      %v2388 = vadd.f32 0.0, %v2387
      %v2389 = vpop.f32.mrf.mxu0
      %2390 = vmatprep.mubr.bf16.mxu0 0
      %2391 = vmatmul.mubr.bf16.gmra.mxu0 %v2171
      %v2392 = vpop.f32.mrf.mxu0
      %v2393 = vadd.f32 0.0, %v2392
      %v2394 = vpop.f32.mrf.mxu0
      %v2395 = vpop.f32.mrf.mxu0
      %v2396 = vadd.f32 0.0, %v2395
      %v2397 = vpop.f32.mrf.mxu0
      %2398 = vdwg.mxu0
      %v2399 = vadd.f32 %v2128, %v2273
      %v2400 = vadd.f32 %v2129, %v2276
      %v2401 = vadd.f32 %v2130, %v2281
      %v2402 = vadd.f32 %v2131, %v2284
      %v2403 = vadd.f32 %v2132, %v2289
      %v2404 = vadd.f32 %v2133, %v2292
      %v2405 = vadd.f32 %v2134, %v2297
      %v2406 = vadd.f32 %v2135, %v2300
      %v2407 = vadd.f32 %v2136, %v2305
      %v2408 = vadd.f32 %v2137, %v2308
      %v2409 = vadd.f32 %v2138, %v2313
      %v2410 = vadd.f32 %v2139, %v2316
      %v2411 = vadd.f32 %v2140, %v2321
      %v2412 = vadd.f32 %v2141, %v2324
      %v2413 = vadd.f32 %v2142, %v2329
      %v2414 = vadd.f32 %v2143, %v2332
      %v2415 = vadd.f32 %v2144, %v2337
      %v2416 = vadd.f32 %v2145, %v2340
      %v2417 = vadd.f32 %v2146, %v2345
      %v2418 = vadd.f32 %v2147, %v2348
      %v2419 = vadd.f32 %v2148, %v2353
      %v2420 = vadd.f32 %v2149, %v2356
      %v2421 = vadd.f32 %v2150, %v2361
      %v2422 = vadd.f32 %v2151, %v2364
      %v2423 = vadd.f32 %v2152, %v2369
      %v2424 = vadd.f32 %v2153, %v2372
      %v2425 = vadd.f32 %v2154, %v2377
      %v2426 = vadd.f32 %v2155, %v2380
      %v2427 = vadd.f32 %v2156, %v2385
      %v2428 = vadd.f32 %v2157, %v2388
      %v2429 = vadd.f32 %v2158, %v2393
      %v2430 = vadd.f32 %v2159, %v2396
      %v2433 = vrot.slane %v867, 1
      %v2434 = vrot.slane %v885, 1
      %v2435 = vsel %vm1579, %v2433, %v2434
      %s2437 = scalar_lea.vmem %s5, 320
      %v2438 = vld [vmem:[%s2437] sm:$0xf]
      %v2439 = vld [vmem:[%s2437 + $0x4] sm:$0xf]
      %v2440 = vld [vmem:[%s2437 + $0x8] sm:$0xf]
      %v2441 = vld [vmem:[%s2437 + $0xc] sm:$0xf]
      %v2442 = vld [vmem:[%s2437 + $0x10] sm:$0xf]
      %v2443 = vld [vmem:[%s2437 + $0x14] sm:$0xf]
      %v2444 = vld [vmem:[%s2437 + $0x18] sm:$0xf]
      %v2445 = vld [vmem:[%s2437 + $0x1c] sm:$0xf]
      %v2446 = vld [vmem:[%s2437 + $0x20] sm:$0xf]
      %v2447 = vld [vmem:[%s2437 + $0x24] sm:$0xf]
      %v2448 = vld [vmem:[%s2437 + $0x28] sm:$0xf]
      %v2449 = vld [vmem:[%s2437 + $0x2c] sm:$0xf]
      %v2450 = vld [vmem:[%s2437 + $0x30] sm:$0xf]
      %v2451 = vld [vmem:[%s2437 + $0x34] sm:$0xf]
      %v2452 = vld [vmem:[%s2437 + $0x38] sm:$0xf]
      %v2453 = vld [vmem:[%s2437 + $0x3c] sm:$0xf]
      %v2470 = vunpack.c.l.b16 %v2438
      %v2471 = vunpack.c.l.b16 %v2439
      %v2472 = vunpack.c.l.b16 %v2440
      %v2473 = vunpack.c.l.b16 %v2441
      %v2474 = vunpack.c.l.b16 %v2442
      %v2475 = vunpack.c.l.b16 %v2443
      %v2476 = vunpack.c.l.b16 %v2444
      %v2477 = vunpack.c.l.b16 %v2445
      %v2478 = vunpack.c.l.b16 %v2446
      %v2479 = vunpack.c.l.b16 %v2447
      %v2480 = vunpack.c.l.b16 %v2448
      %v2481 = vunpack.c.l.b16 %v2449
      %v2482 = vunpack.c.l.b16 %v2450
      %v2483 = vunpack.c.l.b16 %v2451
      %v2484 = vunpack.c.l.b16 %v2452
      %v2485 = vunpack.c.l.b16 %v2453
      %v2486 = vpack.c.b16 %v2471, %v2470
      %v2487 = vpack.c.b16 %v2473, %v2472
      %v2488 = vpack.c.b16 %v2475, %v2474
      %v2489 = vpack.c.b16 %v2477, %v2476
      %v2490 = vpack.c.b16 %v2479, %v2478
      %v2491 = vpack.c.b16 %v2481, %v2480
      %v2492 = vpack.c.b16 %v2483, %v2482
      %v2493 = vpack.c.b16 %v2485, %v2484
      %2502 = vmatprep.subr.bf16.mxu0 0
      %2503 = vmatpush1.bf16.msra.mxu0 %v2493
      %2504 = vmatprep.subr.bf16.mxu0 0
      %2505 = vmatpush1.bf16.msra.mxu0 %v2492
      %2506 = vmatprep.subr.bf16.mxu0 0
      %2507 = vmatpush1.bf16.msra.mxu0 %v2491
      %2508 = vmatprep.subr.bf16.mxu0 0
      %2509 = vmatpush1.bf16.msra.mxu0 %v2490
      %2510 = vmatprep.subr.bf16.mxu0 0
      %2511 = vmatpush1.bf16.msra.mxu0 %v2489
      %2512 = vmatprep.subr.bf16.mxu0 0
      %2513 = vmatpush1.bf16.msra.mxu0 %v2488
      %2514 = vmatprep.subr.bf16.mxu0 0
      %2515 = vmatpush1.bf16.msra.mxu0 %v2487
      %2516 = vmatprep.subr.bf16.mxu0 0
      %2517 = vmatpush1.bf16.msra.mxu0 %v2486
      %2518 = vmatprep.subr.bf16.mxu0 0
      %2519 = vmatpush2.bf16.msra.mxu0 0
      %2520 = vmatprep.subr.bf16.mxu0 0
      %2521 = vmatpush2.bf16.msra.mxu0 0
      %2522 = vmatprep.subr.bf16.mxu0 0
      %2523 = vmatpush2.bf16.msra.mxu0 0
      %2524 = vmatprep.subr.bf16.mxu0 0
      %2525 = vmatpush2.bf16.msra.mxu0 0
      %2526 = vmatprep.subr.bf16.mxu0 0
      %2527 = vmatpush2.bf16.msra.mxu0 0
      %2528 = vmatprep.subr.bf16.mxu0 0
      %2529 = vmatpush2.bf16.msra.mxu0 0
      %2530 = vmatprep.subr.bf16.mxu0 0
      %2531 = vmatpush2.bf16.msra.mxu0 0
      %2532 = vmatprep.subr.bf16.mxu0 0
      %2533 = vmatpush2.bf16.msra.mxu0 0
      %2534 = vmatprep.mubr.bf16.mxu0 0
      %2535 = vmatmul.mubr.bf16.gmra.mxu0 %v1585
      %v2536 = vpop.f32.mrf.mxu0
      %v2537 = vadd.f32 0.0, %v2536
      %v2538 = vpop.f32.mrf.mxu0
      %v2539 = vpop.f32.mrf.mxu0
      %v2540 = vadd.f32 0.0, %v2539
      %v2541 = vpop.f32.mrf.mxu0
      %2542 = vmatprep.mubr.bf16.mxu0 0
      %2543 = vmatmul.mubr.bf16.gmra.mxu0 %v1588
      %v2544 = vpop.f32.mrf.mxu0
      %v2545 = vadd.f32 0.0, %v2544
      %v2546 = vpop.f32.mrf.mxu0
      %v2547 = vpop.f32.mrf.mxu0
      %v2548 = vadd.f32 0.0, %v2547
      %v2549 = vpop.f32.mrf.mxu0
      %2550 = vmatprep.mubr.bf16.mxu0 0
      %2551 = vmatmul.mubr.bf16.gmra.mxu0 %v1591
      %v2552 = vpop.f32.mrf.mxu0
      %v2553 = vadd.f32 0.0, %v2552
      %v2554 = vpop.f32.mrf.mxu0
      %v2555 = vpop.f32.mrf.mxu0
      %v2556 = vadd.f32 0.0, %v2555
      %v2557 = vpop.f32.mrf.mxu0
      %2558 = vmatprep.mubr.bf16.mxu0 0
      %2559 = vmatmul.mubr.bf16.gmra.mxu0 %v1594
      %v2560 = vpop.f32.mrf.mxu0
      %v2561 = vadd.f32 0.0, %v2560
      %v2562 = vpop.f32.mrf.mxu0
      %v2563 = vpop.f32.mrf.mxu0
      %v2564 = vadd.f32 0.0, %v2563
      %v2565 = vpop.f32.mrf.mxu0
      %2566 = vmatprep.mubr.bf16.mxu0 0
      %2567 = vmatmul.mubr.bf16.gmra.mxu0 %v1597
      %v2568 = vpop.f32.mrf.mxu0
      %v2569 = vadd.f32 0.0, %v2568
      %v2570 = vpop.f32.mrf.mxu0
      %v2571 = vpop.f32.mrf.mxu0
      %v2572 = vadd.f32 0.0, %v2571
      %v2573 = vpop.f32.mrf.mxu0
      %2574 = vmatprep.mubr.bf16.mxu0 0
      %2575 = vmatmul.mubr.bf16.gmra.mxu0 %v1600
      %v2576 = vpop.f32.mrf.mxu0
      %v2577 = vadd.f32 0.0, %v2576
      %v2578 = vpop.f32.mrf.mxu0
      %v2579 = vpop.f32.mrf.mxu0
      %v2580 = vadd.f32 0.0, %v2579
      %v2581 = vpop.f32.mrf.mxu0
      %2582 = vmatprep.mubr.bf16.mxu0 0
      %2583 = vmatmul.mubr.bf16.gmra.mxu0 %v1603
      %v2584 = vpop.f32.mrf.mxu0
      %v2585 = vadd.f32 0.0, %v2584
      %v2586 = vpop.f32.mrf.mxu0
      %v2587 = vpop.f32.mrf.mxu0
      %v2588 = vadd.f32 0.0, %v2587
      %v2589 = vpop.f32.mrf.mxu0
      %2590 = vmatprep.mubr.bf16.mxu0 0
      %2591 = vmatmul.mubr.bf16.gmra.mxu0 %v1606
      %v2592 = vpop.f32.mrf.mxu0
      %v2593 = vadd.f32 0.0, %v2592
      %v2594 = vpop.f32.mrf.mxu0
      %v2595 = vpop.f32.mrf.mxu0
      %v2596 = vadd.f32 0.0, %v2595
      %v2597 = vpop.f32.mrf.mxu0
      %2598 = vmatprep.mubr.bf16.mxu0 0
      %2599 = vmatmul.mubr.bf16.gmra.mxu0 %v1609
      %v2600 = vpop.f32.mrf.mxu0
      %v2601 = vadd.f32 0.0, %v2600
      %v2602 = vpop.f32.mrf.mxu0
      %v2603 = vpop.f32.mrf.mxu0
      %v2604 = vadd.f32 0.0, %v2603
      %v2605 = vpop.f32.mrf.mxu0
      %2606 = vmatprep.mubr.bf16.mxu0 0
      %2607 = vmatmul.mubr.bf16.gmra.mxu0 %v1612
      %v2608 = vpop.f32.mrf.mxu0
      %v2609 = vadd.f32 0.0, %v2608
      %v2610 = vpop.f32.mrf.mxu0
      %v2611 = vpop.f32.mrf.mxu0
      %v2612 = vadd.f32 0.0, %v2611
      %v2613 = vpop.f32.mrf.mxu0
      %2614 = vmatprep.mubr.bf16.mxu0 0
      %2615 = vmatmul.mubr.bf16.gmra.mxu0 %v1615
      %v2616 = vpop.f32.mrf.mxu0
      %v2617 = vadd.f32 0.0, %v2616
      %v2618 = vpop.f32.mrf.mxu0
      %v2619 = vpop.f32.mrf.mxu0
      %v2620 = vadd.f32 0.0, %v2619
      %v2621 = vpop.f32.mrf.mxu0
      %2622 = vmatprep.mubr.bf16.mxu0 0
      %2623 = vmatmul.mubr.bf16.gmra.mxu0 %v1618
      %v2624 = vpop.f32.mrf.mxu0
      %v2625 = vadd.f32 0.0, %v2624
      %v2626 = vpop.f32.mrf.mxu0
      %v2627 = vpop.f32.mrf.mxu0
      %v2628 = vadd.f32 0.0, %v2627
      %v2629 = vpop.f32.mrf.mxu0
      %2630 = vmatprep.mubr.bf16.mxu0 0
      %2631 = vmatmul.mubr.bf16.gmra.mxu0 %v1621
      %v2632 = vpop.f32.mrf.mxu0
      %v2633 = vadd.f32 0.0, %v2632
      %v2634 = vpop.f32.mrf.mxu0
      %v2635 = vpop.f32.mrf.mxu0
      %v2636 = vadd.f32 0.0, %v2635
      %v2637 = vpop.f32.mrf.mxu0
      %2638 = vmatprep.mubr.bf16.mxu0 0
      %2639 = vmatmul.mubr.bf16.gmra.mxu0 %v1624
      %v2640 = vpop.f32.mrf.mxu0
      %v2641 = vadd.f32 0.0, %v2640
      %v2642 = vpop.f32.mrf.mxu0
      %v2643 = vpop.f32.mrf.mxu0
      %v2644 = vadd.f32 0.0, %v2643
      %v2645 = vpop.f32.mrf.mxu0
      %2646 = vmatprep.mubr.bf16.mxu0 0
      %2647 = vmatmul.mubr.bf16.gmra.mxu0 %v1627
      %v2648 = vpop.f32.mrf.mxu0
      %v2649 = vadd.f32 0.0, %v2648
      %v2650 = vpop.f32.mrf.mxu0
      %v2651 = vpop.f32.mrf.mxu0
      %v2652 = vadd.f32 0.0, %v2651
      %v2653 = vpop.f32.mrf.mxu0
      %2654 = vmatprep.mubr.bf16.mxu0 0
      %2655 = vmatmul.mubr.bf16.gmra.mxu0 %v2435
      %v2656 = vpop.f32.mrf.mxu0
      %v2657 = vadd.f32 0.0, %v2656
      %v2658 = vpop.f32.mrf.mxu0
      %v2659 = vpop.f32.mrf.mxu0
      %v2660 = vadd.f32 0.0, %v2659
      %v2661 = vpop.f32.mrf.mxu0
      %2662 = vdwg.mxu0
      %v2663 = vadd.f32 %v2399, %v2537
      %v2664 = vadd.f32 %v2400, %v2540
      %v2665 = vadd.f32 %v2401, %v2545
      %v2666 = vadd.f32 %v2402, %v2548
      %v2667 = vadd.f32 %v2403, %v2553
      %v2668 = vadd.f32 %v2404, %v2556
      %v2669 = vadd.f32 %v2405, %v2561
      %v2670 = vadd.f32 %v2406, %v2564
      %v2671 = vadd.f32 %v2407, %v2569
      %v2672 = vadd.f32 %v2408, %v2572
      %v2673 = vadd.f32 %v2409, %v2577
      %v2674 = vadd.f32 %v2410, %v2580
      %v2675 = vadd.f32 %v2411, %v2585
      %v2676 = vadd.f32 %v2412, %v2588
      %v2677 = vadd.f32 %v2413, %v2593
      %v2678 = vadd.f32 %v2414, %v2596
      %v2679 = vadd.f32 %v2415, %v2601
      %v2680 = vadd.f32 %v2416, %v2604
      %v2681 = vadd.f32 %v2417, %v2609
      %v2682 = vadd.f32 %v2418, %v2612
      %v2683 = vadd.f32 %v2419, %v2617
      %v2684 = vadd.f32 %v2420, %v2620
      %v2685 = vadd.f32 %v2421, %v2625
      %v2686 = vadd.f32 %v2422, %v2628
      %v2687 = vadd.f32 %v2423, %v2633
      %v2688 = vadd.f32 %v2424, %v2636
      %v2689 = vadd.f32 %v2425, %v2641
      %v2690 = vadd.f32 %v2426, %v2644
      %v2691 = vadd.f32 %v2427, %v2649
      %v2692 = vadd.f32 %v2428, %v2652
      %v2693 = vadd.f32 %v2429, %v2657
      %v2694 = vadd.f32 %v2430, %v2660
      %s2695 = scalar_lea.vmem %s5, 384
      %v2696 = vld [vmem:[%s2695] sm:$0xf]
      %v2697 = vld [vmem:[%s2695 + $0x4] sm:$0xf]
      %v2698 = vld [vmem:[%s2695 + $0x8] sm:$0xf]
      %v2699 = vld [vmem:[%s2695 + $0xc] sm:$0xf]
      %v2700 = vld [vmem:[%s2695 + $0x10] sm:$0xf]
      %v2701 = vld [vmem:[%s2695 + $0x14] sm:$0xf]
      %v2702 = vld [vmem:[%s2695 + $0x18] sm:$0xf]
      %v2703 = vld [vmem:[%s2695 + $0x1c] sm:$0xf]
      %v2704 = vld [vmem:[%s2695 + $0x20] sm:$0xf]
      %v2705 = vld [vmem:[%s2695 + $0x24] sm:$0xf]
      %v2706 = vld [vmem:[%s2695 + $0x28] sm:$0xf]
      %v2707 = vld [vmem:[%s2695 + $0x2c] sm:$0xf]
      %v2708 = vld [vmem:[%s2695 + $0x30] sm:$0xf]
      %v2709 = vld [vmem:[%s2695 + $0x34] sm:$0xf]
      %v2710 = vld [vmem:[%s2695 + $0x38] sm:$0xf]
      %v2711 = vld [vmem:[%s2695 + $0x3c] sm:$0xf]
      %v2728 = vunpack.c.l.b16 %v2696
      %v2729 = vunpack.c.l.b16 %v2697
      %v2730 = vunpack.c.l.b16 %v2698
      %v2731 = vunpack.c.l.b16 %v2699
      %v2732 = vunpack.c.l.b16 %v2700
      %v2733 = vunpack.c.l.b16 %v2701
      %v2734 = vunpack.c.l.b16 %v2702
      %v2735 = vunpack.c.l.b16 %v2703
      %v2736 = vunpack.c.l.b16 %v2704
      %v2737 = vunpack.c.l.b16 %v2705
      %v2738 = vunpack.c.l.b16 %v2706
      %v2739 = vunpack.c.l.b16 %v2707
      %v2740 = vunpack.c.l.b16 %v2708
      %v2741 = vunpack.c.l.b16 %v2709
      %v2742 = vunpack.c.l.b16 %v2710
      %v2743 = vunpack.c.l.b16 %v2711
      %v2744 = vpack.c.b16 %v2729, %v2728
      %v2745 = vpack.c.b16 %v2731, %v2730
      %v2746 = vpack.c.b16 %v2733, %v2732
      %v2747 = vpack.c.b16 %v2735, %v2734
      %v2748 = vpack.c.b16 %v2737, %v2736
      %v2749 = vpack.c.b16 %v2739, %v2738
      %v2750 = vpack.c.b16 %v2741, %v2740
      %v2751 = vpack.c.b16 %v2743, %v2742
      %2760 = vmatprep.subr.bf16.mxu0 0
      %2761 = vmatpush1.bf16.msra.mxu0 %v2751
      %2762 = vmatprep.subr.bf16.mxu0 0
      %2763 = vmatpush1.bf16.msra.mxu0 %v2750
      %2764 = vmatprep.subr.bf16.mxu0 0
      %2765 = vmatpush1.bf16.msra.mxu0 %v2749
      %2766 = vmatprep.subr.bf16.mxu0 0
      %2767 = vmatpush1.bf16.msra.mxu0 %v2748
      %2768 = vmatprep.subr.bf16.mxu0 0
      %2769 = vmatpush1.bf16.msra.mxu0 %v2747
      %2770 = vmatprep.subr.bf16.mxu0 0
      %2771 = vmatpush1.bf16.msra.mxu0 %v2746
      %2772 = vmatprep.subr.bf16.mxu0 0
      %2773 = vmatpush1.bf16.msra.mxu0 %v2745
      %2774 = vmatprep.subr.bf16.mxu0 0
      %2775 = vmatpush1.bf16.msra.mxu0 %v2744
      %2776 = vmatprep.subr.bf16.mxu0 0
      %2777 = vmatpush2.bf16.msra.mxu0 0
      %2778 = vmatprep.subr.bf16.mxu0 0
      %2779 = vmatpush2.bf16.msra.mxu0 0
      %2780 = vmatprep.subr.bf16.mxu0 0
      %2781 = vmatpush2.bf16.msra.mxu0 0
      %2782 = vmatprep.subr.bf16.mxu0 0
      %2783 = vmatpush2.bf16.msra.mxu0 0
      %2784 = vmatprep.subr.bf16.mxu0 0
      %2785 = vmatpush2.bf16.msra.mxu0 0
      %2786 = vmatprep.subr.bf16.mxu0 0
      %2787 = vmatpush2.bf16.msra.mxu0 0
      %2788 = vmatprep.subr.bf16.mxu0 0
      %2789 = vmatpush2.bf16.msra.mxu0 0
      %2790 = vmatprep.subr.bf16.mxu0 0
      %2791 = vmatpush2.bf16.msra.mxu0 0
      %2792 = vmatprep.mubr.bf16.mxu0 0
      %2793 = vmatmul.mubr.bf16.gmra.mxu0 %v853
      %v2794 = vpop.f32.mrf.mxu0
      %v2795 = vadd.f32 0.0, %v2794
      %v2796 = vpop.f32.mrf.mxu0
      %v2797 = vpop.f32.mrf.mxu0
      %v2798 = vadd.f32 0.0, %v2797
      %v2799 = vpop.f32.mrf.mxu0
      %2800 = vmatprep.mubr.bf16.mxu0 0
      %2801 = vmatmul.mubr.bf16.gmra.mxu0 %v854
      %v2802 = vpop.f32.mrf.mxu0
      %v2803 = vadd.f32 0.0, %v2802
      %v2804 = vpop.f32.mrf.mxu0
      %v2805 = vpop.f32.mrf.mxu0
      %v2806 = vadd.f32 0.0, %v2805
      %v2807 = vpop.f32.mrf.mxu0
      %2808 = vmatprep.mubr.bf16.mxu0 0
      %2809 = vmatmul.mubr.bf16.gmra.mxu0 %v855
      %v2810 = vpop.f32.mrf.mxu0
      %v2811 = vadd.f32 0.0, %v2810
      %v2812 = vpop.f32.mrf.mxu0
      %v2813 = vpop.f32.mrf.mxu0
      %v2814 = vadd.f32 0.0, %v2813
      %v2815 = vpop.f32.mrf.mxu0
      %2816 = vmatprep.mubr.bf16.mxu0 0
      %2817 = vmatmul.mubr.bf16.gmra.mxu0 %v856
      %v2818 = vpop.f32.mrf.mxu0
      %v2819 = vadd.f32 0.0, %v2818
      %v2820 = vpop.f32.mrf.mxu0
      %v2821 = vpop.f32.mrf.mxu0
      %v2822 = vadd.f32 0.0, %v2821
      %v2823 = vpop.f32.mrf.mxu0
      %2824 = vmatprep.mubr.bf16.mxu0 0
      %2825 = vmatmul.mubr.bf16.gmra.mxu0 %v857
      %v2826 = vpop.f32.mrf.mxu0
      %v2827 = vadd.f32 0.0, %v2826
      %v2828 = vpop.f32.mrf.mxu0
      %v2829 = vpop.f32.mrf.mxu0
      %v2830 = vadd.f32 0.0, %v2829
      %v2831 = vpop.f32.mrf.mxu0
      %2832 = vmatprep.mubr.bf16.mxu0 0
      %2833 = vmatmul.mubr.bf16.gmra.mxu0 %v858
      %v2834 = vpop.f32.mrf.mxu0
      %v2835 = vadd.f32 0.0, %v2834
      %v2836 = vpop.f32.mrf.mxu0
      %v2837 = vpop.f32.mrf.mxu0
      %v2838 = vadd.f32 0.0, %v2837
      %v2839 = vpop.f32.mrf.mxu0
      %2840 = vmatprep.mubr.bf16.mxu0 0
      %2841 = vmatmul.mubr.bf16.gmra.mxu0 %v859
      %v2842 = vpop.f32.mrf.mxu0
      %v2843 = vadd.f32 0.0, %v2842
      %v2844 = vpop.f32.mrf.mxu0
      %v2845 = vpop.f32.mrf.mxu0
      %v2846 = vadd.f32 0.0, %v2845
      %v2847 = vpop.f32.mrf.mxu0
      %2848 = vmatprep.mubr.bf16.mxu0 0
      %2849 = vmatmul.mubr.bf16.gmra.mxu0 %v860
      %v2850 = vpop.f32.mrf.mxu0
      %v2851 = vadd.f32 0.0, %v2850
      %v2852 = vpop.f32.mrf.mxu0
      %v2853 = vpop.f32.mrf.mxu0
      %v2854 = vadd.f32 0.0, %v2853
      %v2855 = vpop.f32.mrf.mxu0
      %2856 = vmatprep.mubr.bf16.mxu0 0
      %2857 = vmatmul.mubr.bf16.gmra.mxu0 %v861
      %v2858 = vpop.f32.mrf.mxu0
      %v2859 = vadd.f32 0.0, %v2858
      %v2860 = vpop.f32.mrf.mxu0
      %v2861 = vpop.f32.mrf.mxu0
      %v2862 = vadd.f32 0.0, %v2861
      %v2863 = vpop.f32.mrf.mxu0
      %2864 = vmatprep.mubr.bf16.mxu0 0
      %2865 = vmatmul.mubr.bf16.gmra.mxu0 %v862
      %v2866 = vpop.f32.mrf.mxu0
      %v2867 = vadd.f32 0.0, %v2866
      %v2868 = vpop.f32.mrf.mxu0
      %v2869 = vpop.f32.mrf.mxu0
      %v2870 = vadd.f32 0.0, %v2869
      %v2871 = vpop.f32.mrf.mxu0
      %2872 = vmatprep.mubr.bf16.mxu0 0
      %2873 = vmatmul.mubr.bf16.gmra.mxu0 %v863
      %v2874 = vpop.f32.mrf.mxu0
      %v2875 = vadd.f32 0.0, %v2874
      %v2876 = vpop.f32.mrf.mxu0
      %v2877 = vpop.f32.mrf.mxu0
      %v2878 = vadd.f32 0.0, %v2877
      %v2879 = vpop.f32.mrf.mxu0
      %2880 = vmatprep.mubr.bf16.mxu0 0
      %2881 = vmatmul.mubr.bf16.gmra.mxu0 %v864
      %v2882 = vpop.f32.mrf.mxu0
      %v2883 = vadd.f32 0.0, %v2882
      %v2884 = vpop.f32.mrf.mxu0
      %v2885 = vpop.f32.mrf.mxu0
      %v2886 = vadd.f32 0.0, %v2885
      %v2887 = vpop.f32.mrf.mxu0
      %2888 = vmatprep.mubr.bf16.mxu0 0
      %2889 = vmatmul.mubr.bf16.gmra.mxu0 %v865
      %v2890 = vpop.f32.mrf.mxu0
      %v2891 = vadd.f32 0.0, %v2890
      %v2892 = vpop.f32.mrf.mxu0
      %v2893 = vpop.f32.mrf.mxu0
      %v2894 = vadd.f32 0.0, %v2893
      %v2895 = vpop.f32.mrf.mxu0
      %2896 = vmatprep.mubr.bf16.mxu0 0
      %2897 = vmatmul.mubr.bf16.gmra.mxu0 %v866
      %v2898 = vpop.f32.mrf.mxu0
      %v2899 = vadd.f32 0.0, %v2898
      %v2900 = vpop.f32.mrf.mxu0
      %v2901 = vpop.f32.mrf.mxu0
      %v2902 = vadd.f32 0.0, %v2901
      %v2903 = vpop.f32.mrf.mxu0
      %2904 = vmatprep.mubr.bf16.mxu0 0
      %2905 = vmatmul.mubr.bf16.gmra.mxu0 %v867
      %v2906 = vpop.f32.mrf.mxu0
      %v2907 = vadd.f32 0.0, %v2906
      %v2908 = vpop.f32.mrf.mxu0
      %v2909 = vpop.f32.mrf.mxu0
      %v2910 = vadd.f32 0.0, %v2909
      %v2911 = vpop.f32.mrf.mxu0
      %2912 = vmatprep.mubr.bf16.mxu0 0
      %2913 = vmatmul.mubr.bf16.gmra.mxu0 %v868
      %v2914 = vpop.f32.mrf.mxu0
      %v2915 = vadd.f32 0.0, %v2914
      %v2916 = vpop.f32.mrf.mxu0
      %v2917 = vpop.f32.mrf.mxu0
      %v2918 = vadd.f32 0.0, %v2917
      %v2919 = vpop.f32.mrf.mxu0
      %2920 = vdwg.mxu0
      %v2921 = vadd.f32 %v2663, %v2795
      %v2922 = vadd.f32 %v2664, %v2798
      %v2923 = vadd.f32 %v2665, %v2803
      %v2924 = vadd.f32 %v2666, %v2806
      %v2925 = vadd.f32 %v2667, %v2811
      %v2926 = vadd.f32 %v2668, %v2814
      %v2927 = vadd.f32 %v2669, %v2819
      %v2928 = vadd.f32 %v2670, %v2822
      %v2929 = vadd.f32 %v2671, %v2827
      %v2930 = vadd.f32 %v2672, %v2830
      %v2931 = vadd.f32 %v2673, %v2835
      %v2932 = vadd.f32 %v2674, %v2838
      %v2933 = vadd.f32 %v2675, %v2843
      %v2934 = vadd.f32 %v2676, %v2846
      %v2935 = vadd.f32 %v2677, %v2851
      %v2936 = vadd.f32 %v2678, %v2854
      %v2937 = vadd.f32 %v2679, %v2859
      %v2938 = vadd.f32 %v2680, %v2862
      %v2939 = vadd.f32 %v2681, %v2867
      %v2940 = vadd.f32 %v2682, %v2870
      %v2941 = vadd.f32 %v2683, %v2875
      %v2942 = vadd.f32 %v2684, %v2878
      %v2943 = vadd.f32 %v2685, %v2883
      %v2944 = vadd.f32 %v2686, %v2886
      %v2945 = vadd.f32 %v2687, %v2891
      %v2946 = vadd.f32 %v2688, %v2894
      %v2947 = vadd.f32 %v2689, %v2899
      %v2948 = vadd.f32 %v2690, %v2902
      %v2949 = vadd.f32 %v2691, %v2907
      %v2950 = vadd.f32 %v2692, %v2910
      %v2951 = vadd.f32 %v2693, %v2915
      %v2952 = vadd.f32 %v2694, %v2918
      %v2954 = vshrl.u32 %v868, 16
      %v2956 = vshll.u32 %v868, 16
      %v2958 = vrot.slane %v2956, 1
      %v2959 = vor.u32 %v2954, %v2958
      %v2961 = vshll.u32 %v886, 16
      %v2963 = vrot.slane %v2961, 1
      %v2964 = vsel %vm903, %v2959, %v2963
      %s2966 = scalar_lea.vmem %s5, 448
      %v2967 = vld [vmem:[%s2966] sm:$0xf]
      %v2968 = vld [vmem:[%s2966 + $0x4] sm:$0xf]
      %v2969 = vld [vmem:[%s2966 + $0x8] sm:$0xf]
      %v2970 = vld [vmem:[%s2966 + $0xc] sm:$0xf]
      %v2971 = vld [vmem:[%s2966 + $0x10] sm:$0xf]
      %v2972 = vld [vmem:[%s2966 + $0x14] sm:$0xf]
      %v2973 = vld [vmem:[%s2966 + $0x18] sm:$0xf]
      %v2974 = vld [vmem:[%s2966 + $0x1c] sm:$0xf]
      %v2975 = vld [vmem:[%s2966 + $0x20] sm:$0xf]
      %v2976 = vld [vmem:[%s2966 + $0x24] sm:$0xf]
      %v2977 = vld [vmem:[%s2966 + $0x28] sm:$0xf]
      %v2978 = vld [vmem:[%s2966 + $0x2c] sm:$0xf]
      %v2979 = vld [vmem:[%s2966 + $0x30] sm:$0xf]
      %v2980 = vld [vmem:[%s2966 + $0x34] sm:$0xf]
      %v2981 = vld [vmem:[%s2966 + $0x38] sm:$0xf]
      %v2982 = vld [vmem:[%s2966 + $0x3c] sm:$0xf]
      %v2999 = vunpack.c.l.b16 %v2967
      %v3000 = vunpack.c.l.b16 %v2968
      %v3001 = vunpack.c.l.b16 %v2969
      %v3002 = vunpack.c.l.b16 %v2970
      %v3003 = vunpack.c.l.b16 %v2971
      %v3004 = vunpack.c.l.b16 %v2972
      %v3005 = vunpack.c.l.b16 %v2973
      %v3006 = vunpack.c.l.b16 %v2974
      %v3007 = vunpack.c.l.b16 %v2975
      %v3008 = vunpack.c.l.b16 %v2976
      %v3009 = vunpack.c.l.b16 %v2977
      %v3010 = vunpack.c.l.b16 %v2978
      %v3011 = vunpack.c.l.b16 %v2979
      %v3012 = vunpack.c.l.b16 %v2980
      %v3013 = vunpack.c.l.b16 %v2981
      %v3014 = vunpack.c.l.b16 %v2982
      %v3015 = vpack.c.b16 %v3000, %v2999
      %v3016 = vpack.c.b16 %v3002, %v3001
      %v3017 = vpack.c.b16 %v3004, %v3003
      %v3018 = vpack.c.b16 %v3006, %v3005
      %v3019 = vpack.c.b16 %v3008, %v3007
      %v3020 = vpack.c.b16 %v3010, %v3009
      %v3021 = vpack.c.b16 %v3012, %v3011
      %v3022 = vpack.c.b16 %v3014, %v3013
      %3031 = vmatprep.subr.bf16.mxu0 0
      %3032 = vmatpush1.bf16.msra.mxu0 %v3022
      %3033 = vmatprep.subr.bf16.mxu0 0
      %3034 = vmatpush1.bf16.msra.mxu0 %v3021
      %3035 = vmatprep.subr.bf16.mxu0 0
      %3036 = vmatpush1.bf16.msra.mxu0 %v3020
      %3037 = vmatprep.subr.bf16.mxu0 0
      %3038 = vmatpush1.bf16.msra.mxu0 %v3019
      %3039 = vmatprep.subr.bf16.mxu0 0
      %3040 = vmatpush1.bf16.msra.mxu0 %v3018
      %3041 = vmatprep.subr.bf16.mxu0 0
      %3042 = vmatpush1.bf16.msra.mxu0 %v3017
      %3043 = vmatprep.subr.bf16.mxu0 0
      %3044 = vmatpush1.bf16.msra.mxu0 %v3016
      %3045 = vmatprep.subr.bf16.mxu0 0
      %3046 = vmatpush1.bf16.msra.mxu0 %v3015
      %3047 = vmatprep.subr.bf16.mxu0 0
      %3048 = vmatpush2.bf16.msra.mxu0 0
      %3049 = vmatprep.subr.bf16.mxu0 0
      %3050 = vmatpush2.bf16.msra.mxu0 0
      %3051 = vmatprep.subr.bf16.mxu0 0
      %3052 = vmatpush2.bf16.msra.mxu0 0
      %3053 = vmatprep.subr.bf16.mxu0 0
      %3054 = vmatpush2.bf16.msra.mxu0 0
      %3055 = vmatprep.subr.bf16.mxu0 0
      %3056 = vmatpush2.bf16.msra.mxu0 0
      %3057 = vmatprep.subr.bf16.mxu0 0
      %3058 = vmatpush2.bf16.msra.mxu0 0
      %3059 = vmatprep.subr.bf16.mxu0 0
      %3060 = vmatpush2.bf16.msra.mxu0 0
      %3061 = vmatprep.subr.bf16.mxu0 0
      %3062 = vmatpush2.bf16.msra.mxu0 0
      %3063 = vmatprep.mubr.bf16.mxu0 0
      %3064 = vmatmul.mubr.bf16.gmra.mxu0 %v939
      %v3065 = vpop.f32.mrf.mxu0
      %v3066 = vadd.f32 0.0, %v3065
      %v3067 = vpop.f32.mrf.mxu0
      %v3068 = vpop.f32.mrf.mxu0
      %v3069 = vadd.f32 0.0, %v3068
      %v3070 = vpop.f32.mrf.mxu0
      %3071 = vmatprep.mubr.bf16.mxu0 0
      %3072 = vmatmul.mubr.bf16.gmra.mxu0 %v951
      %v3073 = vpop.f32.mrf.mxu0
      %v3074 = vadd.f32 0.0, %v3073
      %v3075 = vpop.f32.mrf.mxu0
      %v3076 = vpop.f32.mrf.mxu0
      %v3077 = vadd.f32 0.0, %v3076
      %v3078 = vpop.f32.mrf.mxu0
      %3079 = vmatprep.mubr.bf16.mxu0 0
      %3080 = vmatmul.mubr.bf16.gmra.mxu0 %v963
      %v3081 = vpop.f32.mrf.mxu0
      %v3082 = vadd.f32 0.0, %v3081
      %v3083 = vpop.f32.mrf.mxu0
      %v3084 = vpop.f32.mrf.mxu0
      %v3085 = vadd.f32 0.0, %v3084
      %v3086 = vpop.f32.mrf.mxu0
      %3087 = vmatprep.mubr.bf16.mxu0 0
      %3088 = vmatmul.mubr.bf16.gmra.mxu0 %v975
      %v3089 = vpop.f32.mrf.mxu0
      %v3090 = vadd.f32 0.0, %v3089
      %v3091 = vpop.f32.mrf.mxu0
      %v3092 = vpop.f32.mrf.mxu0
      %v3093 = vadd.f32 0.0, %v3092
      %v3094 = vpop.f32.mrf.mxu0
      %3095 = vmatprep.mubr.bf16.mxu0 0
      %3096 = vmatmul.mubr.bf16.gmra.mxu0 %v987
      %v3097 = vpop.f32.mrf.mxu0
      %v3098 = vadd.f32 0.0, %v3097
      %v3099 = vpop.f32.mrf.mxu0
      %v3100 = vpop.f32.mrf.mxu0
      %v3101 = vadd.f32 0.0, %v3100
      %v3102 = vpop.f32.mrf.mxu0
      %3103 = vmatprep.mubr.bf16.mxu0 0
      %3104 = vmatmul.mubr.bf16.gmra.mxu0 %v999
      %v3105 = vpop.f32.mrf.mxu0
      %v3106 = vadd.f32 0.0, %v3105
      %v3107 = vpop.f32.mrf.mxu0
      %v3108 = vpop.f32.mrf.mxu0
      %v3109 = vadd.f32 0.0, %v3108
      %v3110 = vpop.f32.mrf.mxu0
      %3111 = vmatprep.mubr.bf16.mxu0 0
      %3112 = vmatmul.mubr.bf16.gmra.mxu0 %v1011
      %v3113 = vpop.f32.mrf.mxu0
      %v3114 = vadd.f32 0.0, %v3113
      %v3115 = vpop.f32.mrf.mxu0
      %v3116 = vpop.f32.mrf.mxu0
      %v3117 = vadd.f32 0.0, %v3116
      %v3118 = vpop.f32.mrf.mxu0
      %3119 = vmatprep.mubr.bf16.mxu0 0
      %3120 = vmatmul.mubr.bf16.gmra.mxu0 %v1023
      %v3121 = vpop.f32.mrf.mxu0
      %v3122 = vadd.f32 0.0, %v3121
      %v3123 = vpop.f32.mrf.mxu0
      %v3124 = vpop.f32.mrf.mxu0
      %v3125 = vadd.f32 0.0, %v3124
      %v3126 = vpop.f32.mrf.mxu0
      %3127 = vmatprep.mubr.bf16.mxu0 0
      %3128 = vmatmul.mubr.bf16.gmra.mxu0 %v1035
      %v3129 = vpop.f32.mrf.mxu0
      %v3130 = vadd.f32 0.0, %v3129
      %v3131 = vpop.f32.mrf.mxu0
      %v3132 = vpop.f32.mrf.mxu0
      %v3133 = vadd.f32 0.0, %v3132
      %v3134 = vpop.f32.mrf.mxu0
      %3135 = vmatprep.mubr.bf16.mxu0 0
      %3136 = vmatmul.mubr.bf16.gmra.mxu0 %v1047
      %v3137 = vpop.f32.mrf.mxu0
      %v3138 = vadd.f32 0.0, %v3137
      %v3139 = vpop.f32.mrf.mxu0
      %v3140 = vpop.f32.mrf.mxu0
      %v3141 = vadd.f32 0.0, %v3140
      %v3142 = vpop.f32.mrf.mxu0
      %3143 = vmatprep.mubr.bf16.mxu0 0
      %3144 = vmatmul.mubr.bf16.gmra.mxu0 %v1059
      %v3145 = vpop.f32.mrf.mxu0
      %v3146 = vadd.f32 0.0, %v3145
      %v3147 = vpop.f32.mrf.mxu0
      %v3148 = vpop.f32.mrf.mxu0
      %v3149 = vadd.f32 0.0, %v3148
      %v3150 = vpop.f32.mrf.mxu0
      %3151 = vmatprep.mubr.bf16.mxu0 0
      %3152 = vmatmul.mubr.bf16.gmra.mxu0 %v1071
      %v3153 = vpop.f32.mrf.mxu0
      %v3154 = vadd.f32 0.0, %v3153
      %v3155 = vpop.f32.mrf.mxu0
      %v3156 = vpop.f32.mrf.mxu0
      %v3157 = vadd.f32 0.0, %v3156
      %v3158 = vpop.f32.mrf.mxu0
      %3159 = vmatprep.mubr.bf16.mxu0 0
      %3160 = vmatmul.mubr.bf16.gmra.mxu0 %v1083
      %v3161 = vpop.f32.mrf.mxu0
      %v3162 = vadd.f32 0.0, %v3161
      %v3163 = vpop.f32.mrf.mxu0
      %v3164 = vpop.f32.mrf.mxu0
      %v3165 = vadd.f32 0.0, %v3164
      %v3166 = vpop.f32.mrf.mxu0
      %3167 = vmatprep.mubr.bf16.mxu0 0
      %3168 = vmatmul.mubr.bf16.gmra.mxu0 %v1095
      %v3169 = vpop.f32.mrf.mxu0
      %v3170 = vadd.f32 0.0, %v3169
      %v3171 = vpop.f32.mrf.mxu0
      %v3172 = vpop.f32.mrf.mxu0
      %v3173 = vadd.f32 0.0, %v3172
      %v3174 = vpop.f32.mrf.mxu0
      %3175 = vmatprep.mubr.bf16.mxu0 0
      %3176 = vmatmul.mubr.bf16.gmra.mxu0 %v2171
      %v3177 = vpop.f32.mrf.mxu0
      %v3178 = vadd.f32 0.0, %v3177
      %v3179 = vpop.f32.mrf.mxu0
      %v3180 = vpop.f32.mrf.mxu0
      %v3181 = vadd.f32 0.0, %v3180
      %v3182 = vpop.f32.mrf.mxu0
      %3183 = vmatprep.mubr.bf16.mxu0 0
      %3184 = vmatmul.mubr.bf16.gmra.mxu0 %v2964
      %v3185 = vpop.f32.mrf.mxu0
      %v3186 = vadd.f32 0.0, %v3185
      %v3187 = vpop.f32.mrf.mxu0
      %v3188 = vpop.f32.mrf.mxu0
      %v3189 = vadd.f32 0.0, %v3188
      %v3190 = vpop.f32.mrf.mxu0
      %3191 = vdwg.mxu0
      %v3192 = vadd.f32 %v2921, %v3066
      %v3193 = vadd.f32 %v2922, %v3069
      %v3194 = vadd.f32 %v2923, %v3074
      %v3195 = vadd.f32 %v2924, %v3077
      %v3196 = vadd.f32 %v2925, %v3082
      %v3197 = vadd.f32 %v2926, %v3085
      %v3198 = vadd.f32 %v2927, %v3090
      %v3199 = vadd.f32 %v2928, %v3093
      %v3200 = vadd.f32 %v2929, %v3098
      %v3201 = vadd.f32 %v2930, %v3101
      %v3202 = vadd.f32 %v2931, %v3106
      %v3203 = vadd.f32 %v2932, %v3109
      %v3204 = vadd.f32 %v2933, %v3114
      %v3205 = vadd.f32 %v2934, %v3117
      %v3206 = vadd.f32 %v2935, %v3122
      %v3207 = vadd.f32 %v2936, %v3125
      %v3208 = vadd.f32 %v2937, %v3130
      %v3209 = vadd.f32 %v2938, %v3133
      %v3210 = vadd.f32 %v2939, %v3138
      %v3211 = vadd.f32 %v2940, %v3141
      %v3212 = vadd.f32 %v2941, %v3146
      %v3213 = vadd.f32 %v2942, %v3149
      %v3214 = vadd.f32 %v2943, %v3154
      %v3215 = vadd.f32 %v2944, %v3157
      %v3216 = vadd.f32 %v2945, %v3162
      %v3217 = vadd.f32 %v2946, %v3165
      %v3218 = vadd.f32 %v2947, %v3170
      %v3219 = vadd.f32 %v2948, %v3173
      %v3220 = vadd.f32 %v2949, %v3178
      %v3221 = vadd.f32 %v2950, %v3181
      %v3222 = vadd.f32 %v2951, %v3186
      %v3223 = vadd.f32 %v2952, %v3189
      %v3226 = vrot.slane %v868, 1
      %v3227 = vrot.slane %v886, 1
      %v3228 = vsel %vm1579, %v3226, %v3227
      %s3230 = scalar_lea.vmem %s5, 512
      %v3231 = vld [vmem:[%s3230] sm:$0xf]
      %v3232 = vld [vmem:[%s3230 + $0x4] sm:$0xf]
      %v3233 = vld [vmem:[%s3230 + $0x8] sm:$0xf]
      %v3234 = vld [vmem:[%s3230 + $0xc] sm:$0xf]
      %v3235 = vld [vmem:[%s3230 + $0x10] sm:$0xf]
      %v3236 = vld [vmem:[%s3230 + $0x14] sm:$0xf]
      %v3237 = vld [vmem:[%s3230 + $0x18] sm:$0xf]
      %v3238 = vld [vmem:[%s3230 + $0x1c] sm:$0xf]
      %v3239 = vld [vmem:[%s3230 + $0x20] sm:$0xf]
      %v3240 = vld [vmem:[%s3230 + $0x24] sm:$0xf]
      %v3241 = vld [vmem:[%s3230 + $0x28] sm:$0xf]
      %v3242 = vld [vmem:[%s3230 + $0x2c] sm:$0xf]
      %v3243 = vld [vmem:[%s3230 + $0x30] sm:$0xf]
      %v3244 = vld [vmem:[%s3230 + $0x34] sm:$0xf]
      %v3245 = vld [vmem:[%s3230 + $0x38] sm:$0xf]
      %v3246 = vld [vmem:[%s3230 + $0x3c] sm:$0xf]
      %v3263 = vunpack.c.l.b16 %v3231
      %v3264 = vunpack.c.l.b16 %v3232
      %v3265 = vunpack.c.l.b16 %v3233
      %v3266 = vunpack.c.l.b16 %v3234
      %v3267 = vunpack.c.l.b16 %v3235
      %v3268 = vunpack.c.l.b16 %v3236
      %v3269 = vunpack.c.l.b16 %v3237
      %v3270 = vunpack.c.l.b16 %v3238
      %v3271 = vunpack.c.l.b16 %v3239
      %v3272 = vunpack.c.l.b16 %v3240
      %v3273 = vunpack.c.l.b16 %v3241
      %v3274 = vunpack.c.l.b16 %v3242
      %v3275 = vunpack.c.l.b16 %v3243
      %v3276 = vunpack.c.l.b16 %v3244
      %v3277 = vunpack.c.l.b16 %v3245
      %v3278 = vunpack.c.l.b16 %v3246
      %v3279 = vpack.c.b16 %v3264, %v3263
      %v3280 = vpack.c.b16 %v3266, %v3265
      %v3281 = vpack.c.b16 %v3268, %v3267
      %v3282 = vpack.c.b16 %v3270, %v3269
      %v3283 = vpack.c.b16 %v3272, %v3271
      %v3284 = vpack.c.b16 %v3274, %v3273
      %v3285 = vpack.c.b16 %v3276, %v3275
      %v3286 = vpack.c.b16 %v3278, %v3277
      %3295 = vmatprep.subr.bf16.mxu0 0
      %3296 = vmatpush1.bf16.msra.mxu0 %v3286
      %3297 = vmatprep.subr.bf16.mxu0 0
      %3298 = vmatpush1.bf16.msra.mxu0 %v3285
      %3299 = vmatprep.subr.bf16.mxu0 0
      %3300 = vmatpush1.bf16.msra.mxu0 %v3284
      %3301 = vmatprep.subr.bf16.mxu0 0
      %3302 = vmatpush1.bf16.msra.mxu0 %v3283
      %3303 = vmatprep.subr.bf16.mxu0 0
      %3304 = vmatpush1.bf16.msra.mxu0 %v3282
      %3305 = vmatprep.subr.bf16.mxu0 0
      %3306 = vmatpush1.bf16.msra.mxu0 %v3281
      %3307 = vmatprep.subr.bf16.mxu0 0
      %3308 = vmatpush1.bf16.msra.mxu0 %v3280
      %3309 = vmatprep.subr.bf16.mxu0 0
      %3310 = vmatpush1.bf16.msra.mxu0 %v3279
      %3311 = vmatprep.subr.bf16.mxu0 0
      %3312 = vmatpush2.bf16.msra.mxu0 0
      %3313 = vmatprep.subr.bf16.mxu0 0
      %3314 = vmatpush2.bf16.msra.mxu0 0
      %3315 = vmatprep.subr.bf16.mxu0 0
      %3316 = vmatpush2.bf16.msra.mxu0 0
      %3317 = vmatprep.subr.bf16.mxu0 0
      %3318 = vmatpush2.bf16.msra.mxu0 0
      %3319 = vmatprep.subr.bf16.mxu0 0
      %3320 = vmatpush2.bf16.msra.mxu0 0
      %3321 = vmatprep.subr.bf16.mxu0 0
      %3322 = vmatpush2.bf16.msra.mxu0 0
      %3323 = vmatprep.subr.bf16.mxu0 0
      %3324 = vmatpush2.bf16.msra.mxu0 0
      %3325 = vmatprep.subr.bf16.mxu0 0
      %3326 = vmatpush2.bf16.msra.mxu0 0
      %3327 = vmatprep.mubr.bf16.mxu0 0
      %3328 = vmatmul.mubr.bf16.gmra.mxu0 %v1588
      %v3329 = vpop.f32.mrf.mxu0
      %v3330 = vadd.f32 0.0, %v3329
      %v3331 = vpop.f32.mrf.mxu0
      %v3332 = vpop.f32.mrf.mxu0
      %v3333 = vadd.f32 0.0, %v3332
      %v3334 = vpop.f32.mrf.mxu0
      %3335 = vmatprep.mubr.bf16.mxu0 0
      %3336 = vmatmul.mubr.bf16.gmra.mxu0 %v1591
      %v3337 = vpop.f32.mrf.mxu0
      %v3338 = vadd.f32 0.0, %v3337
      %v3339 = vpop.f32.mrf.mxu0
      %v3340 = vpop.f32.mrf.mxu0
      %v3341 = vadd.f32 0.0, %v3340
      %v3342 = vpop.f32.mrf.mxu0
      %3343 = vmatprep.mubr.bf16.mxu0 0
      %3344 = vmatmul.mubr.bf16.gmra.mxu0 %v1594
      %v3345 = vpop.f32.mrf.mxu0
      %v3346 = vadd.f32 0.0, %v3345
      %v3347 = vpop.f32.mrf.mxu0
      %v3348 = vpop.f32.mrf.mxu0
      %v3349 = vadd.f32 0.0, %v3348
      %v3350 = vpop.f32.mrf.mxu0
      %3351 = vmatprep.mubr.bf16.mxu0 0
      %3352 = vmatmul.mubr.bf16.gmra.mxu0 %v1597
      %v3353 = vpop.f32.mrf.mxu0
      %v3354 = vadd.f32 0.0, %v3353
      %v3355 = vpop.f32.mrf.mxu0
      %v3356 = vpop.f32.mrf.mxu0
      %v3357 = vadd.f32 0.0, %v3356
      %v3358 = vpop.f32.mrf.mxu0
      %3359 = vmatprep.mubr.bf16.mxu0 0
      %3360 = vmatmul.mubr.bf16.gmra.mxu0 %v1600
      %v3361 = vpop.f32.mrf.mxu0
      %v3362 = vadd.f32 0.0, %v3361
      %v3363 = vpop.f32.mrf.mxu0
      %v3364 = vpop.f32.mrf.mxu0
      %v3365 = vadd.f32 0.0, %v3364
      %v3366 = vpop.f32.mrf.mxu0
      %3367 = vmatprep.mubr.bf16.mxu0 0
      %3368 = vmatmul.mubr.bf16.gmra.mxu0 %v1603
      %v3369 = vpop.f32.mrf.mxu0
      %v3370 = vadd.f32 0.0, %v3369
      %v3371 = vpop.f32.mrf.mxu0
      %v3372 = vpop.f32.mrf.mxu0
      %v3373 = vadd.f32 0.0, %v3372
      %v3374 = vpop.f32.mrf.mxu0
      %3375 = vmatprep.mubr.bf16.mxu0 0
      %3376 = vmatmul.mubr.bf16.gmra.mxu0 %v1606
      %v3377 = vpop.f32.mrf.mxu0
      %v3378 = vadd.f32 0.0, %v3377
      %v3379 = vpop.f32.mrf.mxu0
      %v3380 = vpop.f32.mrf.mxu0
      %v3381 = vadd.f32 0.0, %v3380
      %v3382 = vpop.f32.mrf.mxu0
      %3383 = vmatprep.mubr.bf16.mxu0 0
      %3384 = vmatmul.mubr.bf16.gmra.mxu0 %v1609
      %v3385 = vpop.f32.mrf.mxu0
      %v3386 = vadd.f32 0.0, %v3385
      %v3387 = vpop.f32.mrf.mxu0
      %v3388 = vpop.f32.mrf.mxu0
      %v3389 = vadd.f32 0.0, %v3388
      %v3390 = vpop.f32.mrf.mxu0
      %3391 = vmatprep.mubr.bf16.mxu0 0
      %3392 = vmatmul.mubr.bf16.gmra.mxu0 %v1612
      %v3393 = vpop.f32.mrf.mxu0
      %v3394 = vadd.f32 0.0, %v3393
      %v3395 = vpop.f32.mrf.mxu0
      %v3396 = vpop.f32.mrf.mxu0
      %v3397 = vadd.f32 0.0, %v3396
      %v3398 = vpop.f32.mrf.mxu0
      %3399 = vmatprep.mubr.bf16.mxu0 0
      %3400 = vmatmul.mubr.bf16.gmra.mxu0 %v1615
      %v3401 = vpop.f32.mrf.mxu0
      %v3402 = vadd.f32 0.0, %v3401
      %v3403 = vpop.f32.mrf.mxu0
      %v3404 = vpop.f32.mrf.mxu0
      %v3405 = vadd.f32 0.0, %v3404
      %v3406 = vpop.f32.mrf.mxu0
      %3407 = vmatprep.mubr.bf16.mxu0 0
      %3408 = vmatmul.mubr.bf16.gmra.mxu0 %v1618
      %v3409 = vpop.f32.mrf.mxu0
      %v3410 = vadd.f32 0.0, %v3409
      %v3411 = vpop.f32.mrf.mxu0
      %v3412 = vpop.f32.mrf.mxu0
      %v3413 = vadd.f32 0.0, %v3412
      %v3414 = vpop.f32.mrf.mxu0
      %3415 = vmatprep.mubr.bf16.mxu0 0
      %3416 = vmatmul.mubr.bf16.gmra.mxu0 %v1621
      %v3417 = vpop.f32.mrf.mxu0
      %v3418 = vadd.f32 0.0, %v3417
      %v3419 = vpop.f32.mrf.mxu0
      %v3420 = vpop.f32.mrf.mxu0
      %v3421 = vadd.f32 0.0, %v3420
      %v3422 = vpop.f32.mrf.mxu0
      %3423 = vmatprep.mubr.bf16.mxu0 0
      %3424 = vmatmul.mubr.bf16.gmra.mxu0 %v1624
      %v3425 = vpop.f32.mrf.mxu0
      %v3426 = vadd.f32 0.0, %v3425
      %v3427 = vpop.f32.mrf.mxu0
      %v3428 = vpop.f32.mrf.mxu0
      %v3429 = vadd.f32 0.0, %v3428
      %v3430 = vpop.f32.mrf.mxu0
      %3431 = vmatprep.mubr.bf16.mxu0 0
      %3432 = vmatmul.mubr.bf16.gmra.mxu0 %v1627
      %v3433 = vpop.f32.mrf.mxu0
      %v3434 = vadd.f32 0.0, %v3433
      %v3435 = vpop.f32.mrf.mxu0
      %v3436 = vpop.f32.mrf.mxu0
      %v3437 = vadd.f32 0.0, %v3436
      %v3438 = vpop.f32.mrf.mxu0
      %3439 = vmatprep.mubr.bf16.mxu0 0
      %3440 = vmatmul.mubr.bf16.gmra.mxu0 %v2435
      %v3441 = vpop.f32.mrf.mxu0
      %v3442 = vadd.f32 0.0, %v3441
      %v3443 = vpop.f32.mrf.mxu0
      %v3444 = vpop.f32.mrf.mxu0
      %v3445 = vadd.f32 0.0, %v3444
      %v3446 = vpop.f32.mrf.mxu0
      %3447 = vmatprep.mubr.bf16.mxu0 0
      %3448 = vmatmul.mubr.bf16.gmra.mxu0 %v3228
      %v3449 = vpop.f32.mrf.mxu0
      %v3450 = vadd.f32 0.0, %v3449
      %v3451 = vpop.f32.mrf.mxu0
      %v3452 = vpop.f32.mrf.mxu0
      %v3453 = vadd.f32 0.0, %v3452
      %v3454 = vpop.f32.mrf.mxu0
      %3455 = vdwg.mxu0
      %v3456 = vadd.f32 %v3192, %v3330
      %v3457 = vadd.f32 %v3193, %v3333
      %v3458 = vadd.f32 %v3194, %v3338
      %v3459 = vadd.f32 %v3195, %v3341
      %v3460 = vadd.f32 %v3196, %v3346
      %v3461 = vadd.f32 %v3197, %v3349
      %v3462 = vadd.f32 %v3198, %v3354
      %v3463 = vadd.f32 %v3199, %v3357
      %v3464 = vadd.f32 %v3200, %v3362
      %v3465 = vadd.f32 %v3201, %v3365
      %v3466 = vadd.f32 %v3202, %v3370
      %v3467 = vadd.f32 %v3203, %v3373
      %v3468 = vadd.f32 %v3204, %v3378
      %v3469 = vadd.f32 %v3205, %v3381
      %v3470 = vadd.f32 %v3206, %v3386
      %v3471 = vadd.f32 %v3207, %v3389
      %v3472 = vadd.f32 %v3208, %v3394
      %v3473 = vadd.f32 %v3209, %v3397
      %v3474 = vadd.f32 %v3210, %v3402
      %v3475 = vadd.f32 %v3211, %v3405
      %v3476 = vadd.f32 %v3212, %v3410
      %v3477 = vadd.f32 %v3213, %v3413
      %v3478 = vadd.f32 %v3214, %v3418
      %v3479 = vadd.f32 %v3215, %v3421
      %v3480 = vadd.f32 %v3216, %v3426
      %v3481 = vadd.f32 %v3217, %v3429
      %v3482 = vadd.f32 %v3218, %v3434
      %v3483 = vadd.f32 %v3219, %v3437
      %v3484 = vadd.f32 %v3220, %v3442
      %v3485 = vadd.f32 %v3221, %v3445
      %v3486 = vadd.f32 %v3222, %v3450
      %v3487 = vadd.f32 %v3223, %v3453
      %v3488 = vpack.c.bf16 %v3457, %v3456
      %v3489 = vpack.c.bf16 %v3459, %v3458
      %v3490 = vpack.c.bf16 %v3461, %v3460
      %v3491 = vpack.c.bf16 %v3463, %v3462
      %v3492 = vpack.c.bf16 %v3465, %v3464
      %v3493 = vpack.c.bf16 %v3467, %v3466
      %v3494 = vpack.c.bf16 %v3469, %v3468
      %v3495 = vpack.c.bf16 %v3471, %v3470
      %v3496 = vpack.c.bf16 %v3473, %v3472
      %v3497 = vpack.c.bf16 %v3475, %v3474
      %v3498 = vpack.c.bf16 %v3477, %v3476
      %v3499 = vpack.c.bf16 %v3479, %v3478
      %v3500 = vpack.c.bf16 %v3481, %v3480
      %v3501 = vpack.c.bf16 %v3483, %v3482
      %v3502 = vpack.c.bf16 %v3485, %v3484
      %v3503 = vpack.c.bf16 %v3487, %v3486
      %v3520 = vunpack.c.l.b16 %v3488
      %v3521 = vunpack.c.h.b16 %v3488
      %v3522 = vunpack.c.l.b16 %v3489
      %v3523 = vunpack.c.h.b16 %v3489
      %v3524 = vunpack.c.l.b16 %v3490
      %v3525 = vunpack.c.h.b16 %v3490
      %v3526 = vunpack.c.l.b16 %v3491
      %v3527 = vunpack.c.h.b16 %v3491
      %v3528 = vunpack.c.l.b16 %v3492
      %v3529 = vunpack.c.h.b16 %v3492
      %v3530 = vunpack.c.l.b16 %v3493
      %v3531 = vunpack.c.h.b16 %v3493
      %v3532 = vunpack.c.l.b16 %v3494
      %v3533 = vunpack.c.h.b16 %v3494
      %v3534 = vunpack.c.l.b16 %v3495
      %v3535 = vunpack.c.h.b16 %v3495
      %v3536 = vunpack.c.l.b16 %v3496
      %v3537 = vunpack.c.h.b16 %v3496
      %v3538 = vunpack.c.l.b16 %v3497
      %v3539 = vunpack.c.h.b16 %v3497
      %v3540 = vunpack.c.l.b16 %v3498
      %v3541 = vunpack.c.h.b16 %v3498
      %v3542 = vunpack.c.l.b16 %v3499
      %v3543 = vunpack.c.h.b16 %v3499
      %v3544 = vunpack.c.l.b16 %v3500
      %v3545 = vunpack.c.h.b16 %v3500
      %v3546 = vunpack.c.l.b16 %v3501
      %v3547 = vunpack.c.h.b16 %v3501
      %v3548 = vunpack.c.l.b16 %v3502
      %v3549 = vunpack.c.h.b16 %v3502
      %v3550 = vunpack.c.l.b16 %v3503
      %v3551 = vunpack.c.h.b16 %v3503
      %v3552 = vpack.c.b16 %v3520, %v3520
      %v3553 = vpack.c.b16 %v3521, %v3521
      %v3554 = vpack.c.b16 %v3522, %v3522
      %v3555 = vpack.c.b16 %v3523, %v3523
      %v3556 = vpack.c.b16 %v3524, %v3524
      %v3557 = vpack.c.b16 %v3525, %v3525
      %v3558 = vpack.c.b16 %v3526, %v3526
      %v3559 = vpack.c.b16 %v3527, %v3527
      %v3560 = vpack.c.b16 %v3528, %v3528
      %v3561 = vpack.c.b16 %v3529, %v3529
      %v3562 = vpack.c.b16 %v3530, %v3530
      %v3563 = vpack.c.b16 %v3531, %v3531
      %v3564 = vpack.c.b16 %v3532, %v3532
      %v3565 = vpack.c.b16 %v3533, %v3533
      %v3566 = vpack.c.b16 %v3534, %v3534
      %v3567 = vpack.c.b16 %v3535, %v3535
      %v3568 = vpack.c.b16 %v3536, %v3536
      %v3569 = vpack.c.b16 %v3537, %v3537
      %v3570 = vpack.c.b16 %v3538, %v3538
      %v3571 = vpack.c.b16 %v3539, %v3539
      %v3572 = vpack.c.b16 %v3540, %v3540
      %v3573 = vpack.c.b16 %v3541, %v3541
      %v3574 = vpack.c.b16 %v3542, %v3542
      %v3575 = vpack.c.b16 %v3543, %v3543
      %v3576 = vpack.c.b16 %v3544, %v3544
      %v3577 = vpack.c.b16 %v3545, %v3545
      %v3578 = vpack.c.b16 %v3546, %v3546
      %v3579 = vpack.c.b16 %v3547, %v3547
      %v3580 = vpack.c.b16 %v3548, %v3548
      %v3581 = vpack.c.b16 %v3549, %v3549
      %v3582 = vpack.c.b16 %v3550, %v3550
      %v3583 = vpack.c.b16 %v3551, %v3551
      %3616 = vst [vmem:[%s455] sm:$0xf] %v3552
      %3617 = vst [vmem:[%s455 + $0x4] sm:$0xf] %v3553
      %3618 = vst [vmem:[%s455 + $0x8] sm:$0xf] %v3554
      %3619 = vst [vmem:[%s455 + $0xc] sm:$0xf] %v3555
      %3620 = vst [vmem:[%s455 + $0x10] sm:$0xf] %v3556
      %3621 = vst [vmem:[%s455 + $0x14] sm:$0xf] %v3557
      %3622 = vst [vmem:[%s455 + $0x18] sm:$0xf] %v3558
      %3623 = vst [vmem:[%s455 + $0x1c] sm:$0xf] %v3559
      %3624 = vst [vmem:[%s455 + $0x20] sm:$0xf] %v3560
      %3625 = vst [vmem:[%s455 + $0x24] sm:$0xf] %v3561
      %3626 = vst [vmem:[%s455 + $0x28] sm:$0xf] %v3562
      %3627 = vst [vmem:[%s455 + $0x2c] sm:$0xf] %v3563
      %3628 = vst [vmem:[%s455 + $0x30] sm:$0xf] %v3564
      %3629 = vst [vmem:[%s455 + $0x34] sm:$0xf] %v3565
      %3630 = vst [vmem:[%s455 + $0x38] sm:$0xf] %v3566
      %3631 = vst [vmem:[%s455 + $0x3c] sm:$0xf] %v3567
      %3632 = vst [vmem:[%s455 + $0x40] sm:$0xf] %v3568
      %3633 = vst [vmem:[%s455 + $0x44] sm:$0xf] %v3569
      %3634 = vst [vmem:[%s455 + $0x48] sm:$0xf] %v3570
      %3635 = vst [vmem:[%s455 + $0x4c] sm:$0xf] %v3571
      %3636 = vst [vmem:[%s455 + $0x50] sm:$0xf] %v3572
      %3637 = vst [vmem:[%s455 + $0x54] sm:$0xf] %v3573
      %3638 = vst [vmem:[%s455 + $0x58] sm:$0xf] %v3574
      %3639 = vst [vmem:[%s455 + $0x5c] sm:$0xf] %v3575
      %3640 = vst [vmem:[%s455 + $0x60] sm:$0xf] %v3576
      %3641 = vst [vmem:[%s455 + $0x64] sm:$0xf] %v3577
      %3642 = vst [vmem:[%s455 + $0x68] sm:$0xf] %v3578
      %3643 = vst [vmem:[%s455 + $0x6c] sm:$0xf] %v3579
      %3644 = vst [vmem:[%s455 + $0x70] sm:$0xf] %v3580
      %3645 = vst [vmem:[%s455 + $0x74] sm:$0xf] %v3581
      %3646 = vst [vmem:[%s455 + $0x78] sm:$0xf] %v3582
      %3647 = vst [vmem:[%s455 + $0x7c] sm:$0xf] %v3583
      %v3648 = vadd.f32 %v3456, %v3457
      %v3649 = vadd.f32 %v3648, %v3458
      %v3650 = vadd.f32 %v3649, %v3459
      %v3651 = vadd.f32 %v3650, %v3460
      %v3652 = vadd.f32 %v3651, %v3461
      %v3653 = vadd.f32 %v3652, %v3462
      %v3654 = vadd.f32 %v3653, %v3463
      %v3655 = vadd.f32 %v3654, %v3464
      %v3656 = vadd.f32 %v3655, %v3465
      %v3657 = vadd.f32 %v3656, %v3466
      %v3658 = vadd.f32 %v3657, %v3467
      %v3659 = vadd.f32 %v3658, %v3468
      %v3660 = vadd.f32 %v3659, %v3469
      %v3661 = vadd.f32 %v3660, %v3470
      %v3662 = vadd.f32 %v3661, %v3471
      %v3663 = vadd.f32 %v3662, %v3472
      %v3664 = vadd.f32 %v3663, %v3473
      %v3665 = vadd.f32 %v3664, %v3474
      %v3666 = vadd.f32 %v3665, %v3475
      %v3667 = vadd.f32 %v3666, %v3476
      %v3668 = vadd.f32 %v3667, %v3477
      %v3669 = vadd.f32 %v3668, %v3478
      %v3670 = vadd.f32 %v3669, %v3479
      %v3671 = vadd.f32 %v3670, %v3480
      %v3672 = vadd.f32 %v3671, %v3481
      %v3673 = vadd.f32 %v3672, %v3482
      %v3674 = vadd.f32 %v3673, %v3483
      %v3675 = vadd.f32 %v3674, %v3484
      %v3676 = vadd.f32 %v3675, %v3485
      %v3677 = vadd.f32 %v3676, %v3486
      %v3678 = vadd.f32 %v3677, %v3487
      %v3679 = vrot.slane %v3678, 4
      %v3680 = vadd.f32 %v3678, %v3679
      %v3681 = vrot.slane %v3680, 2
      %v3682 = vadd.f32 %v3680, %v3681
      %v3683 = vrot.slane %v3682, 1
      %v3684 = vadd.f32 %v3682, %v3683
      %v3685 = vmul.f32 %v3456, %v3456
      %v3686 = vmul.f32 %v3457, %v3457
      %v3687 = vmul.f32 %v3458, %v3458
      %v3688 = vmul.f32 %v3459, %v3459
      %v3689 = vmul.f32 %v3460, %v3460
      %v3690 = vmul.f32 %v3461, %v3461
      %v3691 = vmul.f32 %v3462, %v3462
      %v3692 = vmul.f32 %v3463, %v3463
      %v3693 = vmul.f32 %v3464, %v3464
      %v3694 = vmul.f32 %v3465, %v3465
      %v3695 = vmul.f32 %v3466, %v3466
      %v3696 = vmul.f32 %v3467, %v3467
      %v3697 = vmul.f32 %v3468, %v3468
      %v3698 = vmul.f32 %v3469, %v3469
      %v3699 = vmul.f32 %v3470, %v3470
      %v3700 = vmul.f32 %v3471, %v3471
      %v3701 = vmul.f32 %v3472, %v3472
      %v3702 = vmul.f32 %v3473, %v3473
      %v3703 = vmul.f32 %v3474, %v3474
      %v3704 = vmul.f32 %v3475, %v3475
      %v3705 = vmul.f32 %v3476, %v3476
      %v3706 = vmul.f32 %v3477, %v3477
      %v3707 = vmul.f32 %v3478, %v3478
      %v3708 = vmul.f32 %v3479, %v3479
      %v3709 = vmul.f32 %v3480, %v3480
      %v3710 = vmul.f32 %v3481, %v3481
      %v3711 = vmul.f32 %v3482, %v3482
      %v3712 = vmul.f32 %v3483, %v3483
      %v3713 = vmul.f32 %v3484, %v3484
      %v3714 = vmul.f32 %v3485, %v3485
      %v3715 = vmul.f32 %v3486, %v3486
      %v3716 = vmul.f32 %v3487, %v3487
      %v3717 = vadd.f32 %v3685, %v3686
      %v3718 = vadd.f32 %v3717, %v3687
      %v3719 = vadd.f32 %v3718, %v3688
      %v3720 = vadd.f32 %v3719, %v3689
      %v3721 = vadd.f32 %v3720, %v3690
      %v3722 = vadd.f32 %v3721, %v3691
      %v3723 = vadd.f32 %v3722, %v3692
      %v3724 = vadd.f32 %v3723, %v3693
      %v3725 = vadd.f32 %v3724, %v3694
      %v3726 = vadd.f32 %v3725, %v3695
      %v3727 = vadd.f32 %v3726, %v3696
      %v3728 = vadd.f32 %v3727, %v3697
      %v3729 = vadd.f32 %v3728, %v3698
      %v3730 = vadd.f32 %v3729, %v3699
      %v3731 = vadd.f32 %v3730, %v3700
      %v3732 = vadd.f32 %v3731, %v3701
      %v3733 = vadd.f32 %v3732, %v3702
      %v3734 = vadd.f32 %v3733, %v3703
      %v3735 = vadd.f32 %v3734, %v3704
      %v3736 = vadd.f32 %v3735, %v3705
      %v3737 = vadd.f32 %v3736, %v3706
      %v3738 = vadd.f32 %v3737, %v3707
      %v3739 = vadd.f32 %v3738, %v3708
      %v3740 = vadd.f32 %v3739, %v3709
      %v3741 = vadd.f32 %v3740, %v3710
      %v3742 = vadd.f32 %v3741, %v3711
      %v3743 = vadd.f32 %v3742, %v3712
      %v3744 = vadd.f32 %v3743, %v3713
      %v3745 = vadd.f32 %v3744, %v3714
      %v3746 = vadd.f32 %v3745, %v3715
      %v3747 = vadd.f32 %v3746, %v3716
      %v3748 = vrot.slane %v3747, 4
      %v3749 = vadd.f32 %v3747, %v3748
      %v3750 = vrot.slane %v3749, 2
      %v3751 = vadd.f32 %v3749, %v3750
      %v3752 = vrot.slane %v3751, 1
      %v3753 = vadd.f32 %v3751, %v3752
      %vm3754 = vcmask 1040384
      %v3755 = vsel %vm3754, %v3684, %v3753
      %3756 = vst [vmem:[%s462] sm:$0x3] %v3755
      %p3757 = scmp.lt.s32.totalorder %s23, 1
      %s3758 = scalar_select %p3757, %s23, 1
      %p3759 = scmp.lt.s32.totalorder %s24, 0
      %s3760 = scalar_select %p3759, %s24, 0
      %s3761 = smul.addr %s3760, 32
      %s3762 = smul.addr %s3758, 32
      %s3763 = sadd.s32 %s3761, %s3762
      %s3764 = smul.addr %s3763, 4
      %s3765 = scalar_lea.vmem %s6, %s3764
      %p3766 = scmp.lt.s32.totalorder %s23, 1
      %s3767 = scalar_select %p3766, %s23, 1
      %p3768 = scmp.lt.s32.totalorder %s24, 0
      %s3769 = scalar_select %p3768, %s24, 0
      %s3770 = sadd.s32 %s3769, %s3767
      %s3771 = smul.addr %s3770, 2
      %s3772 = scalar_lea.vmem %s7, %s3771
      // Predicated region
      $region45: #{bottleneck_forward.5} parent=43 // pred_check
        %p3773 = pneg %p214
      $region46: #{bottleneck_forward.5} parent=43 // pred_check_branch
        %3775 = sbr.rel (%p3773) target = $region48
      $region47: #{bottleneck_forward.5} parent=43 // pred_region
        _
      $region48: #{bottleneck_forward.5} parent=43 // pred_fallthru
        _
      // Predicated region
      $region49: #{bottleneck_forward.5} parent=43 // pred_check
        %p3776 = pneg %p242
      $region50: #{bottleneck_forward.5} parent=43 // pred_check_branch
        %3778 = sbr.rel (%p3776) target = $region52
      $region51: #{bottleneck_forward.5} parent=43 // pred_region
        _
      $region52: #{bottleneck_forward.5} parent=43 // pred_fallthru
        _
    $region44: #{bottleneck_forward.5} parent=5 // pred_fallthru
      _
    %p3779 = scmp.le.s32.totalorder 2, %s14
    // Predicated region
    $region53: #{bottleneck_forward.5} parent=5 // pred_check
      %p3780 = pneg %p3779
    $region54: #{bottleneck_forward.5} parent=5 // pred_check_branch
      %3782 = sbr.rel (%p3780) target = $region56
    $region55: #{bottleneck_forward.5} parent=5 // pred_region
      %s3783 = ssub.s32 %s14, 2
      // Predicated region
      $region57: #{bottleneck_forward.5} parent=55 // pred_check
        %p3784 = pneg %p220
      $region58: #{bottleneck_forward.5} parent=55 // pred_check_branch
        %3786 = sbr.rel (%p3784) target = $region60
      $region59: #{bottleneck_forward.5} parent=55 // pred_region
        %p3787 = scmp.lt.s32.totalorder %s25, 1
        %s3788 = scalar_select %p3787, %s25, 1
        %p3789 = scmp.lt.s32.totalorder %s26, 0
        %s3790 = scalar_select %p3789, %s26, 0
        %s3791 = smul.addr %s3790, 32
        %s3792 = smul.addr %s3788, 32
        %s3793 = sadd.s32 %s3791, %s3792
        %s3794 = smul.addr %s3793, 4
        %s3795 = scalar_lea.vmem %s6, %s3794
      $region60: #{bottleneck_forward.5} parent=55 // pred_fallthru
        _
      // Predicated region
      $region61: #{bottleneck_forward.5} parent=55 // pred_check
        %p3796 = pneg %p248
      $region62: #{bottleneck_forward.5} parent=55 // pred_check_branch
        %3798 = sbr.rel (%p3796) target = $region64
      $region63: #{bottleneck_forward.5} parent=55 // pred_region
        %p3799 = scmp.lt.s32.totalorder %s25, 1
        %s3800 = scalar_select %p3799, %s25, 1
        %p3801 = scmp.lt.s32.totalorder %s26, 0
        %s3802 = scalar_select %p3801, %s26, 0
        %s3803 = sadd.s32 %s3802, %s3800
        %s3804 = smul.addr %s3803, 2
        %s3805 = scalar_lea.vmem %s7, %s3804
      $region64: #{bottleneck_forward.5} parent=55 // pred_fallthru
        _
    $region56: #{bottleneck_forward.5} parent=5 // pred_fallthru
      _
  $region6: #{bottleneck_forward.5} parent=0 // loop_footer
    %s18 = sadd.s32 1, %s14
  $region7: #{bottleneck_forward.5} parent=0 // loop_footer_branch
    %13 = sbr.rel target = $region3
  $region8: #{bottleneck_forward.5} parent=0 // loop_exit
    _

</llo_original>
